<compile_context>
chip_gen: v7x
topology: tpu7x:2x2x1
jax: 0.10.0
libtpu: 0.0.40
codegen_flags: <defaults>
</compile_context>

<pallas_src>
import functools

import jax
import jax.numpy as jnp
from jax import lax
from jax.experimental import pallas as pl
from jax.experimental.pallas import tpu as pltpu

EMBED_SIZE = 6
EPS = 1e-5
LANE_ROWS = 128                       # tokens packed per lane-dense block row
LANE_WIDTH = EMBED_SIZE * LANE_ROWS   # 768 lanes per block row


def _round_up(n, m):
    return ((n + m - 1) // m) * m


def _addnorm_kernel(x_ref, y_ref, g_ref, gt_ref, gamma_ref, beta_ref, o_ref,
                    *, chunk):
    """One grid step: a (tbg, LANE_WIDTH) lane-dense slab of tokens.

    Lane l of a block row holds element (l % E) of token (l // E). Reduction
    over E and broadcast of the statistics are stride-E lane ops, implemented
    as matmuls against constant 0/1 matrices:
        g_ref  : (LANE_WIDTH, LANE_ROWS)   g[l, j]  = 1 iff l // E == j
        gt_ref : (LANE_ROWS, LANE_WIDTH)   gt[j, l] = 1 iff l // E == j
    """
    gmat = g_ref[...]             # (LANE_WIDTH, LANE_ROWS) f32 0/1
    gtmat = gt_ref[...]           # (LANE_ROWS, LANE_WIDTH) f32 0/1
    gamma_b = gamma_ref[...]      # (1, LANE_WIDTH) f32 = gamma[l % E]
    beta_b = beta_ref[...]        # (1, LANE_WIDTH) f32 = beta[l % E]

    tbg = x_ref.shape[0]
    inv_e = jnp.float32(1.0 / EMBED_SIZE)

    # Static (unrolled) chunk loop: element-wise temporaries for a
    # (chunk, LANE_WIDTH) slab stay near the vreg file; only the small matmul
    # operands/results are staged through VMEM.
    for c in range(tbg // chunk):
        lo, hi = c * chunk, (c + 1) * chunk
        r = (x_ref[lo:hi, :].astype(jnp.float32)
             + y_ref[lo:hi, :].astype(jnp.float32))                # (chunk, LW)

        # Fused one-pass statistics: per-token sum(r) and sum(r*r) in a single
        # MXU matmul over the stride-E lane groups.
        stacked = jnp.concatenate([r, r * r], axis=0)              # (2c, LW)
        sums = jnp.dot(stacked, gmat,
                       preferred_element_type=jnp.float32,
                       precision=lax.Precision.HIGHEST) * inv_e    # (2c, 128)
        mean = sums[:chunk]
        var = sums[chunk:] - mean * mean          # biased var (PyTorch LN)
        inv = lax.rsqrt(var + EPS)                # EUP rsqrt, (chunk, 128)

        # Broadcast per-token scale/shift back to the E interleaved lanes.
        coeff = jnp.concatenate([inv, mean * inv], axis=0)         # (2c, 128)
        bcast = jnp.dot(coeff, gtmat,
                        preferred_element_type=jnp.float32,
                        precision=lax.Precision.HIGHEST)           # (2c, LW)
        scale_b = bcast[:chunk]
        shift_b = bcast[chunk:]

        out = (r * scale_b - shift_b) * gamma_b + beta_b
        o_ref[lo:hi, :] = out.astype(o_ref.dtype)


def add_norm(x, y, gamma, beta, *, block_groups=128):
    """LayerNorm(x + y) over the last dim. x, y: [B, S, E]; gamma, beta: [E]."""
    B, S, E = x.shape
    assert E == EMBED_SIZE
    rows = B * S

    # Natural contiguous order; pad tokens only up to a multiple of LANE_ROWS
    # (no copy at all when rows % 128 == 0).
    rows_p = _round_up(rows, LANE_ROWS)
    x2 = x.reshape(rows, E)
    y2 = y.reshape(rows, E)
    if rows_p != rows:
        pad = ((0, rows_p - rows), (0, 0))
        x2 = jnp.pad(x2, pad)
        y2 = jnp.pad(y2, pad)
    g_dim = rows_p // LANE_ROWS
    x3 = x2.reshape(g_dim, LANE_WIDTH)     # free reshape (contiguous)
    y3 = y2.reshape(g_dim, LANE_WIDTH)

    # Block size along the token-group axis: multiple of 8 sublanes, <= g_dim;
    # ragged last block is clamped by Pallas (no over-padding copies).
    if g_dim >= 8:
        tbg = min(block_groups, (g_dim // 8) * 8)
        tbg = max(8, (tbg // 8) * 8)
    else:
        tbg = g_dim
    if tbg % 32 == 0:
        chunk = 32            # amortizes MXU weight loads, ~30 vregs live
    elif tbg % 8 == 0:
        chunk = 8
    else:
        chunk = tbg
    grid = (pl.cdiv(g_dim, tbg),)

    f32 = jnp.float32
    lane_tok = jnp.arange(LANE_WIDTH, dtype=jnp.int32) // EMBED_SIZE
    gmat = (lane_tok[:, None]
            == jnp.arange(LANE_ROWS, dtype=jnp.int32)[None, :]).astype(f32)
    gtmat = gmat.T
    gamma_b = jnp.tile(gamma.astype(f32), LANE_ROWS)[None, :]     # (1, LW)
    beta_b = jnp.tile(beta.astype(f32), LANE_ROWS)[None, :]       # (1, LW)

    cost = pl.CostEstimate(
        flops=12 * rows_p * EMBED_SIZE,
        transcendentals=rows_p,
        bytes_accessed=3 * rows_p * EMBED_SIZE * x.dtype.itemsize,
    )

    kernel = functools.partial(_addnorm_kernel, chunk=chunk)
    out3 = pl.pallas_call(
        kernel,
        out_shape=jax.ShapeDtypeStruct((g_dim, LANE_WIDTH), x.dtype),
        grid_spec=pltpu.PrefetchScalarGridSpec(
            num_scalar_prefetch=0,
            grid=grid,
            in_specs=[
                pl.BlockSpec((tbg, LANE_WIDTH), lambda i: (i, 0)),        # x
                pl.BlockSpec((tbg, LANE_WIDTH), lambda i: (i, 0)),        # y
                pl.BlockSpec((LANE_WIDTH, LANE_ROWS), lambda i: (0, 0)),  # G (resident)
                pl.BlockSpec((LANE_ROWS, LANE_WIDTH), lambda i: (0, 0)),  # G^T (resident)
                pl.BlockSpec((1, LANE_WIDTH), lambda i: (0, 0)),          # gamma tiled
                pl.BlockSpec((1, LANE_WIDTH), lambda i: (0, 0)),          # beta tiled
            ],
            out_specs=pl.BlockSpec((tbg, LANE_WIDTH), lambda i: (i, 0)),
        ),
        compiler_params=pltpu.CompilerParams(
            dimension_semantics=("parallel",),     # shards across v7x's 2 TCs
            vmem_limit_bytes=32 * 1024 * 1024,     # footprint is only a few MiB
        ),
        cost_estimate=cost,
    )(x3, y3, gmat, gtmat, gamma_b, beta_b)

    out = out3.reshape(rows_p, E)
    if rows_p != rows:
        out = out[:rows]
    return out.reshape(B, S, E)


def add_norm_ref(x, y, gamma, beta):
    r = x + y
    mean = jnp.mean(r, axis=-1, keepdims=True)
    var = jnp.mean((r - mean) ** 2, axis=-1, keepdims=True)
    return (r - mean) * lax.rsqrt(var + EPS) * gamma + beta


if __name__ == "__main__":
    key = jax.random.PRNGKey(0)
    k1, k2, k3, k4 = jax.random.split(key, 4)
    # PyTorch LayerNorm default init: gamma=1, beta=0
    gamma = jnp.ones((EMBED_SIZE,), dtype=jnp.float32)
    beta = jnp.zeros((EMBED_SIZE,), dtype=jnp.float32)

    # Case 1: module-scale shapes (rows < 128 -> minimal-pad path).
    x1 = jax.random.normal(k1, (2, 8, EMBED_SIZE), dtype=jnp.float32)
    y1 = jax.random.normal(k2, (2, 8, EMBED_SIZE), dtype=jnp.float32)
    out1 = jax.block_until_ready(add_norm(x1, y1, gamma, beta))
    ref1 = add_norm_ref(x1, y1, gamma, beta)
    assert out1.shape == x1.shape
    assert jnp.allclose(out1, ref1, atol=5e-5, rtol=1e-5), "case 1 mismatch"

    # Case 2: multi-step grid with a ragged last block and zero padding copies
    # (rows = 33 * 128), exercising the pipelined path.
    x2 = jax.random.normal(k3, (3, 1408, EMBED_SIZE), dtype=jnp.float32)
    y2 = jax.random.normal(k4, (3, 1408, EMBED_SIZE), dtype=jnp.float32)
    out2 = jax.block_until_ready(add_norm(x2, y2, gamma, beta, block_groups=16))
    ref2 = add_norm_ref(x2, y2, gamma, beta)
    assert out2.shape == x2.shape
    assert jnp.allclose(out2, ref2, atol=5e-5, rtol=1e-5), "case 2 mismatch"

    print("KERNEL_OK")
</pallas_src>

<mosaic_0001>
module attributes {stable_mosaic.version = 11 : i64} {
  func.func @_addnorm_kernel(%arg0: i32, %arg1: memref<1x768xf32, #tpu.memory_space<vmem>>, %arg2: memref<1x768xf32, #tpu.memory_space<vmem>>, %arg3: memref<768x128xf32, #tpu.memory_space<vmem>>, %arg4: memref<128x768xf32, #tpu.memory_space<vmem>>, %arg5: memref<1x768xf32, #tpu.memory_space<vmem>>, %arg6: memref<1x768xf32, #tpu.memory_space<vmem>>, %arg7: memref<1x768xf32, #tpu.memory_space<vmem>>) attributes {dimension_semantics = [#tpu.dimension_semantics<parallel>], iteration_bounds = array<i64: 1>, scalar_prefetch = 0 : i64, scratch_operands = 0 : i64, tpu.core_type = #tpu.core_type<tc>, window_params = [{transform_indices = @transform_0, window_bounds = array<i64: 1, 768>}, {transform_indices = @transform_1, window_bounds = array<i64: 1, 768>}, {pipeline_mode = #tpu.pipeline_mode<synchronous>, transform_indices = @transform_2, window_bounds = array<i64: 768, 128>}, {pipeline_mode = #tpu.pipeline_mode<synchronous>, transform_indices = @transform_3, window_bounds = array<i64: 128, 768>}, {pipeline_mode = #tpu.pipeline_mode<synchronous>, transform_indices = @transform_4, window_bounds = array<i64: 1, 768>}, {pipeline_mode = #tpu.pipeline_mode<synchronous>, transform_indices = @transform_5, window_bounds = array<i64: 1, 768>}, {transform_indices = @transform_6, window_bounds = array<i64: 1, 768>}]} {
    %c0 = arith.constant 0 : index
    %c0_0 = arith.constant 0 : index
    %0 = vector.load %arg3[%c0, %c0_0] : memref<768x128xf32, #tpu.memory_space<vmem>>, vector<768x128xf32>
    %c0_1 = arith.constant 0 : index
    %c0_2 = arith.constant 0 : index
    %1 = vector.load %arg4[%c0_1, %c0_2] : memref<128x768xf32, #tpu.memory_space<vmem>>, vector<128x768xf32>
    %c0_3 = arith.constant 0 : index
    %c0_4 = arith.constant 0 : index
    %2 = vector.load %arg5[%c0_3, %c0_4] : memref<1x768xf32, #tpu.memory_space<vmem>>, vector<1x768xf32>
    %c0_5 = arith.constant 0 : index
    %c0_6 = arith.constant 0 : index
    %3 = vector.load %arg6[%c0_5, %c0_6] : memref<1x768xf32, #tpu.memory_space<vmem>>, vector<1x768xf32>
    %c0_7 = arith.constant 0 : index
    %c0_8 = arith.constant 0 : index
    %4 = vector.load %arg1[%c0_7, %c0_8] : memref<1x768xf32, #tpu.memory_space<vmem>>, vector<1x768xf32>
    %c0_9 = arith.constant 0 : index
    %c0_10 = arith.constant 0 : index
    %5 = vector.load %arg2[%c0_9, %c0_10] : memref<1x768xf32, #tpu.memory_space<vmem>>, vector<1x768xf32>
    %6 = arith.addf %4, %5 : vector<1x768xf32>
    %7 = arith.mulf %6, %6 : vector<1x768xf32>
    %8 = tpu.concatenate %6, %7 in 0 : vector<1x768xf32>, vector<1x768xf32> -> vector<2x768xf32>
    %cst = arith.constant dense<0.000000e+00> : vector<2x128xf32>
    %9 = tpu.matmul %8, %0, %cst {dimension_numbers = #tpu.dot_dimension_numbers<[1], [0], [0], [1], [0, 0, 1, 1], [], []>, precision = #tpu.contract_precision<fp32>} : vector<2x768xf32>, vector<768x128xf32>, vector<2x128xf32> -> vector<2x128xf32>
    %cst_11 = arith.constant 0.166666672 : f32
    %10 = vector.broadcast %cst_11 : f32 to vector<2x128xf32>
    %11 = arith.mulf %9, %10 : vector<2x128xf32>
    %12 = vector.extract_strided_slice %11 {offsets = [0, 0], sizes = [1, 128], strides = [1, 1]} : vector<2x128xf32> to vector<1x128xf32>
    %13 = vector.extract_strided_slice %11 {offsets = [1, 0], sizes = [1, 128], strides = [1, 1]} : vector<2x128xf32> to vector<1x128xf32>
    %14 = arith.mulf %12, %12 : vector<1x128xf32>
    %15 = arith.subf %13, %14 : vector<1x128xf32>
    %cst_12 = arith.constant 9.99999974E-6 : f32
    %16 = vector.broadcast %cst_12 : f32 to vector<1x128xf32>
    %17 = arith.addf %15, %16 : vector<1x128xf32>
    %18 = math.rsqrt %17 : vector<1x128xf32>
    %19 = arith.mulf %12, %18 : vector<1x128xf32>
    %20 = tpu.concatenate %18, %19 in 0 : vector<1x128xf32>, vector<1x128xf32> -> vector<2x128xf32>
    %cst_13 = arith.constant dense<0.000000e+00> : vector<2x768xf32>
    %21 = tpu.matmul %20, %1, %cst_13 {dimension_numbers = #tpu.dot_dimension_numbers<[1], [0], [0], [1], [0, 0, 1, 1], [], []>, precision = #tpu.contract_precision<fp32>} : vector<2x128xf32>, vector<128x768xf32>, vector<2x768xf32> -> vector<2x768xf32>
    %22 = vector.extract_strided_slice %21 {offsets = [0, 0], sizes = [1, 768], strides = [1, 1]} : vector<2x768xf32> to vector<1x768xf32>
    %23 = vector.extract_strided_slice %21 {offsets = [1, 0], sizes = [1, 768], strides = [1, 1]} : vector<2x768xf32> to vector<1x768xf32>
    %24 = arith.mulf %6, %22 : vector<1x768xf32>
    %25 = arith.subf %24, %23 : vector<1x768xf32>
    %26 = arith.mulf %25, %2 : vector<1x768xf32>
    %27 = arith.addf %26, %3 : vector<1x768xf32>
    %c0_14 = arith.constant 0 : index
    %c0_15 = arith.constant 0 : index
    %28 = vector.load %arg7[%c0_14, %c0_15] : memref<1x768xf32, #tpu.memory_space<vmem>>, vector<1x768xf32>
    tpu.vector_store %arg7[%c0_14, %c0_15], %27 {strides = array<i32>} : memref<1x768xf32, #tpu.memory_space<vmem>>, vector<1x768xf32>,
    return
  }
  func.func @transform_0(%arg0: i32) -> (i32, i32) {
    %c0_i32 = arith.constant 0 : i32
    %c0_i32_0 = arith.constant 0 : i32
    return %arg0, %c0_i32 : i32, i32
  }
  func.func @transform_1(%arg0: i32) -> (i32, i32) {
    %c0_i32 = arith.constant 0 : i32
    %c0_i32_0 = arith.constant 0 : i32
    return %arg0, %c0_i32 : i32, i32
  }
  func.func @transform_2(%arg0: i32) -> (i32, i32) {
    %c0_i32 = arith.constant 0 : i32
    %c0_i32_0 = arith.constant 0 : i32
    %c0_i32_1 = arith.constant 0 : i32
    return %c0_i32, %c0_i32_0 : i32, i32
  }
  func.func @transform_3(%arg0: i32) -> (i32, i32) {
    %c0_i32 = arith.constant 0 : i32
    %c0_i32_0 = arith.constant 0 : i32
    %c0_i32_1 = arith.constant 0 : i32
    return %c0_i32, %c0_i32_0 : i32, i32
  }
  func.func @transform_4(%arg0: i32) -> (i32, i32) {
    %c0_i32 = arith.constant 0 : i32
    %c0_i32_0 = arith.constant 0 : i32
    %c0_i32_1 = arith.constant 0 : i32
    return %c0_i32, %c0_i32_0 : i32, i32
  }
  func.func @transform_5(%arg0: i32) -> (i32, i32) {
    %c0_i32 = arith.constant 0 : i32
    %c0_i32_0 = arith.constant 0 : i32
    %c0_i32_1 = arith.constant 0 : i32
    return %c0_i32, %c0_i32_0 : i32, i32
  }
  func.func @transform_6(%arg0: i32) -> (i32, i32) {
    %c0_i32 = arith.constant 0 : i32
    %c0_i32_0 = arith.constant 0 : i32
    return %arg0, %c0_i32 : i32, i32
  }
}

</mosaic_0001>

<llo_original>
// kernel: tpu_custom_call.1
$region0: #{tpu_custom_call.1}
  #allocation0 [shape = 'u32[]', space=smem, size = 0x4, offset = 0x4, fixed_abs, tag = 'smem constant byte address 0x4 - core index']
  #allocation1 [shape = 'u32[144,128]{1,0:T(1,128)}', space=vmem, size = 0x12000, scoped, tag = 'internal scratch']
  %s0 = inlined_call_operand.hbm [shape: f32[1,768], index: 0, kind: input, shape index: {}]
  %s1 = inlined_call_operand.hbm [shape: f32[1,768], index: 1, kind: input, shape index: {}]
  %s2 = inlined_call_operand.hbm [shape: f32[768,128], index: 2, kind: input, shape index: {}]
  %s3 = inlined_call_operand.hbm [shape: f32[128,768], index: 3, kind: input, shape index: {}]
  %s4 = inlined_call_operand.vmem [shape: f32[1,768], index: 4, kind: input, shape index: {}]
  %s5 = inlined_call_operand.vmem [shape: f32[1,768], index: 5, kind: input, shape index: {}]
  %s6 = inlined_call_operand.hbm [shape: f32[1,768], index: 6, kind: output, shape index: {}]
  %s7 = sld [smem:[#allocation0]]
  $region50: #{tpu_custom_call.1} parent=0
    _
  %s9 = ssub.s32 1, %s7
  %s10 = scalar_select 0, %s9, %s7
  $region1: #{tpu_custom_call.1} parent=0
    #allocation2 [shape = 'u8[3072]{0}', space=vmem, size = 0xc00, scoped, tag = 'input window, operand 0, single buffered']
    #allocation3 [shape = 's32[1]{0}', space=sflag, size = 0x4, scoped, tag = 'scoped memory for tpu_custom_call.1']
    #allocation4 [shape = 's32[1]{0}', space=sflag, size = 0x4, scoped, tag = 'scoped memory for tpu_custom_call.1']
    #allocation5 [shape = 'u8[3072]{0}', space=vmem, size = 0xc00, scoped, tag = 'input window, operand 1, single buffered']
    #allocation6 [shape = 's32[1]{0}', space=sflag, size = 0x4, scoped, tag = 'scoped memory for tpu_custom_call.1']
    #allocation7 [shape = 'u8[393216]{0}', space=vmem, size = 0x60000, scoped, tag = 'input window, operand 2, single buffered']
    #allocation8 [shape = 'u8[393216]{0}', space=vmem, size = 0x60000, scoped, tag = 'input window, operand 3, single buffered']
    #allocation9 [shape = 's32[1]{0}', space=sflag, size = 0x4, scoped, tag = 'scoped memory for tpu_custom_call.1']
    #allocation10 [shape = 'u8[3072]{0}', space=vmem, size = 0xc00, scoped, tag = 'output window, operand 0, single buffered']
    %11 = vsyncpa [#allocation3], 0
    %12 = vsyncpa [#allocation6], 0
    %13 = vsyncpa [#allocation9], 0
    %14 = vsyncpa [#allocation4], 0
    // Predicated region
    $region2: #{tpu_custom_call.1} parent=1 // pred_check
      _
    $region3: #{tpu_custom_call.1} parent=1 // pred_check_branch
      %16 = sbr.rel (0) target = $region5
    $region4: #{tpu_custom_call.1} parent=1 // pred_region
      %s18 = ssub.s32 96, 96
      %19 = vsyncadd [#allocation3], %s18
      %s21 = sshll.u32 [#allocation2], 4
      %s22 = int_to_ptr.vmem [resolvable:$true] %s21
      %24 = dma.hbm_to_vmem [thread:$0]  %s0, 96, %s22, [#allocation3]
    $region5: #{tpu_custom_call.1} parent=1 // pred_fallthru
      _
    // Predicated region
    $region6: #{tpu_custom_call.1} parent=1 // pred_check
      _
    $region7: #{tpu_custom_call.1} parent=1 // pred_check_branch
      %26 = sbr.rel (0) target = $region9
    $region8: #{tpu_custom_call.1} parent=1 // pred_region
      %s28 = ssub.s32 96, 96
      %29 = vsyncadd [#allocation6], %s28
      %s31 = sshll.u32 [#allocation5], 4
      %s32 = int_to_ptr.vmem [resolvable:$true] %s31
      %34 = dma.hbm_to_vmem [thread:$0]  %s1, 96, %s32, [#allocation6]
    $region9: #{tpu_custom_call.1} parent=1 // pred_fallthru
      _
    // Predicated region
    $region10: #{tpu_custom_call.1} parent=1 // pred_check
      _
    $region11: #{tpu_custom_call.1} parent=1 // pred_check_branch
      %36 = sbr.rel (0) target = $region13
    $region12: #{tpu_custom_call.1} parent=1 // pred_region
      %s38 = ssub.s32 12288, 12288
      %39 = vsyncadd [#allocation6], %s38
      %s40 = sshll.u32 [#allocation7], 4
      %s41 = int_to_ptr.vmem [resolvable:$true] %s40
      %46 = dma.hbm_to_vmem [thread:$0]  %s2, 12288, %s41, [#allocation6], 128, 128, 8
    $region13: #{tpu_custom_call.1} parent=1 // pred_fallthru
      _
    // Predicated region
    $region14: #{tpu_custom_call.1} parent=1 // pred_check
      _
    $region15: #{tpu_custom_call.1} parent=1 // pred_check_branch
      %48 = sbr.rel (0) target = $region17
    $region16: #{tpu_custom_call.1} parent=1 // pred_region
      %s50 = ssub.s32 12288, 12288
      %51 = vsyncadd [#allocation9], %s50
      %s52 = sshll.u32 [#allocation8], 4
      %s53 = int_to_ptr.vmem [resolvable:$true] %s52
      %58 = dma.hbm_to_vmem [thread:$0]  %s3, 12288, %s53, [#allocation9], 768, 768, 48
    $region17: #{tpu_custom_call.1} parent=1 // pred_fallthru
      _
    // Predicated region
    $region18: #{tpu_custom_call.1} parent=1 // pred_check
      _
    $region19: #{tpu_custom_call.1} parent=1 // pred_check_branch
      %60 = sbr.rel (0) target = $region21
    $region20: #{tpu_custom_call.1} parent=1 // pred_region
      _
    $region21: #{tpu_custom_call.1} parent=1 // pred_fallthru
      _
    // Predicated region
    $region22: #{tpu_custom_call.1} parent=1 // pred_check
      _
    $region23: #{tpu_custom_call.1} parent=1 // pred_check_branch
      %62 = sbr.rel (0) target = $region25
    $region24: #{tpu_custom_call.1} parent=1 // pred_region
      _
    $region25: #{tpu_custom_call.1} parent=1 // pred_fallthru
      _
    // Predicated region
    $region26: #{tpu_custom_call.1} parent=1 // pred_check
      _
    $region27: #{tpu_custom_call.1} parent=1 // pred_check_branch
      %64 = sbr.rel (0) target = $region29
    $region28: #{tpu_custom_call.1} parent=1 // pred_region
      %65 = dma.done [#allocation3], 96
    $region29: #{tpu_custom_call.1} parent=1 // pred_fallthru
      _
    // Predicated region
    $region30: #{tpu_custom_call.1} parent=1 // pred_check
      _
    $region31: #{tpu_custom_call.1} parent=1 // pred_check_branch
      %67 = sbr.rel (0) target = $region33
    $region32: #{tpu_custom_call.1} parent=1 // pred_region
      %68 = dma.done [#allocation6], 96
    $region33: #{tpu_custom_call.1} parent=1 // pred_fallthru
      _
    // Predicated region
    $region34: #{tpu_custom_call.1} parent=1 // pred_check
      _
    $region35: #{tpu_custom_call.1} parent=1 // pred_check_branch
      %70 = sbr.rel (0) target = $region37
    $region36: #{tpu_custom_call.1} parent=1 // pred_region
      %71 = dma.done [#allocation6], 12288
    $region37: #{tpu_custom_call.1} parent=1 // pred_fallthru
      _
    // Predicated region
    $region38: #{tpu_custom_call.1} parent=1 // pred_check
      _
    $region39: #{tpu_custom_call.1} parent=1 // pred_check_branch
      %73 = sbr.rel (0) target = $region41
    $region40: #{tpu_custom_call.1} parent=1 // pred_region
      %74 = dma.done [#allocation9], 12288
    $region41: #{tpu_custom_call.1} parent=1 // pred_fallthru
      _
    %v75 = vld [vmem:[#allocation7] sm:$0xff]
    %v76 = vld [vmem:[#allocation7 + $0x8] sm:$0xff]
    %v77 = vld [vmem:[#allocation7 + $0x10] sm:$0xff]
    %v78 = vld [vmem:[#allocation7 + $0x18] sm:$0xff]
    %v79 = vld [vmem:[#allocation7 + $0x20] sm:$0xff]
    %v80 = vld [vmem:[#allocation7 + $0x28] sm:$0xff]
    %v81 = vld [vmem:[#allocation7 + $0x30] sm:$0xff]
    %v82 = vld [vmem:[#allocation7 + $0x38] sm:$0xff]
    %v83 = vld [vmem:[#allocation7 + $0x40] sm:$0xff]
    %v84 = vld [vmem:[#allocation7 + $0x48] sm:$0xff]
    %v85 = vld [vmem:[#allocation7 + $0x50] sm:$0xff]
    %v86 = vld [vmem:[#allocation7 + $0x58] sm:$0xff]
    %v87 = vld [vmem:[#allocation7 + $0x60] sm:$0xff]
    %v88 = vld [vmem:[#allocation7 + $0x68] sm:$0xff]
    %v89 = vld [vmem:[#allocation7 + $0x70] sm:$0xff]
    %v90 = vld [vmem:[#allocation7 + $0x78] sm:$0xff]
    %v91 = vld [vmem:[#allocation7 + $0x80] sm:$0xff]
    %v92 = vld [vmem:[#allocation7 + $0x88] sm:$0xff]
    %v93 = vld [vmem:[#allocation7 + $0x90] sm:$0xff]
    %v94 = vld [vmem:[#allocation7 + $0x98] sm:$0xff]
    %v95 = vld [vmem:[#allocation7 + $0xa0] sm:$0xff]
    %v96 = vld [vmem:[#allocation7 + $0xa8] sm:$0xff]
    %v97 = vld [vmem:[#allocation7 + $0xb0] sm:$0xff]
    %v98 = vld [vmem:[#allocation7 + $0xb8] sm:$0xff]
    %v99 = vld [vmem:[#allocation7 + $0xc0] sm:$0xff]
    %v100 = vld [vmem:[#allocation7 + $0xc8] sm:$0xff]
    %v101 = vld [vmem:[#allocation7 + $0xd0] sm:$0xff]
    %v102 = vld [vmem:[#allocation7 + $0xd8] sm:$0xff]
    %v103 = vld [vmem:[#allocation7 + $0xe0] sm:$0xff]
    %v104 = vld [vmem:[#allocation7 + $0xe8] sm:$0xff]
    %v105 = vld [vmem:[#allocation7 + $0xf0] sm:$0xff]
    %v106 = vld [vmem:[#allocation7 + $0xf8] sm:$0xff]
    %v107 = vld [vmem:[#allocation7 + $0x100] sm:$0xff]
    %v108 = vld [vmem:[#allocation7 + $0x108] sm:$0xff]
    %v109 = vld [vmem:[#allocation7 + $0x110] sm:$0xff]
    %v110 = vld [vmem:[#allocation7 + $0x118] sm:$0xff]
    %v111 = vld [vmem:[#allocation7 + $0x120] sm:$0xff]
    %v112 = vld [vmem:[#allocation7 + $0x128] sm:$0xff]
    %v113 = vld [vmem:[#allocation7 + $0x130] sm:$0xff]
    %v114 = vld [vmem:[#allocation7 + $0x138] sm:$0xff]
    %v115 = vld [vmem:[#allocation7 + $0x140] sm:$0xff]
    %v116 = vld [vmem:[#allocation7 + $0x148] sm:$0xff]
    %v117 = vld [vmem:[#allocation7 + $0x150] sm:$0xff]
    %v118 = vld [vmem:[#allocation7 + $0x158] sm:$0xff]
    %v119 = vld [vmem:[#allocation7 + $0x160] sm:$0xff]
    %v120 = vld [vmem:[#allocation7 + $0x168] sm:$0xff]
    %v121 = vld [vmem:[#allocation7 + $0x170] sm:$0xff]
    %v122 = vld [vmem:[#allocation7 + $0x178] sm:$0xff]
    %v123 = vld [vmem:[#allocation7 + $0x180] sm:$0xff]
    %v124 = vld [vmem:[#allocation7 + $0x188] sm:$0xff]
    %v125 = vld [vmem:[#allocation7 + $0x190] sm:$0xff]
    %v126 = vld [vmem:[#allocation7 + $0x198] sm:$0xff]
    %v127 = vld [vmem:[#allocation7 + $0x1a0] sm:$0xff]
    %v128 = vld [vmem:[#allocation7 + $0x1a8] sm:$0xff]
    %v129 = vld [vmem:[#allocation7 + $0x1b0] sm:$0xff]
    %v130 = vld [vmem:[#allocation7 + $0x1b8] sm:$0xff]
    %v131 = vld [vmem:[#allocation7 + $0x1c0] sm:$0xff]
    %v132 = vld [vmem:[#allocation7 + $0x1c8] sm:$0xff]
    %v133 = vld [vmem:[#allocation7 + $0x1d0] sm:$0xff]
    %v134 = vld [vmem:[#allocation7 + $0x1d8] sm:$0xff]
    %v135 = vld [vmem:[#allocation7 + $0x1e0] sm:$0xff]
    %v136 = vld [vmem:[#allocation7 + $0x1e8] sm:$0xff]
    %v137 = vld [vmem:[#allocation7 + $0x1f0] sm:$0xff]
    %v138 = vld [vmem:[#allocation7 + $0x1f8] sm:$0xff]
    %v139 = vld [vmem:[#allocation7 + $0x200] sm:$0xff]
    %v140 = vld [vmem:[#allocation7 + $0x208] sm:$0xff]
    %v141 = vld [vmem:[#allocation7 + $0x210] sm:$0xff]
    %v142 = vld [vmem:[#allocation7 + $0x218] sm:$0xff]
    %v143 = vld [vmem:[#allocation7 + $0x220] sm:$0xff]
    %v144 = vld [vmem:[#allocation7 + $0x228] sm:$0xff]
    %v145 = vld [vmem:[#allocation7 + $0x230] sm:$0xff]
    %v146 = vld [vmem:[#allocation7 + $0x238] sm:$0xff]
    %v147 = vld [vmem:[#allocation7 + $0x240] sm:$0xff]
    %v148 = vld [vmem:[#allocation7 + $0x248] sm:$0xff]
    %v149 = vld [vmem:[#allocation7 + $0x250] sm:$0xff]
    %v150 = vld [vmem:[#allocation7 + $0x258] sm:$0xff]
    %v151 = vld [vmem:[#allocation7 + $0x260] sm:$0xff]
    %v152 = vld [vmem:[#allocation7 + $0x268] sm:$0xff]
    %v153 = vld [vmem:[#allocation7 + $0x270] sm:$0xff]
    %v154 = vld [vmem:[#allocation7 + $0x278] sm:$0xff]
    %v155 = vld [vmem:[#allocation7 + $0x280] sm:$0xff]
    %v156 = vld [vmem:[#allocation7 + $0x288] sm:$0xff]
    %v157 = vld [vmem:[#allocation7 + $0x290] sm:$0xff]
    %v158 = vld [vmem:[#allocation7 + $0x298] sm:$0xff]
    %v159 = vld [vmem:[#allocation7 + $0x2a0] sm:$0xff]
    %v160 = vld [vmem:[#allocation7 + $0x2a8] sm:$0xff]
    %v161 = vld [vmem:[#allocation7 + $0x2b0] sm:$0xff]
    %v162 = vld [vmem:[#allocation7 + $0x2b8] sm:$0xff]
    %v163 = vld [vmem:[#allocation7 + $0x2c0] sm:$0xff]
    %v164 = vld [vmem:[#allocation7 + $0x2c8] sm:$0xff]
    %v165 = vld [vmem:[#allocation7 + $0x2d0] sm:$0xff]
    %v166 = vld [vmem:[#allocation7 + $0x2d8] sm:$0xff]
    %v167 = vld [vmem:[#allocation7 + $0x2e0] sm:$0xff]
    %v168 = vld [vmem:[#allocation7 + $0x2e8] sm:$0xff]
    %v169 = vld [vmem:[#allocation7 + $0x2f0] sm:$0xff]
    %v170 = vld [vmem:[#allocation7 + $0x2f8] sm:$0xff]
    %v171 = vld [vmem:[#allocation8] sm:$0xff]
    %v172 = vld [vmem:[#allocation8 + $0x8] sm:$0xff]
    %v173 = vld [vmem:[#allocation8 + $0x10] sm:$0xff]
    %v174 = vld [vmem:[#allocation8 + $0x18] sm:$0xff]
    %v175 = vld [vmem:[#allocation8 + $0x20] sm:$0xff]
    %v176 = vld [vmem:[#allocation8 + $0x28] sm:$0xff]
    %v177 = vld [vmem:[#allocation8 + $0x30] sm:$0xff]
    %v178 = vld [vmem:[#allocation8 + $0x38] sm:$0xff]
    %v179 = vld [vmem:[#allocation8 + $0x40] sm:$0xff]
    %v180 = vld [vmem:[#allocation8 + $0x48] sm:$0xff]
    %v181 = vld [vmem:[#allocation8 + $0x50] sm:$0xff]
    %v182 = vld [vmem:[#allocation8 + $0x58] sm:$0xff]
    %v183 = vld [vmem:[#allocation8 + $0x60] sm:$0xff]
    %v184 = vld [vmem:[#allocation8 + $0x68] sm:$0xff]
    %v185 = vld [vmem:[#allocation8 + $0x70] sm:$0xff]
    %v186 = vld [vmem:[#allocation8 + $0x78] sm:$0xff]
    %v187 = vld [vmem:[#allocation8 + $0x80] sm:$0xff]
    %v188 = vld [vmem:[#allocation8 + $0x88] sm:$0xff]
    %v189 = vld [vmem:[#allocation8 + $0x90] sm:$0xff]
    %v190 = vld [vmem:[#allocation8 + $0x98] sm:$0xff]
    %v191 = vld [vmem:[#allocation8 + $0xa0] sm:$0xff]
    %v192 = vld [vmem:[#allocation8 + $0xa8] sm:$0xff]
    %v193 = vld [vmem:[#allocation8 + $0xb0] sm:$0xff]
    %v194 = vld [vmem:[#allocation8 + $0xb8] sm:$0xff]
    %v195 = vld [vmem:[#allocation8 + $0xc0] sm:$0xff]
    %v196 = vld [vmem:[#allocation8 + $0xc8] sm:$0xff]
    %v197 = vld [vmem:[#allocation8 + $0xd0] sm:$0xff]
    %v198 = vld [vmem:[#allocation8 + $0xd8] sm:$0xff]
    %v199 = vld [vmem:[#allocation8 + $0xe0] sm:$0xff]
    %v200 = vld [vmem:[#allocation8 + $0xe8] sm:$0xff]
    %v201 = vld [vmem:[#allocation8 + $0xf0] sm:$0xff]
    %v202 = vld [vmem:[#allocation8 + $0xf8] sm:$0xff]
    %v203 = vld [vmem:[#allocation8 + $0x100] sm:$0xff]
    %v204 = vld [vmem:[#allocation8 + $0x108] sm:$0xff]
    %v205 = vld [vmem:[#allocation8 + $0x110] sm:$0xff]
    %v206 = vld [vmem:[#allocation8 + $0x118] sm:$0xff]
    %v207 = vld [vmem:[#allocation8 + $0x120] sm:$0xff]
    %v208 = vld [vmem:[#allocation8 + $0x128] sm:$0xff]
    %v209 = vld [vmem:[#allocation8 + $0x130] sm:$0xff]
    %v210 = vld [vmem:[#allocation8 + $0x138] sm:$0xff]
    %v211 = vld [vmem:[#allocation8 + $0x140] sm:$0xff]
    %v212 = vld [vmem:[#allocation8 + $0x148] sm:$0xff]
    %v213 = vld [vmem:[#allocation8 + $0x150] sm:$0xff]
    %v214 = vld [vmem:[#allocation8 + $0x158] sm:$0xff]
    %v215 = vld [vmem:[#allocation8 + $0x160] sm:$0xff]
    %v216 = vld [vmem:[#allocation8 + $0x168] sm:$0xff]
    %v217 = vld [vmem:[#allocation8 + $0x170] sm:$0xff]
    %v218 = vld [vmem:[#allocation8 + $0x178] sm:$0xff]
    %v219 = vld [vmem:[#allocation8 + $0x180] sm:$0xff]
    %v220 = vld [vmem:[#allocation8 + $0x188] sm:$0xff]
    %v221 = vld [vmem:[#allocation8 + $0x190] sm:$0xff]
    %v222 = vld [vmem:[#allocation8 + $0x198] sm:$0xff]
    %v223 = vld [vmem:[#allocation8 + $0x1a0] sm:$0xff]
    %v224 = vld [vmem:[#allocation8 + $0x1a8] sm:$0xff]
    %v225 = vld [vmem:[#allocation8 + $0x1b0] sm:$0xff]
    %v226 = vld [vmem:[#allocation8 + $0x1b8] sm:$0xff]
    %v227 = vld [vmem:[#allocation8 + $0x1c0] sm:$0xff]
    %v228 = vld [vmem:[#allocation8 + $0x1c8] sm:$0xff]
    %v229 = vld [vmem:[#allocation8 + $0x1d0] sm:$0xff]
    %v230 = vld [vmem:[#allocation8 + $0x1d8] sm:$0xff]
    %v231 = vld [vmem:[#allocation8 + $0x1e0] sm:$0xff]
    %v232 = vld [vmem:[#allocation8 + $0x1e8] sm:$0xff]
    %v233 = vld [vmem:[#allocation8 + $0x1f0] sm:$0xff]
    %v234 = vld [vmem:[#allocation8 + $0x1f8] sm:$0xff]
    %v235 = vld [vmem:[#allocation8 + $0x200] sm:$0xff]
    %v236 = vld [vmem:[#allocation8 + $0x208] sm:$0xff]
    %v237 = vld [vmem:[#allocation8 + $0x210] sm:$0xff]
    %v238 = vld [vmem:[#allocation8 + $0x218] sm:$0xff]
    %v239 = vld [vmem:[#allocation8 + $0x220] sm:$0xff]
    %v240 = vld [vmem:[#allocation8 + $0x228] sm:$0xff]
    %v241 = vld [vmem:[#allocation8 + $0x230] sm:$0xff]
    %v242 = vld [vmem:[#allocation8 + $0x238] sm:$0xff]
    %v243 = vld [vmem:[#allocation8 + $0x240] sm:$0xff]
    %v244 = vld [vmem:[#allocation8 + $0x248] sm:$0xff]
    %v245 = vld [vmem:[#allocation8 + $0x250] sm:$0xff]
    %v246 = vld [vmem:[#allocation8 + $0x258] sm:$0xff]
    %v247 = vld [vmem:[#allocation8 + $0x260] sm:$0xff]
    %v248 = vld [vmem:[#allocation8 + $0x268] sm:$0xff]
    %v249 = vld [vmem:[#allocation8 + $0x270] sm:$0xff]
    %v250 = vld [vmem:[#allocation8 + $0x278] sm:$0xff]
    %v251 = vld [vmem:[#allocation8 + $0x280] sm:$0xff]
    %v252 = vld [vmem:[#allocation8 + $0x288] sm:$0xff]
    %v253 = vld [vmem:[#allocation8 + $0x290] sm:$0xff]
    %v254 = vld [vmem:[#allocation8 + $0x298] sm:$0xff]
    %v255 = vld [vmem:[#allocation8 + $0x2a0] sm:$0xff]
    %v256 = vld [vmem:[#allocation8 + $0x2a8] sm:$0xff]
    %v257 = vld [vmem:[#allocation8 + $0x2b0] sm:$0xff]
    %v258 = vld [vmem:[#allocation8 + $0x2b8] sm:$0xff]
    %v259 = vld [vmem:[#allocation8 + $0x2c0] sm:$0xff]
    %v260 = vld [vmem:[#allocation8 + $0x2c8] sm:$0xff]
    %v261 = vld [vmem:[#allocation8 + $0x2d0] sm:$0xff]
    %v262 = vld [vmem:[#allocation8 + $0x2d8] sm:$0xff]
    %v263 = vld [vmem:[#allocation8 + $0x2e0] sm:$0xff]
    %v264 = vld [vmem:[#allocation8 + $0x2e8] sm:$0xff]
    %v265 = vld [vmem:[#allocation8 + $0x2f0] sm:$0xff]
    %v266 = vld [vmem:[#allocation8 + $0x2f8] sm:$0xff]
    %v267 = vld [vmem:[%s4] sm:$0x3f]
    %v268 = vld [vmem:[%s5] sm:$0x3f]
    %v269 = vld [vmem:[#allocation2] sm:$0x3f]
    %v270 = vld [vmem:[#allocation5] sm:$0x3f]
    %v271 = vadd.f32 %v269, %v270
    %v272 = vmul.f32 %v271, %v271
    %v274 = vlaneseq
    %v275 = vshrl.u32 %v274, 7
    %v276 = vsub.s32 0, %v275
    %v277 = vrot.slane %v271, %v276
    %v278 = vlaneseq
    %v279 = vshrl.u32 %v278, 7
    %v280 = vsub.s32 1, %v279
    %v281 = vrot.slane %v271, %v280
    %v282 = vlaneseq
    %v283 = vshrl.u32 %v282, 7
    %v284 = vsub.s32 2, %v283
    %v285 = vrot.slane %v271, %v284
    %v286 = vlaneseq
    %v287 = vshrl.u32 %v286, 7
    %v288 = vsub.s32 3, %v287
    %v289 = vrot.slane %v271, %v288
    %v290 = vlaneseq
    %v291 = vshrl.u32 %v290, 7
    %v292 = vsub.s32 4, %v291
    %v293 = vrot.slane %v271, %v292
    %v294 = vlaneseq
    %v295 = vshrl.u32 %v294, 7
    %v296 = vsub.s32 5, %v295
    %v297 = vrot.slane %v271, %v296
    %v305 = vlaneseq
    %v306 = vshrl.u32 %v305, 7
    %v307 = vsub.s32 0, %v306
    %v308 = vrot.slane %v272, %v307
    %v309 = vlaneseq
    %v310 = vshrl.u32 %v309, 7
    %v311 = vsub.s32 1, %v310
    %v312 = vrot.slane %v272, %v311
    %v313 = vlaneseq
    %v314 = vshrl.u32 %v313, 7
    %v315 = vsub.s32 2, %v314
    %v316 = vrot.slane %v272, %v315
    %v317 = vlaneseq
    %v318 = vshrl.u32 %v317, 7
    %v319 = vsub.s32 3, %v318
    %v320 = vrot.slane %v272, %v319
    %v321 = vlaneseq
    %v322 = vshrl.u32 %v321, 7
    %v323 = vsub.s32 4, %v322
    %v324 = vrot.slane %v272, %v323
    %v325 = vlaneseq
    %v326 = vshrl.u32 %v325, 7
    %v327 = vsub.s32 5, %v326
    %v328 = vrot.slane %v272, %v327
    %vm335 = vcmask 1040384
    %v336 = vsel %vm335, %v277, %v308
    %v337 = vsel %vm335, %v281, %v312
    %v338 = vsel %vm335, %v285, %v316
    %v339 = vsel %vm335, %v289, %v320
    %v340 = vsel %vm335, %v293, %v324
    %v341 = vsel %vm335, %v297, %v328
    %342 = vmatprep.subr.mxu0 0.0
    %v343 = vand.u32 %v75, 4294901760
    %344 = vmatpush1.msra.mxu0 %v343
    %345 = vmatprep.subr.mxu0 0.0
    %v346 = vand.u32 %v76, 4294901760
    %347 = vmatpush1.msra.mxu0 %v346
    %348 = vmatprep.subr.mxu0 0.0
    %v349 = vand.u32 %v77, 4294901760
    %350 = vmatpush1.msra.mxu0 %v349
    %351 = vmatprep.subr.mxu0 0.0
    %v352 = vand.u32 %v78, 4294901760
    %353 = vmatpush1.msra.mxu0 %v352
    %354 = vmatprep.subr.mxu0 0.0
    %v355 = vand.u32 %v79, 4294901760
    %356 = vmatpush1.msra.mxu0 %v355
    %357 = vmatprep.subr.mxu0 0.0
    %v358 = vand.u32 %v80, 4294901760
    %359 = vmatpush1.msra.mxu0 %v358
    %360 = vmatprep.subr.mxu0 0.0
    %v361 = vand.u32 %v81, 4294901760
    %362 = vmatpush1.msra.mxu0 %v361
    %363 = vmatprep.subr.mxu0 0.0
    %v364 = vand.u32 %v82, 4294901760
    %365 = vmatpush1.msra.mxu0 %v364
    %366 = vmatprep.subr.mxu0 0.0
    %v367 = vand.u32 %v83, 4294901760
    %368 = vmatpush1.msra.mxu0 %v367
    %369 = vmatprep.subr.mxu0 0.0
    %v370 = vand.u32 %v84, 4294901760
    %371 = vmatpush1.msra.mxu0 %v370
    %372 = vmatprep.subr.mxu0 0.0
    %v373 = vand.u32 %v85, 4294901760
    %374 = vmatpush1.msra.mxu0 %v373
    %375 = vmatprep.subr.mxu0 0.0
    %v376 = vand.u32 %v86, 4294901760
    %377 = vmatpush1.msra.mxu0 %v376
    %378 = vmatprep.subr.mxu0 0.0
    %v379 = vand.u32 %v87, 4294901760
    %380 = vmatpush1.msra.mxu0 %v379
    %381 = vmatprep.subr.mxu0 0.0
    %v382 = vand.u32 %v88, 4294901760
    %383 = vmatpush1.msra.mxu0 %v382
    %384 = vmatprep.subr.mxu0 0.0
    %v385 = vand.u32 %v89, 4294901760
    %386 = vmatpush1.msra.mxu0 %v385
    %387 = vmatprep.subr.mxu0 0.0
    %v388 = vand.u32 %v90, 4294901760
    %389 = vmatpush1.msra.mxu0 %v388
    %390 = vmatprep.subr.mxu0 0.0
    %v391 = vand.u32 %v91, 4294901760
    %392 = vmatpush1.msra.mxu0 %v391
    %393 = vmatprep.subr.mxu0 0.0
    %v394 = vand.u32 %v92, 4294901760
    %395 = vmatpush1.msra.mxu0 %v394
    %396 = vmatprep.subr.mxu0 0.0
    %v397 = vand.u32 %v93, 4294901760
    %398 = vmatpush1.msra.mxu0 %v397
    %399 = vmatprep.subr.mxu0 0.0
    %v400 = vand.u32 %v94, 4294901760
    %401 = vmatpush1.msra.mxu0 %v400
    %402 = vmatprep.subr.mxu0 0.0
    %v403 = vand.u32 %v95, 4294901760
    %404 = vmatpush1.msra.mxu0 %v403
    %405 = vmatprep.subr.mxu0 0.0
    %v406 = vand.u32 %v96, 4294901760
    %407 = vmatpush1.msra.mxu0 %v406
    %408 = vmatprep.subr.mxu0 0.0
    %v409 = vand.u32 %v97, 4294901760
    %410 = vmatpush1.msra.mxu0 %v409
    %411 = vmatprep.subr.mxu0 0.0
    %v412 = vand.u32 %v98, 4294901760
    %413 = vmatpush1.msra.mxu0 %v412
    %414 = vmatprep.subr.mxu0 0.0
    %v415 = vand.u32 %v99, 4294901760
    %416 = vmatpush1.msra.mxu0 %v415
    %417 = vmatprep.subr.mxu0 0.0
    %v418 = vand.u32 %v100, 4294901760
    %419 = vmatpush1.msra.mxu0 %v418
    %420 = vmatprep.subr.mxu0 0.0
    %v421 = vand.u32 %v101, 4294901760
    %422 = vmatpush1.msra.mxu0 %v421
    %423 = vmatprep.subr.mxu0 0.0
    %v424 = vand.u32 %v102, 4294901760
    %425 = vmatpush1.msra.mxu0 %v424
    %426 = vmatprep.subr.mxu0 0.0
    %v427 = vand.u32 %v103, 4294901760
    %428 = vmatpush1.msra.mxu0 %v427
    %429 = vmatprep.subr.mxu0 0.0
    %v430 = vand.u32 %v104, 4294901760
    %431 = vmatpush1.msra.mxu0 %v430
    %432 = vmatprep.subr.mxu0 0.0
    %v433 = vand.u32 %v105, 4294901760
    %434 = vmatpush1.msra.mxu0 %v433
    %435 = vmatprep.subr.mxu0 0.0
    %v436 = vand.u32 %v106, 4294901760
    %437 = vmatpush1.msra.mxu0 %v436
    %v438 = vand.u32 %v337, 4294901760
    %v439 = vsub.f32 %v337, %v438
    %v440 = vand.u32 %v439, 4294901760
    %v441 = vsub.f32 %v439, %v440
    %v442 = vand.u32 %v441, 4294901760
    %443 = vmatprep.mubr.f32.mxu0 %v442
    %v444 = vand.u32 %v336, 4294901760
    %v445 = vsub.f32 %v336, %v444
    %v446 = vand.u32 %v445, 4294901760
    %v447 = vsub.f32 %v445, %v446
    %v448 = vand.u32 %v447, 4294901760
    %449 = vmatmul.mubr.f32.gmra.mrb[0].mxu0 %v448
    %v450 = vpop.f32.mrb[0].mxu0
    %v451 = vadd.f32 0.0, %v450
    %v452 = vpop.f32.mrb[0].mxu0
    %453 = vdwg.mxu0
    %454 = vmatprep.subr.mxu0 0.0
    %v455 = vand.u32 %v75, 4294901760
    %v456 = vsub.f32 %v75, %v455
    %v457 = vand.u32 %v456, 4294901760
    %v458 = vsub.f32 %v456, %v457
    %v459 = vand.u32 %v458, 4294901760
    %460 = vmatpush1.msra.mxu0 %v459
    %461 = vmatprep.subr.mxu0 0.0
    %v462 = vand.u32 %v76, 4294901760
    %v463 = vsub.f32 %v76, %v462
    %v464 = vand.u32 %v463, 4294901760
    %v465 = vsub.f32 %v463, %v464
    %v466 = vand.u32 %v465, 4294901760
    %467 = vmatpush1.msra.mxu0 %v466
    %468 = vmatprep.subr.mxu0 0.0
    %v469 = vand.u32 %v77, 4294901760
    %v470 = vsub.f32 %v77, %v469
    %v471 = vand.u32 %v470, 4294901760
    %v472 = vsub.f32 %v470, %v471
    %v473 = vand.u32 %v472, 4294901760
    %474 = vmatpush1.msra.mxu0 %v473
    %475 = vmatprep.subr.mxu0 0.0
    %v476 = vand.u32 %v78, 4294901760
    %v477 = vsub.f32 %v78, %v476
    %v478 = vand.u32 %v477, 4294901760
    %v479 = vsub.f32 %v477, %v478
    %v480 = vand.u32 %v479, 4294901760
    %481 = vmatpush1.msra.mxu0 %v480
    %482 = vmatprep.subr.mxu0 0.0
    %v483 = vand.u32 %v79, 4294901760
    %v484 = vsub.f32 %v79, %v483
    %v485 = vand.u32 %v484, 4294901760
    %v486 = vsub.f32 %v484, %v485
    %v487 = vand.u32 %v486, 4294901760
    %488 = vmatpush1.msra.mxu0 %v487
    %489 = vmatprep.subr.mxu0 0.0
    %v490 = vand.u32 %v80, 4294901760
    %v491 = vsub.f32 %v80, %v490
    %v492 = vand.u32 %v491, 4294901760
    %v493 = vsub.f32 %v491, %v492
    %v494 = vand.u32 %v493, 4294901760
    %495 = vmatpush1.msra.mxu0 %v494
    %496 = vmatprep.subr.mxu0 0.0
    %v497 = vand.u32 %v81, 4294901760
    %v498 = vsub.f32 %v81, %v497
    %v499 = vand.u32 %v498, 4294901760
    %v500 = vsub.f32 %v498, %v499
    %v501 = vand.u32 %v500, 4294901760
    %502 = vmatpush1.msra.mxu0 %v501
    %503 = vmatprep.subr.mxu0 0.0
    %v504 = vand.u32 %v82, 4294901760
    %v505 = vsub.f32 %v82, %v504
    %v506 = vand.u32 %v505, 4294901760
    %v507 = vsub.f32 %v505, %v506
    %v508 = vand.u32 %v507, 4294901760
    %509 = vmatpush1.msra.mxu0 %v508
    %510 = vmatprep.subr.mxu0 0.0
    %v511 = vand.u32 %v83, 4294901760
    %v512 = vsub.f32 %v83, %v511
    %v513 = vand.u32 %v512, 4294901760
    %v514 = vsub.f32 %v512, %v513
    %v515 = vand.u32 %v514, 4294901760
    %516 = vmatpush1.msra.mxu0 %v515
    %517 = vmatprep.subr.mxu0 0.0
    %v518 = vand.u32 %v84, 4294901760
    %v519 = vsub.f32 %v84, %v518
    %v520 = vand.u32 %v519, 4294901760
    %v521 = vsub.f32 %v519, %v520
    %v522 = vand.u32 %v521, 4294901760
    %523 = vmatpush1.msra.mxu0 %v522
    %524 = vmatprep.subr.mxu0 0.0
    %v525 = vand.u32 %v85, 4294901760
    %v526 = vsub.f32 %v85, %v525
    %v527 = vand.u32 %v526, 4294901760
    %v528 = vsub.f32 %v526, %v527
    %v529 = vand.u32 %v528, 4294901760
    %530 = vmatpush1.msra.mxu0 %v529
    %531 = vmatprep.subr.mxu0 0.0
    %v532 = vand.u32 %v86, 4294901760
    %v533 = vsub.f32 %v86, %v532
    %v534 = vand.u32 %v533, 4294901760
    %v535 = vsub.f32 %v533, %v534
    %v536 = vand.u32 %v535, 4294901760
    %537 = vmatpush1.msra.mxu0 %v536
    %538 = vmatprep.subr.mxu0 0.0
    %v539 = vand.u32 %v87, 4294901760
    %v540 = vsub.f32 %v87, %v539
    %v541 = vand.u32 %v540, 4294901760
    %v542 = vsub.f32 %v540, %v541
    %v543 = vand.u32 %v542, 4294901760
    %544 = vmatpush1.msra.mxu0 %v543
    %545 = vmatprep.subr.mxu0 0.0
    %v546 = vand.u32 %v88, 4294901760
    %v547 = vsub.f32 %v88, %v546
    %v548 = vand.u32 %v547, 4294901760
    %v549 = vsub.f32 %v547, %v548
    %v550 = vand.u32 %v549, 4294901760
    %551 = vmatpush1.msra.mxu0 %v550
    %552 = vmatprep.subr.mxu0 0.0
    %v553 = vand.u32 %v89, 4294901760
    %v554 = vsub.f32 %v89, %v553
    %v555 = vand.u32 %v554, 4294901760
    %v556 = vsub.f32 %v554, %v555
    %v557 = vand.u32 %v556, 4294901760
    %558 = vmatpush1.msra.mxu0 %v557
    %559 = vmatprep.subr.mxu0 0.0
    %v560 = vand.u32 %v90, 4294901760
    %v561 = vsub.f32 %v90, %v560
    %v562 = vand.u32 %v561, 4294901760
    %v563 = vsub.f32 %v561, %v562
    %v564 = vand.u32 %v563, 4294901760
    %565 = vmatpush1.msra.mxu0 %v564
    %566 = vmatprep.subr.mxu0 0.0
    %v567 = vand.u32 %v91, 4294901760
    %v568 = vsub.f32 %v91, %v567
    %v569 = vand.u32 %v568, 4294901760
    %v570 = vsub.f32 %v568, %v569
    %v571 = vand.u32 %v570, 4294901760
    %572 = vmatpush1.msra.mxu0 %v571
    %573 = vmatprep.subr.mxu0 0.0
    %v574 = vand.u32 %v92, 4294901760
    %v575 = vsub.f32 %v92, %v574
    %v576 = vand.u32 %v575, 4294901760
    %v577 = vsub.f32 %v575, %v576
    %v578 = vand.u32 %v577, 4294901760
    %579 = vmatpush1.msra.mxu0 %v578
    %580 = vmatprep.subr.mxu0 0.0
    %v581 = vand.u32 %v93, 4294901760
    %v582 = vsub.f32 %v93, %v581
    %v583 = vand.u32 %v582, 4294901760
    %v584 = vsub.f32 %v582, %v583
    %v585 = vand.u32 %v584, 4294901760
    %586 = vmatpush1.msra.mxu0 %v585
    %587 = vmatprep.subr.mxu0 0.0
    %v588 = vand.u32 %v94, 4294901760
    %v589 = vsub.f32 %v94, %v588
    %v590 = vand.u32 %v589, 4294901760
    %v591 = vsub.f32 %v589, %v590
    %v592 = vand.u32 %v591, 4294901760
    %593 = vmatpush1.msra.mxu0 %v592
    %594 = vmatprep.subr.mxu0 0.0
    %v595 = vand.u32 %v95, 4294901760
    %v596 = vsub.f32 %v95, %v595
    %v597 = vand.u32 %v596, 4294901760
    %v598 = vsub.f32 %v596, %v597
    %v599 = vand.u32 %v598, 4294901760
    %600 = vmatpush1.msra.mxu0 %v599
    %601 = vmatprep.subr.mxu0 0.0
    %v602 = vand.u32 %v96, 4294901760
    %v603 = vsub.f32 %v96, %v602
    %v604 = vand.u32 %v603, 4294901760
    %v605 = vsub.f32 %v603, %v604
    %v606 = vand.u32 %v605, 4294901760
    %607 = vmatpush1.msra.mxu0 %v606
    %608 = vmatprep.subr.mxu0 0.0
    %v609 = vand.u32 %v97, 4294901760
    %v610 = vsub.f32 %v97, %v609
    %v611 = vand.u32 %v610, 4294901760
    %v612 = vsub.f32 %v610, %v611
    %v613 = vand.u32 %v612, 4294901760
    %614 = vmatpush1.msra.mxu0 %v613
    %615 = vmatprep.subr.mxu0 0.0
    %v616 = vand.u32 %v98, 4294901760
    %v617 = vsub.f32 %v98, %v616
    %v618 = vand.u32 %v617, 4294901760
    %v619 = vsub.f32 %v617, %v618
    %v620 = vand.u32 %v619, 4294901760
    %621 = vmatpush1.msra.mxu0 %v620
    %622 = vmatprep.subr.mxu0 0.0
    %v623 = vand.u32 %v99, 4294901760
    %v624 = vsub.f32 %v99, %v623
    %v625 = vand.u32 %v624, 4294901760
    %v626 = vsub.f32 %v624, %v625
    %v627 = vand.u32 %v626, 4294901760
    %628 = vmatpush1.msra.mxu0 %v627
    %629 = vmatprep.subr.mxu0 0.0
    %v630 = vand.u32 %v100, 4294901760
    %v631 = vsub.f32 %v100, %v630
    %v632 = vand.u32 %v631, 4294901760
    %v633 = vsub.f32 %v631, %v632
    %v634 = vand.u32 %v633, 4294901760
    %635 = vmatpush1.msra.mxu0 %v634
    %636 = vmatprep.subr.mxu0 0.0
    %v637 = vand.u32 %v101, 4294901760
    %v638 = vsub.f32 %v101, %v637
    %v639 = vand.u32 %v638, 4294901760
    %v640 = vsub.f32 %v638, %v639
    %v641 = vand.u32 %v640, 4294901760
    %642 = vmatpush1.msra.mxu0 %v641
    %643 = vmatprep.subr.mxu0 0.0
    %v644 = vand.u32 %v102, 4294901760
    %v645 = vsub.f32 %v102, %v644
    %v646 = vand.u32 %v645, 4294901760
    %v647 = vsub.f32 %v645, %v646
    %v648 = vand.u32 %v647, 4294901760
    %649 = vmatpush1.msra.mxu0 %v648
    %650 = vmatprep.subr.mxu0 0.0
    %v651 = vand.u32 %v103, 4294901760
    %v652 = vsub.f32 %v103, %v651
    %v653 = vand.u32 %v652, 4294901760
    %v654 = vsub.f32 %v652, %v653
    %v655 = vand.u32 %v654, 4294901760
    %656 = vmatpush1.msra.mxu0 %v655
    %657 = vmatprep.subr.mxu0 0.0
    %v658 = vand.u32 %v104, 4294901760
    %v659 = vsub.f32 %v104, %v658
    %v660 = vand.u32 %v659, 4294901760
    %v661 = vsub.f32 %v659, %v660
    %v662 = vand.u32 %v661, 4294901760
    %663 = vmatpush1.msra.mxu0 %v662
    %664 = vmatprep.subr.mxu0 0.0
    %v665 = vand.u32 %v105, 4294901760
    %v666 = vsub.f32 %v105, %v665
    %v667 = vand.u32 %v666, 4294901760
    %v668 = vsub.f32 %v666, %v667
    %v669 = vand.u32 %v668, 4294901760
    %670 = vmatpush1.msra.mxu0 %v669
    %671 = vmatprep.subr.mxu0 0.0
    %v672 = vand.u32 %v106, 4294901760
    %v673 = vsub.f32 %v106, %v672
    %v674 = vand.u32 %v673, 4294901760
    %v675 = vsub.f32 %v673, %v674
    %v676 = vand.u32 %v675, 4294901760
    %677 = vmatpush1.msra.mxu0 %v676
    %v678 = vand.u32 %v337, 4294901760
    %679 = vmatprep.mubr.f32.mxu0 %v678
    %v680 = vand.u32 %v336, 4294901760
    %681 = vmatmul.mubr.f32.gmra.mrb[0].mxu0 %v680
    %v682 = vpop.f32.mrb[0].mxu0
    %v683 = vadd.f32 %v451, %v682
    %v684 = vpop.f32.mrb[0].mxu0
    %685 = vdwg.mxu0
    %686 = vmatprep.subr.mxu0 0.0
    %v687 = vand.u32 %v75, 4294901760
    %v688 = vsub.f32 %v75, %v687
    %689 = vmatpush1.msra.mxu0 %v688
    %690 = vmatprep.subr.mxu0 0.0
    %v691 = vand.u32 %v76, 4294901760
    %v692 = vsub.f32 %v76, %v691
    %693 = vmatpush1.msra.mxu0 %v692
    %694 = vmatprep.subr.mxu0 0.0
    %v695 = vand.u32 %v77, 4294901760
    %v696 = vsub.f32 %v77, %v695
    %697 = vmatpush1.msra.mxu0 %v696
    %698 = vmatprep.subr.mxu0 0.0
    %v699 = vand.u32 %v78, 4294901760
    %v700 = vsub.f32 %v78, %v699
    %701 = vmatpush1.msra.mxu0 %v700
    %702 = vmatprep.subr.mxu0 0.0
    %v703 = vand.u32 %v79, 4294901760
    %v704 = vsub.f32 %v79, %v703
    %705 = vmatpush1.msra.mxu0 %v704
    %706 = vmatprep.subr.mxu0 0.0
    %v707 = vand.u32 %v80, 4294901760
    %v708 = vsub.f32 %v80, %v707
    %709 = vmatpush1.msra.mxu0 %v708
    %710 = vmatprep.subr.mxu0 0.0
    %v711 = vand.u32 %v81, 4294901760
    %v712 = vsub.f32 %v81, %v711
    %713 = vmatpush1.msra.mxu0 %v712
    %714 = vmatprep.subr.mxu0 0.0
    %v715 = vand.u32 %v82, 4294901760
    %v716 = vsub.f32 %v82, %v715
    %717 = vmatpush1.msra.mxu0 %v716
    %718 = vmatprep.subr.mxu0 0.0
    %v719 = vand.u32 %v83, 4294901760
    %v720 = vsub.f32 %v83, %v719
    %721 = vmatpush1.msra.mxu0 %v720
    %722 = vmatprep.subr.mxu0 0.0
    %v723 = vand.u32 %v84, 4294901760
    %v724 = vsub.f32 %v84, %v723
    %725 = vmatpush1.msra.mxu0 %v724
    %726 = vmatprep.subr.mxu0 0.0
    %v727 = vand.u32 %v85, 4294901760
    %v728 = vsub.f32 %v85, %v727
    %729 = vmatpush1.msra.mxu0 %v728
    %730 = vmatprep.subr.mxu0 0.0
    %v731 = vand.u32 %v86, 4294901760
    %v732 = vsub.f32 %v86, %v731
    %733 = vmatpush1.msra.mxu0 %v732
    %734 = vmatprep.subr.mxu0 0.0
    %v735 = vand.u32 %v87, 4294901760
    %v736 = vsub.f32 %v87, %v735
    %737 = vmatpush1.msra.mxu0 %v736
    %738 = vmatprep.subr.mxu0 0.0
    %v739 = vand.u32 %v88, 4294901760
    %v740 = vsub.f32 %v88, %v739
    %741 = vmatpush1.msra.mxu0 %v740
    %742 = vmatprep.subr.mxu0 0.0
    %v743 = vand.u32 %v89, 4294901760
    %v744 = vsub.f32 %v89, %v743
    %745 = vmatpush1.msra.mxu0 %v744
    %746 = vmatprep.subr.mxu0 0.0
    %v747 = vand.u32 %v90, 4294901760
    %v748 = vsub.f32 %v90, %v747
    %749 = vmatpush1.msra.mxu0 %v748
    %750 = vmatprep.subr.mxu0 0.0
    %v751 = vand.u32 %v91, 4294901760
    %v752 = vsub.f32 %v91, %v751
    %753 = vmatpush1.msra.mxu0 %v752
    %754 = vmatprep.subr.mxu0 0.0
    %v755 = vand.u32 %v92, 4294901760
    %v756 = vsub.f32 %v92, %v755
    %757 = vmatpush1.msra.mxu0 %v756
    %758 = vmatprep.subr.mxu0 0.0
    %v759 = vand.u32 %v93, 4294901760
    %v760 = vsub.f32 %v93, %v759
    %761 = vmatpush1.msra.mxu0 %v760
    %762 = vmatprep.subr.mxu0 0.0
    %v763 = vand.u32 %v94, 4294901760
    %v764 = vsub.f32 %v94, %v763
    %765 = vmatpush1.msra.mxu0 %v764
    %766 = vmatprep.subr.mxu0 0.0
    %v767 = vand.u32 %v95, 4294901760
    %v768 = vsub.f32 %v95, %v767
    %769 = vmatpush1.msra.mxu0 %v768
    %770 = vmatprep.subr.mxu0 0.0
    %v771 = vand.u32 %v96, 4294901760
    %v772 = vsub.f32 %v96, %v771
    %773 = vmatpush1.msra.mxu0 %v772
    %774 = vmatprep.subr.mxu0 0.0
    %v775 = vand.u32 %v97, 4294901760
    %v776 = vsub.f32 %v97, %v775
    %777 = vmatpush1.msra.mxu0 %v776
    %778 = vmatprep.subr.mxu0 0.0
    %v779 = vand.u32 %v98, 4294901760
    %v780 = vsub.f32 %v98, %v779
    %781 = vmatpush1.msra.mxu0 %v780
    %782 = vmatprep.subr.mxu0 0.0
    %v783 = vand.u32 %v99, 4294901760
    %v784 = vsub.f32 %v99, %v783
    %785 = vmatpush1.msra.mxu0 %v784
    %786 = vmatprep.subr.mxu0 0.0
    %v787 = vand.u32 %v100, 4294901760
    %v788 = vsub.f32 %v100, %v787
    %789 = vmatpush1.msra.mxu0 %v788
    %790 = vmatprep.subr.mxu0 0.0
    %v791 = vand.u32 %v101, 4294901760
    %v792 = vsub.f32 %v101, %v791
    %793 = vmatpush1.msra.mxu0 %v792
    %794 = vmatprep.subr.mxu0 0.0
    %v795 = vand.u32 %v102, 4294901760
    %v796 = vsub.f32 %v102, %v795
    %797 = vmatpush1.msra.mxu0 %v796
    %798 = vmatprep.subr.mxu0 0.0
    %v799 = vand.u32 %v103, 4294901760
    %v800 = vsub.f32 %v103, %v799
    %801 = vmatpush1.msra.mxu0 %v800
    %802 = vmatprep.subr.mxu0 0.0
    %v803 = vand.u32 %v104, 4294901760
    %v804 = vsub.f32 %v104, %v803
    %805 = vmatpush1.msra.mxu0 %v804
    %806 = vmatprep.subr.mxu0 0.0
    %v807 = vand.u32 %v105, 4294901760
    %v808 = vsub.f32 %v105, %v807
    %809 = vmatpush1.msra.mxu0 %v808
    %810 = vmatprep.subr.mxu0 0.0
    %v811 = vand.u32 %v106, 4294901760
    %v812 = vsub.f32 %v106, %v811
    %813 = vmatpush1.msra.mxu0 %v812
    %v814 = vand.u32 %v337, 4294901760
    %v815 = vsub.f32 %v337, %v814
    %816 = vmatprep.mubr.f32.mxu0 %v815
    %v817 = vand.u32 %v336, 4294901760
    %v818 = vsub.f32 %v336, %v817
    %819 = vmatmul.mubr.f32.gmra.mrb[0].mxu0 %v818
    %v820 = vpop.f32.mrb[0].mxu0
    %v821 = vadd.f32 %v683, %v820
    %v822 = vpop.f32.mrb[0].mxu0
    %823 = vdwg.mxu0
    %824 = vmatprep.subr.mxu0 0.0
    %v825 = vand.u32 %v75, 4294901760
    %826 = vmatpush1.msra.mxu0 %v825
    %827 = vmatprep.subr.mxu0 0.0
    %v828 = vand.u32 %v76, 4294901760
    %829 = vmatpush1.msra.mxu0 %v828
    %830 = vmatprep.subr.mxu0 0.0
    %v831 = vand.u32 %v77, 4294901760
    %832 = vmatpush1.msra.mxu0 %v831
    %833 = vmatprep.subr.mxu0 0.0
    %v834 = vand.u32 %v78, 4294901760
    %835 = vmatpush1.msra.mxu0 %v834
    %836 = vmatprep.subr.mxu0 0.0
    %v837 = vand.u32 %v79, 4294901760
    %838 = vmatpush1.msra.mxu0 %v837
    %839 = vmatprep.subr.mxu0 0.0
    %v840 = vand.u32 %v80, 4294901760
    %841 = vmatpush1.msra.mxu0 %v840
    %842 = vmatprep.subr.mxu0 0.0
    %v843 = vand.u32 %v81, 4294901760
    %844 = vmatpush1.msra.mxu0 %v843
    %845 = vmatprep.subr.mxu0 0.0
    %v846 = vand.u32 %v82, 4294901760
    %847 = vmatpush1.msra.mxu0 %v846
    %848 = vmatprep.subr.mxu0 0.0
    %v849 = vand.u32 %v83, 4294901760
    %850 = vmatpush1.msra.mxu0 %v849
    %851 = vmatprep.subr.mxu0 0.0
    %v852 = vand.u32 %v84, 4294901760
    %853 = vmatpush1.msra.mxu0 %v852
    %854 = vmatprep.subr.mxu0 0.0
    %v855 = vand.u32 %v85, 4294901760
    %856 = vmatpush1.msra.mxu0 %v855
    %857 = vmatprep.subr.mxu0 0.0
    %v858 = vand.u32 %v86, 4294901760
    %859 = vmatpush1.msra.mxu0 %v858
    %860 = vmatprep.subr.mxu0 0.0
    %v861 = vand.u32 %v87, 4294901760
    %862 = vmatpush1.msra.mxu0 %v861
    %863 = vmatprep.subr.mxu0 0.0
    %v864 = vand.u32 %v88, 4294901760
    %865 = vmatpush1.msra.mxu0 %v864
    %866 = vmatprep.subr.mxu0 0.0
    %v867 = vand.u32 %v89, 4294901760
    %868 = vmatpush1.msra.mxu0 %v867
    %869 = vmatprep.subr.mxu0 0.0
    %v870 = vand.u32 %v90, 4294901760
    %871 = vmatpush1.msra.mxu0 %v870
    %872 = vmatprep.subr.mxu0 0.0
    %v873 = vand.u32 %v91, 4294901760
    %874 = vmatpush1.msra.mxu0 %v873
    %875 = vmatprep.subr.mxu0 0.0
    %v876 = vand.u32 %v92, 4294901760
    %877 = vmatpush1.msra.mxu0 %v876
    %878 = vmatprep.subr.mxu0 0.0
    %v879 = vand.u32 %v93, 4294901760
    %880 = vmatpush1.msra.mxu0 %v879
    %881 = vmatprep.subr.mxu0 0.0
    %v882 = vand.u32 %v94, 4294901760
    %883 = vmatpush1.msra.mxu0 %v882
    %884 = vmatprep.subr.mxu0 0.0
    %v885 = vand.u32 %v95, 4294901760
    %886 = vmatpush1.msra.mxu0 %v885
    %887 = vmatprep.subr.mxu0 0.0
    %v888 = vand.u32 %v96, 4294901760
    %889 = vmatpush1.msra.mxu0 %v888
    %890 = vmatprep.subr.mxu0 0.0
    %v891 = vand.u32 %v97, 4294901760
    %892 = vmatpush1.msra.mxu0 %v891
    %893 = vmatprep.subr.mxu0 0.0
    %v894 = vand.u32 %v98, 4294901760
    %895 = vmatpush1.msra.mxu0 %v894
    %896 = vmatprep.subr.mxu0 0.0
    %v897 = vand.u32 %v99, 4294901760
    %898 = vmatpush1.msra.mxu0 %v897
    %899 = vmatprep.subr.mxu0 0.0
    %v900 = vand.u32 %v100, 4294901760
    %901 = vmatpush1.msra.mxu0 %v900
    %902 = vmatprep.subr.mxu0 0.0
    %v903 = vand.u32 %v101, 4294901760
    %904 = vmatpush1.msra.mxu0 %v903
    %905 = vmatprep.subr.mxu0 0.0
    %v906 = vand.u32 %v102, 4294901760
    %907 = vmatpush1.msra.mxu0 %v906
    %908 = vmatprep.subr.mxu0 0.0
    %v909 = vand.u32 %v103, 4294901760
    %910 = vmatpush1.msra.mxu0 %v909
    %911 = vmatprep.subr.mxu0 0.0
    %v912 = vand.u32 %v104, 4294901760
    %913 = vmatpush1.msra.mxu0 %v912
    %914 = vmatprep.subr.mxu0 0.0
    %v915 = vand.u32 %v105, 4294901760
    %916 = vmatpush1.msra.mxu0 %v915
    %917 = vmatprep.subr.mxu0 0.0
    %v918 = vand.u32 %v106, 4294901760
    %919 = vmatpush1.msra.mxu0 %v918
    %v920 = vand.u32 %v337, 4294901760
    %v921 = vsub.f32 %v337, %v920
    %v922 = vand.u32 %v921, 4294901760
    %923 = vmatprep.mubr.f32.mxu0 %v922
    %v924 = vand.u32 %v336, 4294901760
    %v925 = vsub.f32 %v336, %v924
    %v926 = vand.u32 %v925, 4294901760
    %927 = vmatmul.mubr.f32.gmra.mrb[0].mxu0 %v926
    %v928 = vpop.f32.mrb[0].mxu0
    %v929 = vadd.f32 %v821, %v928
    %v930 = vpop.f32.mrb[0].mxu0
    %931 = vdwg.mxu0
    %932 = vmatprep.subr.mxu0 0.0
    %v933 = vand.u32 %v75, 4294901760
    %v934 = vsub.f32 %v75, %v933
    %v935 = vand.u32 %v934, 4294901760
    %936 = vmatpush1.msra.mxu0 %v935
    %937 = vmatprep.subr.mxu0 0.0
    %v938 = vand.u32 %v76, 4294901760
    %v939 = vsub.f32 %v76, %v938
    %v940 = vand.u32 %v939, 4294901760
    %941 = vmatpush1.msra.mxu0 %v940
    %942 = vmatprep.subr.mxu0 0.0
    %v943 = vand.u32 %v77, 4294901760
    %v944 = vsub.f32 %v77, %v943
    %v945 = vand.u32 %v944, 4294901760
    %946 = vmatpush1.msra.mxu0 %v945
    %947 = vmatprep.subr.mxu0 0.0
    %v948 = vand.u32 %v78, 4294901760
    %v949 = vsub.f32 %v78, %v948
    %v950 = vand.u32 %v949, 4294901760
    %951 = vmatpush1.msra.mxu0 %v950
    %952 = vmatprep.subr.mxu0 0.0
    %v953 = vand.u32 %v79, 4294901760
    %v954 = vsub.f32 %v79, %v953
    %v955 = vand.u32 %v954, 4294901760
    %956 = vmatpush1.msra.mxu0 %v955
    %957 = vmatprep.subr.mxu0 0.0
    %v958 = vand.u32 %v80, 4294901760
    %v959 = vsub.f32 %v80, %v958
    %v960 = vand.u32 %v959, 4294901760
    %961 = vmatpush1.msra.mxu0 %v960
    %962 = vmatprep.subr.mxu0 0.0
    %v963 = vand.u32 %v81, 4294901760
    %v964 = vsub.f32 %v81, %v963
    %v965 = vand.u32 %v964, 4294901760
    %966 = vmatpush1.msra.mxu0 %v965
    %967 = vmatprep.subr.mxu0 0.0
    %v968 = vand.u32 %v82, 4294901760
    %v969 = vsub.f32 %v82, %v968
    %v970 = vand.u32 %v969, 4294901760
    %971 = vmatpush1.msra.mxu0 %v970
    %972 = vmatprep.subr.mxu0 0.0
    %v973 = vand.u32 %v83, 4294901760
    %v974 = vsub.f32 %v83, %v973
    %v975 = vand.u32 %v974, 4294901760
    %976 = vmatpush1.msra.mxu0 %v975
    %977 = vmatprep.subr.mxu0 0.0
    %v978 = vand.u32 %v84, 4294901760
    %v979 = vsub.f32 %v84, %v978
    %v980 = vand.u32 %v979, 4294901760
    %981 = vmatpush1.msra.mxu0 %v980
    %982 = vmatprep.subr.mxu0 0.0
    %v983 = vand.u32 %v85, 4294901760
    %v984 = vsub.f32 %v85, %v983
    %v985 = vand.u32 %v984, 4294901760
    %986 = vmatpush1.msra.mxu0 %v985
    %987 = vmatprep.subr.mxu0 0.0
    %v988 = vand.u32 %v86, 4294901760
    %v989 = vsub.f32 %v86, %v988
    %v990 = vand.u32 %v989, 4294901760
    %991 = vmatpush1.msra.mxu0 %v990
    %992 = vmatprep.subr.mxu0 0.0
    %v993 = vand.u32 %v87, 4294901760
    %v994 = vsub.f32 %v87, %v993
    %v995 = vand.u32 %v994, 4294901760
    %996 = vmatpush1.msra.mxu0 %v995
    %997 = vmatprep.subr.mxu0 0.0
    %v998 = vand.u32 %v88, 4294901760
    %v999 = vsub.f32 %v88, %v998
    %v1000 = vand.u32 %v999, 4294901760
    %1001 = vmatpush1.msra.mxu0 %v1000
    %1002 = vmatprep.subr.mxu0 0.0
    %v1003 = vand.u32 %v89, 4294901760
    %v1004 = vsub.f32 %v89, %v1003
    %v1005 = vand.u32 %v1004, 4294901760
    %1006 = vmatpush1.msra.mxu0 %v1005
    %1007 = vmatprep.subr.mxu0 0.0
    %v1008 = vand.u32 %v90, 4294901760
    %v1009 = vsub.f32 %v90, %v1008
    %v1010 = vand.u32 %v1009, 4294901760
    %1011 = vmatpush1.msra.mxu0 %v1010
    %1012 = vmatprep.subr.mxu0 0.0
    %v1013 = vand.u32 %v91, 4294901760
    %v1014 = vsub.f32 %v91, %v1013
    %v1015 = vand.u32 %v1014, 4294901760
    %1016 = vmatpush1.msra.mxu0 %v1015
    %1017 = vmatprep.subr.mxu0 0.0
    %v1018 = vand.u32 %v92, 4294901760
    %v1019 = vsub.f32 %v92, %v1018
    %v1020 = vand.u32 %v1019, 4294901760
    %1021 = vmatpush1.msra.mxu0 %v1020
    %1022 = vmatprep.subr.mxu0 0.0
    %v1023 = vand.u32 %v93, 4294901760
    %v1024 = vsub.f32 %v93, %v1023
    %v1025 = vand.u32 %v1024, 4294901760
    %1026 = vmatpush1.msra.mxu0 %v1025
    %1027 = vmatprep.subr.mxu0 0.0
    %v1028 = vand.u32 %v94, 4294901760
    %v1029 = vsub.f32 %v94, %v1028
    %v1030 = vand.u32 %v1029, 4294901760
    %1031 = vmatpush1.msra.mxu0 %v1030
    %1032 = vmatprep.subr.mxu0 0.0
    %v1033 = vand.u32 %v95, 4294901760
    %v1034 = vsub.f32 %v95, %v1033
    %v1035 = vand.u32 %v1034, 4294901760
    %1036 = vmatpush1.msra.mxu0 %v1035
    %1037 = vmatprep.subr.mxu0 0.0
    %v1038 = vand.u32 %v96, 4294901760
    %v1039 = vsub.f32 %v96, %v1038
    %v1040 = vand.u32 %v1039, 4294901760
    %1041 = vmatpush1.msra.mxu0 %v1040
    %1042 = vmatprep.subr.mxu0 0.0
    %v1043 = vand.u32 %v97, 4294901760
    %v1044 = vsub.f32 %v97, %v1043
    %v1045 = vand.u32 %v1044, 4294901760
    %1046 = vmatpush1.msra.mxu0 %v1045
    %1047 = vmatprep.subr.mxu0 0.0
    %v1048 = vand.u32 %v98, 4294901760
    %v1049 = vsub.f32 %v98, %v1048
    %v1050 = vand.u32 %v1049, 4294901760
    %1051 = vmatpush1.msra.mxu0 %v1050
    %1052 = vmatprep.subr.mxu0 0.0
    %v1053 = vand.u32 %v99, 4294901760
    %v1054 = vsub.f32 %v99, %v1053
    %v1055 = vand.u32 %v1054, 4294901760
    %1056 = vmatpush1.msra.mxu0 %v1055
    %1057 = vmatprep.subr.mxu0 0.0
    %v1058 = vand.u32 %v100, 4294901760
    %v1059 = vsub.f32 %v100, %v1058
    %v1060 = vand.u32 %v1059, 4294901760
    %1061 = vmatpush1.msra.mxu0 %v1060
    %1062 = vmatprep.subr.mxu0 0.0
    %v1063 = vand.u32 %v101, 4294901760
    %v1064 = vsub.f32 %v101, %v1063
    %v1065 = vand.u32 %v1064, 4294901760
    %1066 = vmatpush1.msra.mxu0 %v1065
    %1067 = vmatprep.subr.mxu0 0.0
    %v1068 = vand.u32 %v102, 4294901760
    %v1069 = vsub.f32 %v102, %v1068
    %v1070 = vand.u32 %v1069, 4294901760
    %1071 = vmatpush1.msra.mxu0 %v1070
    %1072 = vmatprep.subr.mxu0 0.0
    %v1073 = vand.u32 %v103, 4294901760
    %v1074 = vsub.f32 %v103, %v1073
    %v1075 = vand.u32 %v1074, 4294901760
    %1076 = vmatpush1.msra.mxu0 %v1075
    %1077 = vmatprep.subr.mxu0 0.0
    %v1078 = vand.u32 %v104, 4294901760
    %v1079 = vsub.f32 %v104, %v1078
    %v1080 = vand.u32 %v1079, 4294901760
    %1081 = vmatpush1.msra.mxu0 %v1080
    %1082 = vmatprep.subr.mxu0 0.0
    %v1083 = vand.u32 %v105, 4294901760
    %v1084 = vsub.f32 %v105, %v1083
    %v1085 = vand.u32 %v1084, 4294901760
    %1086 = vmatpush1.msra.mxu0 %v1085
    %1087 = vmatprep.subr.mxu0 0.0
    %v1088 = vand.u32 %v106, 4294901760
    %v1089 = vsub.f32 %v106, %v1088
    %v1090 = vand.u32 %v1089, 4294901760
    %1091 = vmatpush1.msra.mxu0 %v1090
    %v1092 = vand.u32 %v337, 4294901760
    %1093 = vmatprep.mubr.f32.mxu0 %v1092
    %v1094 = vand.u32 %v336, 4294901760
    %1095 = vmatmul.mubr.f32.gmra.mrb[0].mxu0 %v1094
    %v1096 = vpop.f32.mrb[0].mxu0
    %v1097 = vadd.f32 %v929, %v1096
    %v1098 = vpop.f32.mrb[0].mxu0
    %1099 = vdwg.mxu0
    %1100 = vmatprep.subr.mxu0 0.0
    %v1101 = vand.u32 %v75, 4294901760
    %1102 = vmatpush1.msra.mxu0 %v1101
    %1103 = vmatprep.subr.mxu0 0.0
    %v1104 = vand.u32 %v76, 4294901760
    %1105 = vmatpush1.msra.mxu0 %v1104
    %1106 = vmatprep.subr.mxu0 0.0
    %v1107 = vand.u32 %v77, 4294901760
    %1108 = vmatpush1.msra.mxu0 %v1107
    %1109 = vmatprep.subr.mxu0 0.0
    %v1110 = vand.u32 %v78, 4294901760
    %1111 = vmatpush1.msra.mxu0 %v1110
    %1112 = vmatprep.subr.mxu0 0.0
    %v1113 = vand.u32 %v79, 4294901760
    %1114 = vmatpush1.msra.mxu0 %v1113
    %1115 = vmatprep.subr.mxu0 0.0
    %v1116 = vand.u32 %v80, 4294901760
    %1117 = vmatpush1.msra.mxu0 %v1116
    %1118 = vmatprep.subr.mxu0 0.0
    %v1119 = vand.u32 %v81, 4294901760
    %1120 = vmatpush1.msra.mxu0 %v1119
    %1121 = vmatprep.subr.mxu0 0.0
    %v1122 = vand.u32 %v82, 4294901760
    %1123 = vmatpush1.msra.mxu0 %v1122
    %1124 = vmatprep.subr.mxu0 0.0
    %v1125 = vand.u32 %v83, 4294901760
    %1126 = vmatpush1.msra.mxu0 %v1125
    %1127 = vmatprep.subr.mxu0 0.0
    %v1128 = vand.u32 %v84, 4294901760
    %1129 = vmatpush1.msra.mxu0 %v1128
    %1130 = vmatprep.subr.mxu0 0.0
    %v1131 = vand.u32 %v85, 4294901760
    %1132 = vmatpush1.msra.mxu0 %v1131
    %1133 = vmatprep.subr.mxu0 0.0
    %v1134 = vand.u32 %v86, 4294901760
    %1135 = vmatpush1.msra.mxu0 %v1134
    %1136 = vmatprep.subr.mxu0 0.0
    %v1137 = vand.u32 %v87, 4294901760
    %1138 = vmatpush1.msra.mxu0 %v1137
    %1139 = vmatprep.subr.mxu0 0.0
    %v1140 = vand.u32 %v88, 4294901760
    %1141 = vmatpush1.msra.mxu0 %v1140
    %1142 = vmatprep.subr.mxu0 0.0
    %v1143 = vand.u32 %v89, 4294901760
    %1144 = vmatpush1.msra.mxu0 %v1143
    %1145 = vmatprep.subr.mxu0 0.0
    %v1146 = vand.u32 %v90, 4294901760
    %1147 = vmatpush1.msra.mxu0 %v1146
    %1148 = vmatprep.subr.mxu0 0.0
    %v1149 = vand.u32 %v91, 4294901760
    %1150 = vmatpush1.msra.mxu0 %v1149
    %1151 = vmatprep.subr.mxu0 0.0
    %v1152 = vand.u32 %v92, 4294901760
    %1153 = vmatpush1.msra.mxu0 %v1152
    %1154 = vmatprep.subr.mxu0 0.0
    %v1155 = vand.u32 %v93, 4294901760
    %1156 = vmatpush1.msra.mxu0 %v1155
    %1157 = vmatprep.subr.mxu0 0.0
    %v1158 = vand.u32 %v94, 4294901760
    %1159 = vmatpush1.msra.mxu0 %v1158
    %1160 = vmatprep.subr.mxu0 0.0
    %v1161 = vand.u32 %v95, 4294901760
    %1162 = vmatpush1.msra.mxu0 %v1161
    %1163 = vmatprep.subr.mxu0 0.0
    %v1164 = vand.u32 %v96, 4294901760
    %1165 = vmatpush1.msra.mxu0 %v1164
    %1166 = vmatprep.subr.mxu0 0.0
    %v1167 = vand.u32 %v97, 4294901760
    %1168 = vmatpush1.msra.mxu0 %v1167
    %1169 = vmatprep.subr.mxu0 0.0
    %v1170 = vand.u32 %v98, 4294901760
    %1171 = vmatpush1.msra.mxu0 %v1170
    %1172 = vmatprep.subr.mxu0 0.0
    %v1173 = vand.u32 %v99, 4294901760
    %1174 = vmatpush1.msra.mxu0 %v1173
    %1175 = vmatprep.subr.mxu0 0.0
    %v1176 = vand.u32 %v100, 4294901760
    %1177 = vmatpush1.msra.mxu0 %v1176
    %1178 = vmatprep.subr.mxu0 0.0
    %v1179 = vand.u32 %v101, 4294901760
    %1180 = vmatpush1.msra.mxu0 %v1179
    %1181 = vmatprep.subr.mxu0 0.0
    %v1182 = vand.u32 %v102, 4294901760
    %1183 = vmatpush1.msra.mxu0 %v1182
    %1184 = vmatprep.subr.mxu0 0.0
    %v1185 = vand.u32 %v103, 4294901760
    %1186 = vmatpush1.msra.mxu0 %v1185
    %1187 = vmatprep.subr.mxu0 0.0
    %v1188 = vand.u32 %v104, 4294901760
    %1189 = vmatpush1.msra.mxu0 %v1188
    %1190 = vmatprep.subr.mxu0 0.0
    %v1191 = vand.u32 %v105, 4294901760
    %1192 = vmatpush1.msra.mxu0 %v1191
    %1193 = vmatprep.subr.mxu0 0.0
    %v1194 = vand.u32 %v106, 4294901760
    %1195 = vmatpush1.msra.mxu0 %v1194
    %v1196 = vand.u32 %v337, 4294901760
    %1197 = vmatprep.mubr.f32.mxu0 %v1196
    %v1198 = vand.u32 %v336, 4294901760
    %1199 = vmatmul.mubr.f32.gmra.mrb[0].mxu0 %v1198
    %v1200 = vpop.f32.mrb[0].mxu0
    %v1201 = vadd.f32 %v1097, %v1200
    %v1202 = vpop.f32.mrb[0].mxu0
    %1203 = vdwg.mxu0
    %1204 = vmatprep.subr.mxu0 0.0
    %v1205 = vand.u32 %v107, 4294901760
    %1206 = vmatpush1.msra.mxu0 %v1205
    %1207 = vmatprep.subr.mxu0 0.0
    %v1208 = vand.u32 %v108, 4294901760
    %1209 = vmatpush1.msra.mxu0 %v1208
    %1210 = vmatprep.subr.mxu0 0.0
    %v1211 = vand.u32 %v109, 4294901760
    %1212 = vmatpush1.msra.mxu0 %v1211
    %1213 = vmatprep.subr.mxu0 0.0
    %v1214 = vand.u32 %v110, 4294901760
    %1215 = vmatpush1.msra.mxu0 %v1214
    %1216 = vmatprep.subr.mxu0 0.0
    %v1217 = vand.u32 %v111, 4294901760
    %1218 = vmatpush1.msra.mxu0 %v1217
    %1219 = vmatprep.subr.mxu0 0.0
    %v1220 = vand.u32 %v112, 4294901760
    %1221 = vmatpush1.msra.mxu0 %v1220
    %1222 = vmatprep.subr.mxu0 0.0
    %v1223 = vand.u32 %v113, 4294901760
    %1224 = vmatpush1.msra.mxu0 %v1223
    %1225 = vmatprep.subr.mxu0 0.0
    %v1226 = vand.u32 %v114, 4294901760
    %1227 = vmatpush1.msra.mxu0 %v1226
    %1228 = vmatprep.subr.mxu0 0.0
    %v1229 = vand.u32 %v115, 4294901760
    %1230 = vmatpush1.msra.mxu0 %v1229
    %1231 = vmatprep.subr.mxu0 0.0
    %v1232 = vand.u32 %v116, 4294901760
    %1233 = vmatpush1.msra.mxu0 %v1232
    %1234 = vmatprep.subr.mxu0 0.0
    %v1235 = vand.u32 %v117, 4294901760
    %1236 = vmatpush1.msra.mxu0 %v1235
    %1237 = vmatprep.subr.mxu0 0.0
    %v1238 = vand.u32 %v118, 4294901760
    %1239 = vmatpush1.msra.mxu0 %v1238
    %1240 = vmatprep.subr.mxu0 0.0
    %v1241 = vand.u32 %v119, 4294901760
    %1242 = vmatpush1.msra.mxu0 %v1241
    %1243 = vmatprep.subr.mxu0 0.0
    %v1244 = vand.u32 %v120, 4294901760
    %1245 = vmatpush1.msra.mxu0 %v1244
    %1246 = vmatprep.subr.mxu0 0.0
    %v1247 = vand.u32 %v121, 4294901760
    %1248 = vmatpush1.msra.mxu0 %v1247
    %1249 = vmatprep.subr.mxu0 0.0
    %v1250 = vand.u32 %v122, 4294901760
    %1251 = vmatpush1.msra.mxu0 %v1250
    %1252 = vmatprep.subr.mxu0 0.0
    %v1253 = vand.u32 %v123, 4294901760
    %1254 = vmatpush1.msra.mxu0 %v1253
    %1255 = vmatprep.subr.mxu0 0.0
    %v1256 = vand.u32 %v124, 4294901760
    %1257 = vmatpush1.msra.mxu0 %v1256
    %1258 = vmatprep.subr.mxu0 0.0
    %v1259 = vand.u32 %v125, 4294901760
    %1260 = vmatpush1.msra.mxu0 %v1259
    %1261 = vmatprep.subr.mxu0 0.0
    %v1262 = vand.u32 %v126, 4294901760
    %1263 = vmatpush1.msra.mxu0 %v1262
    %1264 = vmatprep.subr.mxu0 0.0
    %v1265 = vand.u32 %v127, 4294901760
    %1266 = vmatpush1.msra.mxu0 %v1265
    %1267 = vmatprep.subr.mxu0 0.0
    %v1268 = vand.u32 %v128, 4294901760
    %1269 = vmatpush1.msra.mxu0 %v1268
    %1270 = vmatprep.subr.mxu0 0.0
    %v1271 = vand.u32 %v129, 4294901760
    %1272 = vmatpush1.msra.mxu0 %v1271
    %1273 = vmatprep.subr.mxu0 0.0
    %v1274 = vand.u32 %v130, 4294901760
    %1275 = vmatpush1.msra.mxu0 %v1274
    %1276 = vmatprep.subr.mxu0 0.0
    %v1277 = vand.u32 %v131, 4294901760
    %1278 = vmatpush1.msra.mxu0 %v1277
    %1279 = vmatprep.subr.mxu0 0.0
    %v1280 = vand.u32 %v132, 4294901760
    %1281 = vmatpush1.msra.mxu0 %v1280
    %1282 = vmatprep.subr.mxu0 0.0
    %v1283 = vand.u32 %v133, 4294901760
    %1284 = vmatpush1.msra.mxu0 %v1283
    %1285 = vmatprep.subr.mxu0 0.0
    %v1286 = vand.u32 %v134, 4294901760
    %1287 = vmatpush1.msra.mxu0 %v1286
    %1288 = vmatprep.subr.mxu0 0.0
    %v1289 = vand.u32 %v135, 4294901760
    %1290 = vmatpush1.msra.mxu0 %v1289
    %1291 = vmatprep.subr.mxu0 0.0
    %v1292 = vand.u32 %v136, 4294901760
    %1293 = vmatpush1.msra.mxu0 %v1292
    %1294 = vmatprep.subr.mxu0 0.0
    %v1295 = vand.u32 %v137, 4294901760
    %1296 = vmatpush1.msra.mxu0 %v1295
    %1297 = vmatprep.subr.mxu0 0.0
    %v1298 = vand.u32 %v138, 4294901760
    %1299 = vmatpush1.msra.mxu0 %v1298
    %v1300 = vand.u32 %v339, 4294901760
    %v1301 = vsub.f32 %v339, %v1300
    %v1302 = vand.u32 %v1301, 4294901760
    %v1303 = vsub.f32 %v1301, %v1302
    %v1304 = vand.u32 %v1303, 4294901760
    %1305 = vmatprep.mubr.f32.mxu0 %v1304
    %v1306 = vand.u32 %v338, 4294901760
    %v1307 = vsub.f32 %v338, %v1306
    %v1308 = vand.u32 %v1307, 4294901760
    %v1309 = vsub.f32 %v1307, %v1308
    %v1310 = vand.u32 %v1309, 4294901760
    %1311 = vmatmul.mubr.f32.gmra.mrb[0].mxu0 %v1310
    %v1312 = vpop.f32.mrb[0].mxu0
    %v1313 = vadd.f32 %v1201, %v1312
    %v1314 = vpop.f32.mrb[0].mxu0
    %1315 = vdwg.mxu0
    %1316 = vmatprep.subr.mxu0 0.0
    %v1317 = vand.u32 %v107, 4294901760
    %v1318 = vsub.f32 %v107, %v1317
    %v1319 = vand.u32 %v1318, 4294901760
    %v1320 = vsub.f32 %v1318, %v1319
    %v1321 = vand.u32 %v1320, 4294901760
    %1322 = vmatpush1.msra.mxu0 %v1321
    %1323 = vmatprep.subr.mxu0 0.0
    %v1324 = vand.u32 %v108, 4294901760
    %v1325 = vsub.f32 %v108, %v1324
    %v1326 = vand.u32 %v1325, 4294901760
    %v1327 = vsub.f32 %v1325, %v1326
    %v1328 = vand.u32 %v1327, 4294901760
    %1329 = vmatpush1.msra.mxu0 %v1328
    %1330 = vmatprep.subr.mxu0 0.0
    %v1331 = vand.u32 %v109, 4294901760
    %v1332 = vsub.f32 %v109, %v1331
    %v1333 = vand.u32 %v1332, 4294901760
    %v1334 = vsub.f32 %v1332, %v1333
    %v1335 = vand.u32 %v1334, 4294901760
    %1336 = vmatpush1.msra.mxu0 %v1335
    %1337 = vmatprep.subr.mxu0 0.0
    %v1338 = vand.u32 %v110, 4294901760
    %v1339 = vsub.f32 %v110, %v1338
    %v1340 = vand.u32 %v1339, 4294901760
    %v1341 = vsub.f32 %v1339, %v1340
    %v1342 = vand.u32 %v1341, 4294901760
    %1343 = vmatpush1.msra.mxu0 %v1342
    %1344 = vmatprep.subr.mxu0 0.0
    %v1345 = vand.u32 %v111, 4294901760
    %v1346 = vsub.f32 %v111, %v1345
    %v1347 = vand.u32 %v1346, 4294901760
    %v1348 = vsub.f32 %v1346, %v1347
    %v1349 = vand.u32 %v1348, 4294901760
    %1350 = vmatpush1.msra.mxu0 %v1349
    %1351 = vmatprep.subr.mxu0 0.0
    %v1352 = vand.u32 %v112, 4294901760
    %v1353 = vsub.f32 %v112, %v1352
    %v1354 = vand.u32 %v1353, 4294901760
    %v1355 = vsub.f32 %v1353, %v1354
    %v1356 = vand.u32 %v1355, 4294901760
    %1357 = vmatpush1.msra.mxu0 %v1356
    %1358 = vmatprep.subr.mxu0 0.0
    %v1359 = vand.u32 %v113, 4294901760
    %v1360 = vsub.f32 %v113, %v1359
    %v1361 = vand.u32 %v1360, 4294901760
    %v1362 = vsub.f32 %v1360, %v1361
    %v1363 = vand.u32 %v1362, 4294901760
    %1364 = vmatpush1.msra.mxu0 %v1363
    %1365 = vmatprep.subr.mxu0 0.0
    %v1366 = vand.u32 %v114, 4294901760
    %v1367 = vsub.f32 %v114, %v1366
    %v1368 = vand.u32 %v1367, 4294901760
    %v1369 = vsub.f32 %v1367, %v1368
    %v1370 = vand.u32 %v1369, 4294901760
    %1371 = vmatpush1.msra.mxu0 %v1370
    %1372 = vmatprep.subr.mxu0 0.0
    %v1373 = vand.u32 %v115, 4294901760
    %v1374 = vsub.f32 %v115, %v1373
    %v1375 = vand.u32 %v1374, 4294901760
    %v1376 = vsub.f32 %v1374, %v1375
    %v1377 = vand.u32 %v1376, 4294901760
    %1378 = vmatpush1.msra.mxu0 %v1377
    %1379 = vmatprep.subr.mxu0 0.0
    %v1380 = vand.u32 %v116, 4294901760
    %v1381 = vsub.f32 %v116, %v1380
    %v1382 = vand.u32 %v1381, 4294901760
    %v1383 = vsub.f32 %v1381, %v1382
    %v1384 = vand.u32 %v1383, 4294901760
    %1385 = vmatpush1.msra.mxu0 %v1384
    %1386 = vmatprep.subr.mxu0 0.0
    %v1387 = vand.u32 %v117, 4294901760
    %v1388 = vsub.f32 %v117, %v1387
    %v1389 = vand.u32 %v1388, 4294901760
    %v1390 = vsub.f32 %v1388, %v1389
    %v1391 = vand.u32 %v1390, 4294901760
    %1392 = vmatpush1.msra.mxu0 %v1391
    %1393 = vmatprep.subr.mxu0 0.0
    %v1394 = vand.u32 %v118, 4294901760
    %v1395 = vsub.f32 %v118, %v1394
    %v1396 = vand.u32 %v1395, 4294901760
    %v1397 = vsub.f32 %v1395, %v1396
    %v1398 = vand.u32 %v1397, 4294901760
    %1399 = vmatpush1.msra.mxu0 %v1398
    %1400 = vmatprep.subr.mxu0 0.0
    %v1401 = vand.u32 %v119, 4294901760
    %v1402 = vsub.f32 %v119, %v1401
    %v1403 = vand.u32 %v1402, 4294901760
    %v1404 = vsub.f32 %v1402, %v1403
    %v1405 = vand.u32 %v1404, 4294901760
    %1406 = vmatpush1.msra.mxu0 %v1405
    %1407 = vmatprep.subr.mxu0 0.0
    %v1408 = vand.u32 %v120, 4294901760
    %v1409 = vsub.f32 %v120, %v1408
    %v1410 = vand.u32 %v1409, 4294901760
    %v1411 = vsub.f32 %v1409, %v1410
    %v1412 = vand.u32 %v1411, 4294901760
    %1413 = vmatpush1.msra.mxu0 %v1412
    %1414 = vmatprep.subr.mxu0 0.0
    %v1415 = vand.u32 %v121, 4294901760
    %v1416 = vsub.f32 %v121, %v1415
    %v1417 = vand.u32 %v1416, 4294901760
    %v1418 = vsub.f32 %v1416, %v1417
    %v1419 = vand.u32 %v1418, 4294901760
    %1420 = vmatpush1.msra.mxu0 %v1419
    %1421 = vmatprep.subr.mxu0 0.0
    %v1422 = vand.u32 %v122, 4294901760
    %v1423 = vsub.f32 %v122, %v1422
    %v1424 = vand.u32 %v1423, 4294901760
    %v1425 = vsub.f32 %v1423, %v1424
    %v1426 = vand.u32 %v1425, 4294901760
    %1427 = vmatpush1.msra.mxu0 %v1426
    %1428 = vmatprep.subr.mxu0 0.0
    %v1429 = vand.u32 %v123, 4294901760
    %v1430 = vsub.f32 %v123, %v1429
    %v1431 = vand.u32 %v1430, 4294901760
    %v1432 = vsub.f32 %v1430, %v1431
    %v1433 = vand.u32 %v1432, 4294901760
    %1434 = vmatpush1.msra.mxu0 %v1433
    %1435 = vmatprep.subr.mxu0 0.0
    %v1436 = vand.u32 %v124, 4294901760
    %v1437 = vsub.f32 %v124, %v1436
    %v1438 = vand.u32 %v1437, 4294901760
    %v1439 = vsub.f32 %v1437, %v1438
    %v1440 = vand.u32 %v1439, 4294901760
    %1441 = vmatpush1.msra.mxu0 %v1440
    %1442 = vmatprep.subr.mxu0 0.0
    %v1443 = vand.u32 %v125, 4294901760
    %v1444 = vsub.f32 %v125, %v1443
    %v1445 = vand.u32 %v1444, 4294901760
    %v1446 = vsub.f32 %v1444, %v1445
    %v1447 = vand.u32 %v1446, 4294901760
    %1448 = vmatpush1.msra.mxu0 %v1447
    %1449 = vmatprep.subr.mxu0 0.0
    %v1450 = vand.u32 %v126, 4294901760
    %v1451 = vsub.f32 %v126, %v1450
    %v1452 = vand.u32 %v1451, 4294901760
    %v1453 = vsub.f32 %v1451, %v1452
    %v1454 = vand.u32 %v1453, 4294901760
    %1455 = vmatpush1.msra.mxu0 %v1454
    %1456 = vmatprep.subr.mxu0 0.0
    %v1457 = vand.u32 %v127, 4294901760
    %v1458 = vsub.f32 %v127, %v1457
    %v1459 = vand.u32 %v1458, 4294901760
    %v1460 = vsub.f32 %v1458, %v1459
    %v1461 = vand.u32 %v1460, 4294901760
    %1462 = vmatpush1.msra.mxu0 %v1461
    %1463 = vmatprep.subr.mxu0 0.0
    %v1464 = vand.u32 %v128, 4294901760
    %v1465 = vsub.f32 %v128, %v1464
    %v1466 = vand.u32 %v1465, 4294901760
    %v1467 = vsub.f32 %v1465, %v1466
    %v1468 = vand.u32 %v1467, 4294901760
    %1469 = vmatpush1.msra.mxu0 %v1468
    %1470 = vmatprep.subr.mxu0 0.0
    %v1471 = vand.u32 %v129, 4294901760
    %v1472 = vsub.f32 %v129, %v1471
    %v1473 = vand.u32 %v1472, 4294901760
    %v1474 = vsub.f32 %v1472, %v1473
    %v1475 = vand.u32 %v1474, 4294901760
    %1476 = vmatpush1.msra.mxu0 %v1475
    %1477 = vmatprep.subr.mxu0 0.0
    %v1478 = vand.u32 %v130, 4294901760
    %v1479 = vsub.f32 %v130, %v1478
    %v1480 = vand.u32 %v1479, 4294901760
    %v1481 = vsub.f32 %v1479, %v1480
    %v1482 = vand.u32 %v1481, 4294901760
    %1483 = vmatpush1.msra.mxu0 %v1482
    %1484 = vmatprep.subr.mxu0 0.0
    %v1485 = vand.u32 %v131, 4294901760
    %v1486 = vsub.f32 %v131, %v1485
    %v1487 = vand.u32 %v1486, 4294901760
    %v1488 = vsub.f32 %v1486, %v1487
    %v1489 = vand.u32 %v1488, 4294901760
    %1490 = vmatpush1.msra.mxu0 %v1489
    %1491 = vmatprep.subr.mxu0 0.0
    %v1492 = vand.u32 %v132, 4294901760
    %v1493 = vsub.f32 %v132, %v1492
    %v1494 = vand.u32 %v1493, 4294901760
    %v1495 = vsub.f32 %v1493, %v1494
    %v1496 = vand.u32 %v1495, 4294901760
    %1497 = vmatpush1.msra.mxu0 %v1496
    %1498 = vmatprep.subr.mxu0 0.0
    %v1499 = vand.u32 %v133, 4294901760
    %v1500 = vsub.f32 %v133, %v1499
    %v1501 = vand.u32 %v1500, 4294901760
    %v1502 = vsub.f32 %v1500, %v1501
    %v1503 = vand.u32 %v1502, 4294901760
    %1504 = vmatpush1.msra.mxu0 %v1503
    %1505 = vmatprep.subr.mxu0 0.0
    %v1506 = vand.u32 %v134, 4294901760
    %v1507 = vsub.f32 %v134, %v1506
    %v1508 = vand.u32 %v1507, 4294901760
    %v1509 = vsub.f32 %v1507, %v1508
    %v1510 = vand.u32 %v1509, 4294901760
    %1511 = vmatpush1.msra.mxu0 %v1510
    %1512 = vmatprep.subr.mxu0 0.0
    %v1513 = vand.u32 %v135, 4294901760
    %v1514 = vsub.f32 %v135, %v1513
    %v1515 = vand.u32 %v1514, 4294901760
    %v1516 = vsub.f32 %v1514, %v1515
    %v1517 = vand.u32 %v1516, 4294901760
    %1518 = vmatpush1.msra.mxu0 %v1517
    %1519 = vmatprep.subr.mxu0 0.0
    %v1520 = vand.u32 %v136, 4294901760
    %v1521 = vsub.f32 %v136, %v1520
    %v1522 = vand.u32 %v1521, 4294901760
    %v1523 = vsub.f32 %v1521, %v1522
    %v1524 = vand.u32 %v1523, 4294901760
    %1525 = vmatpush1.msra.mxu0 %v1524
    %1526 = vmatprep.subr.mxu0 0.0
    %v1527 = vand.u32 %v137, 4294901760
    %v1528 = vsub.f32 %v137, %v1527
    %v1529 = vand.u32 %v1528, 4294901760
    %v1530 = vsub.f32 %v1528, %v1529
    %v1531 = vand.u32 %v1530, 4294901760
    %1532 = vmatpush1.msra.mxu0 %v1531
    %1533 = vmatprep.subr.mxu0 0.0
    %v1534 = vand.u32 %v138, 4294901760
    %v1535 = vsub.f32 %v138, %v1534
    %v1536 = vand.u32 %v1535, 4294901760
    %v1537 = vsub.f32 %v1535, %v1536
    %v1538 = vand.u32 %v1537, 4294901760
    %1539 = vmatpush1.msra.mxu0 %v1538
    %v1540 = vand.u32 %v339, 4294901760
    %1541 = vmatprep.mubr.f32.mxu0 %v1540
    %v1542 = vand.u32 %v338, 4294901760
    %1543 = vmatmul.mubr.f32.gmra.mrb[0].mxu0 %v1542
    %v1544 = vpop.f32.mrb[0].mxu0
    %v1545 = vadd.f32 %v1313, %v1544
    %v1546 = vpop.f32.mrb[0].mxu0
    %1547 = vdwg.mxu0
    %1548 = vmatprep.subr.mxu0 0.0
    %v1549 = vand.u32 %v107, 4294901760
    %v1550 = vsub.f32 %v107, %v1549
    %1551 = vmatpush1.msra.mxu0 %v1550
    %1552 = vmatprep.subr.mxu0 0.0
    %v1553 = vand.u32 %v108, 4294901760
    %v1554 = vsub.f32 %v108, %v1553
    %1555 = vmatpush1.msra.mxu0 %v1554
    %1556 = vmatprep.subr.mxu0 0.0
    %v1557 = vand.u32 %v109, 4294901760
    %v1558 = vsub.f32 %v109, %v1557
    %1559 = vmatpush1.msra.mxu0 %v1558
    %1560 = vmatprep.subr.mxu0 0.0
    %v1561 = vand.u32 %v110, 4294901760
    %v1562 = vsub.f32 %v110, %v1561
    %1563 = vmatpush1.msra.mxu0 %v1562
    %1564 = vmatprep.subr.mxu0 0.0
    %v1565 = vand.u32 %v111, 4294901760
    %v1566 = vsub.f32 %v111, %v1565
    %1567 = vmatpush1.msra.mxu0 %v1566
    %1568 = vmatprep.subr.mxu0 0.0
    %v1569 = vand.u32 %v112, 4294901760
    %v1570 = vsub.f32 %v112, %v1569
    %1571 = vmatpush1.msra.mxu0 %v1570
    %1572 = vmatprep.subr.mxu0 0.0
    %v1573 = vand.u32 %v113, 4294901760
    %v1574 = vsub.f32 %v113, %v1573
    %1575 = vmatpush1.msra.mxu0 %v1574
    %1576 = vmatprep.subr.mxu0 0.0
    %v1577 = vand.u32 %v114, 4294901760
    %v1578 = vsub.f32 %v114, %v1577
    %1579 = vmatpush1.msra.mxu0 %v1578
    %1580 = vmatprep.subr.mxu0 0.0
    %v1581 = vand.u32 %v115, 4294901760
    %v1582 = vsub.f32 %v115, %v1581
    %1583 = vmatpush1.msra.mxu0 %v1582
    %1584 = vmatprep.subr.mxu0 0.0
    %v1585 = vand.u32 %v116, 4294901760
    %v1586 = vsub.f32 %v116, %v1585
    %1587 = vmatpush1.msra.mxu0 %v1586
    %1588 = vmatprep.subr.mxu0 0.0
    %v1589 = vand.u32 %v117, 4294901760
    %v1590 = vsub.f32 %v117, %v1589
    %1591 = vmatpush1.msra.mxu0 %v1590
    %1592 = vmatprep.subr.mxu0 0.0
    %v1593 = vand.u32 %v118, 4294901760
    %v1594 = vsub.f32 %v118, %v1593
    %1595 = vmatpush1.msra.mxu0 %v1594
    %1596 = vmatprep.subr.mxu0 0.0
    %v1597 = vand.u32 %v119, 4294901760
    %v1598 = vsub.f32 %v119, %v1597
    %1599 = vmatpush1.msra.mxu0 %v1598
    %1600 = vmatprep.subr.mxu0 0.0
    %v1601 = vand.u32 %v120, 4294901760
    %v1602 = vsub.f32 %v120, %v1601
    %1603 = vmatpush1.msra.mxu0 %v1602
    %1604 = vmatprep.subr.mxu0 0.0
    %v1605 = vand.u32 %v121, 4294901760
    %v1606 = vsub.f32 %v121, %v1605
    %1607 = vmatpush1.msra.mxu0 %v1606
    %1608 = vmatprep.subr.mxu0 0.0
    %v1609 = vand.u32 %v122, 4294901760
    %v1610 = vsub.f32 %v122, %v1609
    %1611 = vmatpush1.msra.mxu0 %v1610
    %1612 = vmatprep.subr.mxu0 0.0
    %v1613 = vand.u32 %v123, 4294901760
    %v1614 = vsub.f32 %v123, %v1613
    %1615 = vmatpush1.msra.mxu0 %v1614
    %1616 = vmatprep.subr.mxu0 0.0
    %v1617 = vand.u32 %v124, 4294901760
    %v1618 = vsub.f32 %v124, %v1617
    %1619 = vmatpush1.msra.mxu0 %v1618
    %1620 = vmatprep.subr.mxu0 0.0
    %v1621 = vand.u32 %v125, 4294901760
    %v1622 = vsub.f32 %v125, %v1621
    %1623 = vmatpush1.msra.mxu0 %v1622
    %1624 = vmatprep.subr.mxu0 0.0
    %v1625 = vand.u32 %v126, 4294901760
    %v1626 = vsub.f32 %v126, %v1625
    %1627 = vmatpush1.msra.mxu0 %v1626
    %1628 = vmatprep.subr.mxu0 0.0
    %v1629 = vand.u32 %v127, 4294901760
    %v1630 = vsub.f32 %v127, %v1629
    %1631 = vmatpush1.msra.mxu0 %v1630
    %1632 = vmatprep.subr.mxu0 0.0
    %v1633 = vand.u32 %v128, 4294901760
    %v1634 = vsub.f32 %v128, %v1633
    %1635 = vmatpush1.msra.mxu0 %v1634
    %1636 = vmatprep.subr.mxu0 0.0
    %v1637 = vand.u32 %v129, 4294901760
    %v1638 = vsub.f32 %v129, %v1637
    %1639 = vmatpush1.msra.mxu0 %v1638
    %1640 = vmatprep.subr.mxu0 0.0
    %v1641 = vand.u32 %v130, 4294901760
    %v1642 = vsub.f32 %v130, %v1641
    %1643 = vmatpush1.msra.mxu0 %v1642
    %1644 = vmatprep.subr.mxu0 0.0
    %v1645 = vand.u32 %v131, 4294901760
    %v1646 = vsub.f32 %v131, %v1645
    %1647 = vmatpush1.msra.mxu0 %v1646
    %1648 = vmatprep.subr.mxu0 0.0
    %v1649 = vand.u32 %v132, 4294901760
    %v1650 = vsub.f32 %v132, %v1649
    %1651 = vmatpush1.msra.mxu0 %v1650
    %1652 = vmatprep.subr.mxu0 0.0
    %v1653 = vand.u32 %v133, 4294901760
    %v1654 = vsub.f32 %v133, %v1653
    %1655 = vmatpush1.msra.mxu0 %v1654
    %1656 = vmatprep.subr.mxu0 0.0
    %v1657 = vand.u32 %v134, 4294901760
    %v1658 = vsub.f32 %v134, %v1657
    %1659 = vmatpush1.msra.mxu0 %v1658
    %1660 = vmatprep.subr.mxu0 0.0
    %v1661 = vand.u32 %v135, 4294901760
    %v1662 = vsub.f32 %v135, %v1661
    %1663 = vmatpush1.msra.mxu0 %v1662
    %1664 = vmatprep.subr.mxu0 0.0
    %v1665 = vand.u32 %v136, 4294901760
    %v1666 = vsub.f32 %v136, %v1665
    %1667 = vmatpush1.msra.mxu0 %v1666
    %1668 = vmatprep.subr.mxu0 0.0
    %v1669 = vand.u32 %v137, 4294901760
    %v1670 = vsub.f32 %v137, %v1669
    %1671 = vmatpush1.msra.mxu0 %v1670
    %1672 = vmatprep.subr.mxu0 0.0
    %v1673 = vand.u32 %v138, 4294901760
    %v1674 = vsub.f32 %v138, %v1673
    %1675 = vmatpush1.msra.mxu0 %v1674
    %v1676 = vand.u32 %v339, 4294901760
    %v1677 = vsub.f32 %v339, %v1676
    %1678 = vmatprep.mubr.f32.mxu0 %v1677
    %v1679 = vand.u32 %v338, 4294901760
    %v1680 = vsub.f32 %v338, %v1679
    %1681 = vmatmul.mubr.f32.gmra.mrb[0].mxu0 %v1680
    %v1682 = vpop.f32.mrb[0].mxu0
    %v1683 = vadd.f32 %v1545, %v1682
    %v1684 = vpop.f32.mrb[0].mxu0
    %1685 = vdwg.mxu0
    %1686 = vmatprep.subr.mxu0 0.0
    %v1687 = vand.u32 %v107, 4294901760
    %1688 = vmatpush1.msra.mxu0 %v1687
    %1689 = vmatprep.subr.mxu0 0.0
    %v1690 = vand.u32 %v108, 4294901760
    %1691 = vmatpush1.msra.mxu0 %v1690
    %1692 = vmatprep.subr.mxu0 0.0
    %v1693 = vand.u32 %v109, 4294901760
    %1694 = vmatpush1.msra.mxu0 %v1693
    %1695 = vmatprep.subr.mxu0 0.0
    %v1696 = vand.u32 %v110, 4294901760
    %1697 = vmatpush1.msra.mxu0 %v1696
    %1698 = vmatprep.subr.mxu0 0.0
    %v1699 = vand.u32 %v111, 4294901760
    %1700 = vmatpush1.msra.mxu0 %v1699
    %1701 = vmatprep.subr.mxu0 0.0
    %v1702 = vand.u32 %v112, 4294901760
    %1703 = vmatpush1.msra.mxu0 %v1702
    %1704 = vmatprep.subr.mxu0 0.0
    %v1705 = vand.u32 %v113, 4294901760
    %1706 = vmatpush1.msra.mxu0 %v1705
    %1707 = vmatprep.subr.mxu0 0.0
    %v1708 = vand.u32 %v114, 4294901760
    %1709 = vmatpush1.msra.mxu0 %v1708
    %1710 = vmatprep.subr.mxu0 0.0
    %v1711 = vand.u32 %v115, 4294901760
    %1712 = vmatpush1.msra.mxu0 %v1711
    %1713 = vmatprep.subr.mxu0 0.0
    %v1714 = vand.u32 %v116, 4294901760
    %1715 = vmatpush1.msra.mxu0 %v1714
    %1716 = vmatprep.subr.mxu0 0.0
    %v1717 = vand.u32 %v117, 4294901760
    %1718 = vmatpush1.msra.mxu0 %v1717
    %1719 = vmatprep.subr.mxu0 0.0
    %v1720 = vand.u32 %v118, 4294901760
    %1721 = vmatpush1.msra.mxu0 %v1720
    %1722 = vmatprep.subr.mxu0 0.0
    %v1723 = vand.u32 %v119, 4294901760
    %1724 = vmatpush1.msra.mxu0 %v1723
    %1725 = vmatprep.subr.mxu0 0.0
    %v1726 = vand.u32 %v120, 4294901760
    %1727 = vmatpush1.msra.mxu0 %v1726
    %1728 = vmatprep.subr.mxu0 0.0
    %v1729 = vand.u32 %v121, 4294901760
    %1730 = vmatpush1.msra.mxu0 %v1729
    %1731 = vmatprep.subr.mxu0 0.0
    %v1732 = vand.u32 %v122, 4294901760
    %1733 = vmatpush1.msra.mxu0 %v1732
    %1734 = vmatprep.subr.mxu0 0.0
    %v1735 = vand.u32 %v123, 4294901760
    %1736 = vmatpush1.msra.mxu0 %v1735
    %1737 = vmatprep.subr.mxu0 0.0
    %v1738 = vand.u32 %v124, 4294901760
    %1739 = vmatpush1.msra.mxu0 %v1738
    %1740 = vmatprep.subr.mxu0 0.0
    %v1741 = vand.u32 %v125, 4294901760
    %1742 = vmatpush1.msra.mxu0 %v1741
    %1743 = vmatprep.subr.mxu0 0.0
    %v1744 = vand.u32 %v126, 4294901760
    %1745 = vmatpush1.msra.mxu0 %v1744
    %1746 = vmatprep.subr.mxu0 0.0
    %v1747 = vand.u32 %v127, 4294901760
    %1748 = vmatpush1.msra.mxu0 %v1747
    %1749 = vmatprep.subr.mxu0 0.0
    %v1750 = vand.u32 %v128, 4294901760
    %1751 = vmatpush1.msra.mxu0 %v1750
    %1752 = vmatprep.subr.mxu0 0.0
    %v1753 = vand.u32 %v129, 4294901760
    %1754 = vmatpush1.msra.mxu0 %v1753
    %1755 = vmatprep.subr.mxu0 0.0
    %v1756 = vand.u32 %v130, 4294901760
    %1757 = vmatpush1.msra.mxu0 %v1756
    %1758 = vmatprep.subr.mxu0 0.0
    %v1759 = vand.u32 %v131, 4294901760
    %1760 = vmatpush1.msra.mxu0 %v1759
    %1761 = vmatprep.subr.mxu0 0.0
    %v1762 = vand.u32 %v132, 4294901760
    %1763 = vmatpush1.msra.mxu0 %v1762
    %1764 = vmatprep.subr.mxu0 0.0
    %v1765 = vand.u32 %v133, 4294901760
    %1766 = vmatpush1.msra.mxu0 %v1765
    %1767 = vmatprep.subr.mxu0 0.0
    %v1768 = vand.u32 %v134, 4294901760
    %1769 = vmatpush1.msra.mxu0 %v1768
    %1770 = vmatprep.subr.mxu0 0.0
    %v1771 = vand.u32 %v135, 4294901760
    %1772 = vmatpush1.msra.mxu0 %v1771
    %1773 = vmatprep.subr.mxu0 0.0
    %v1774 = vand.u32 %v136, 4294901760
    %1775 = vmatpush1.msra.mxu0 %v1774
    %1776 = vmatprep.subr.mxu0 0.0
    %v1777 = vand.u32 %v137, 4294901760
    %1778 = vmatpush1.msra.mxu0 %v1777
    %1779 = vmatprep.subr.mxu0 0.0
    %v1780 = vand.u32 %v138, 4294901760
    %1781 = vmatpush1.msra.mxu0 %v1780
    %v1782 = vand.u32 %v339, 4294901760
    %v1783 = vsub.f32 %v339, %v1782
    %v1784 = vand.u32 %v1783, 4294901760
    %1785 = vmatprep.mubr.f32.mxu0 %v1784
    %v1786 = vand.u32 %v338, 4294901760
    %v1787 = vsub.f32 %v338, %v1786
    %v1788 = vand.u32 %v1787, 4294901760
    %1789 = vmatmul.mubr.f32.gmra.mrb[0].mxu0 %v1788
    %v1790 = vpop.f32.mrb[0].mxu0
    %v1791 = vadd.f32 %v1683, %v1790
    %v1792 = vpop.f32.mrb[0].mxu0
    %1793 = vdwg.mxu0
    %1794 = vmatprep.subr.mxu0 0.0
    %v1795 = vand.u32 %v107, 4294901760
    %v1796 = vsub.f32 %v107, %v1795
    %v1797 = vand.u32 %v1796, 4294901760
    %1798 = vmatpush1.msra.mxu0 %v1797
    %1799 = vmatprep.subr.mxu0 0.0
    %v1800 = vand.u32 %v108, 4294901760
    %v1801 = vsub.f32 %v108, %v1800
    %v1802 = vand.u32 %v1801, 4294901760
    %1803 = vmatpush1.msra.mxu0 %v1802
    %1804 = vmatprep.subr.mxu0 0.0
    %v1805 = vand.u32 %v109, 4294901760
    %v1806 = vsub.f32 %v109, %v1805
    %v1807 = vand.u32 %v1806, 4294901760
    %1808 = vmatpush1.msra.mxu0 %v1807
    %1809 = vmatprep.subr.mxu0 0.0
    %v1810 = vand.u32 %v110, 4294901760
    %v1811 = vsub.f32 %v110, %v1810
    %v1812 = vand.u32 %v1811, 4294901760
    %1813 = vmatpush1.msra.mxu0 %v1812
    %1814 = vmatprep.subr.mxu0 0.0
    %v1815 = vand.u32 %v111, 4294901760
    %v1816 = vsub.f32 %v111, %v1815
    %v1817 = vand.u32 %v1816, 4294901760
    %1818 = vmatpush1.msra.mxu0 %v1817
    %1819 = vmatprep.subr.mxu0 0.0
    %v1820 = vand.u32 %v112, 4294901760
    %v1821 = vsub.f32 %v112, %v1820
    %v1822 = vand.u32 %v1821, 4294901760
    %1823 = vmatpush1.msra.mxu0 %v1822
    %1824 = vmatprep.subr.mxu0 0.0
    %v1825 = vand.u32 %v113, 4294901760
    %v1826 = vsub.f32 %v113, %v1825
    %v1827 = vand.u32 %v1826, 4294901760
    %1828 = vmatpush1.msra.mxu0 %v1827
    %1829 = vmatprep.subr.mxu0 0.0
    %v1830 = vand.u32 %v114, 4294901760
    %v1831 = vsub.f32 %v114, %v1830
    %v1832 = vand.u32 %v1831, 4294901760
    %1833 = vmatpush1.msra.mxu0 %v1832
    %1834 = vmatprep.subr.mxu0 0.0
    %v1835 = vand.u32 %v115, 4294901760
    %v1836 = vsub.f32 %v115, %v1835
    %v1837 = vand.u32 %v1836, 4294901760
    %1838 = vmatpush1.msra.mxu0 %v1837
    %1839 = vmatprep.subr.mxu0 0.0
    %v1840 = vand.u32 %v116, 4294901760
    %v1841 = vsub.f32 %v116, %v1840
    %v1842 = vand.u32 %v1841, 4294901760
    %1843 = vmatpush1.msra.mxu0 %v1842
    %1844 = vmatprep.subr.mxu0 0.0
    %v1845 = vand.u32 %v117, 4294901760
    %v1846 = vsub.f32 %v117, %v1845
    %v1847 = vand.u32 %v1846, 4294901760
    %1848 = vmatpush1.msra.mxu0 %v1847
    %1849 = vmatprep.subr.mxu0 0.0
    %v1850 = vand.u32 %v118, 4294901760
    %v1851 = vsub.f32 %v118, %v1850
    %v1852 = vand.u32 %v1851, 4294901760
    %1853 = vmatpush1.msra.mxu0 %v1852
    %1854 = vmatprep.subr.mxu0 0.0
    %v1855 = vand.u32 %v119, 4294901760
    %v1856 = vsub.f32 %v119, %v1855
    %v1857 = vand.u32 %v1856, 4294901760
    %1858 = vmatpush1.msra.mxu0 %v1857
    %1859 = vmatprep.subr.mxu0 0.0
    %v1860 = vand.u32 %v120, 4294901760
    %v1861 = vsub.f32 %v120, %v1860
    %v1862 = vand.u32 %v1861, 4294901760
    %1863 = vmatpush1.msra.mxu0 %v1862
    %1864 = vmatprep.subr.mxu0 0.0
    %v1865 = vand.u32 %v121, 4294901760
    %v1866 = vsub.f32 %v121, %v1865
    %v1867 = vand.u32 %v1866, 4294901760
    %1868 = vmatpush1.msra.mxu0 %v1867
    %1869 = vmatprep.subr.mxu0 0.0
    %v1870 = vand.u32 %v122, 4294901760
    %v1871 = vsub.f32 %v122, %v1870
    %v1872 = vand.u32 %v1871, 4294901760
    %1873 = vmatpush1.msra.mxu0 %v1872
    %1874 = vmatprep.subr.mxu0 0.0
    %v1875 = vand.u32 %v123, 4294901760
    %v1876 = vsub.f32 %v123, %v1875
    %v1877 = vand.u32 %v1876, 4294901760
    %1878 = vmatpush1.msra.mxu0 %v1877
    %1879 = vmatprep.subr.mxu0 0.0
    %v1880 = vand.u32 %v124, 4294901760
    %v1881 = vsub.f32 %v124, %v1880
    %v1882 = vand.u32 %v1881, 4294901760
    %1883 = vmatpush1.msra.mxu0 %v1882
    %1884 = vmatprep.subr.mxu0 0.0
    %v1885 = vand.u32 %v125, 4294901760
    %v1886 = vsub.f32 %v125, %v1885
    %v1887 = vand.u32 %v1886, 4294901760
    %1888 = vmatpush1.msra.mxu0 %v1887
    %1889 = vmatprep.subr.mxu0 0.0
    %v1890 = vand.u32 %v126, 4294901760
    %v1891 = vsub.f32 %v126, %v1890
    %v1892 = vand.u32 %v1891, 4294901760
    %1893 = vmatpush1.msra.mxu0 %v1892
    %1894 = vmatprep.subr.mxu0 0.0
    %v1895 = vand.u32 %v127, 4294901760
    %v1896 = vsub.f32 %v127, %v1895
    %v1897 = vand.u32 %v1896, 4294901760
    %1898 = vmatpush1.msra.mxu0 %v1897
    %1899 = vmatprep.subr.mxu0 0.0
    %v1900 = vand.u32 %v128, 4294901760
    %v1901 = vsub.f32 %v128, %v1900
    %v1902 = vand.u32 %v1901, 4294901760
    %1903 = vmatpush1.msra.mxu0 %v1902
    %1904 = vmatprep.subr.mxu0 0.0
    %v1905 = vand.u32 %v129, 4294901760
    %v1906 = vsub.f32 %v129, %v1905
    %v1907 = vand.u32 %v1906, 4294901760
    %1908 = vmatpush1.msra.mxu0 %v1907
    %1909 = vmatprep.subr.mxu0 0.0
    %v1910 = vand.u32 %v130, 4294901760
    %v1911 = vsub.f32 %v130, %v1910
    %v1912 = vand.u32 %v1911, 4294901760
    %1913 = vmatpush1.msra.mxu0 %v1912
    %1914 = vmatprep.subr.mxu0 0.0
    %v1915 = vand.u32 %v131, 4294901760
    %v1916 = vsub.f32 %v131, %v1915
    %v1917 = vand.u32 %v1916, 4294901760
    %1918 = vmatpush1.msra.mxu0 %v1917
    %1919 = vmatprep.subr.mxu0 0.0
    %v1920 = vand.u32 %v132, 4294901760
    %v1921 = vsub.f32 %v132, %v1920
    %v1922 = vand.u32 %v1921, 4294901760
    %1923 = vmatpush1.msra.mxu0 %v1922
    %1924 = vmatprep.subr.mxu0 0.0
    %v1925 = vand.u32 %v133, 4294901760
    %v1926 = vsub.f32 %v133, %v1925
    %v1927 = vand.u32 %v1926, 4294901760
    %1928 = vmatpush1.msra.mxu0 %v1927
    %1929 = vmatprep.subr.mxu0 0.0
    %v1930 = vand.u32 %v134, 4294901760
    %v1931 = vsub.f32 %v134, %v1930
    %v1932 = vand.u32 %v1931, 4294901760
    %1933 = vmatpush1.msra.mxu0 %v1932
    %1934 = vmatprep.subr.mxu0 0.0
    %v1935 = vand.u32 %v135, 4294901760
    %v1936 = vsub.f32 %v135, %v1935
    %v1937 = vand.u32 %v1936, 4294901760
    %1938 = vmatpush1.msra.mxu0 %v1937
    %1939 = vmatprep.subr.mxu0 0.0
    %v1940 = vand.u32 %v136, 4294901760
    %v1941 = vsub.f32 %v136, %v1940
    %v1942 = vand.u32 %v1941, 4294901760
    %1943 = vmatpush1.msra.mxu0 %v1942
    %1944 = vmatprep.subr.mxu0 0.0
    %v1945 = vand.u32 %v137, 4294901760
    %v1946 = vsub.f32 %v137, %v1945
    %v1947 = vand.u32 %v1946, 4294901760
    %1948 = vmatpush1.msra.mxu0 %v1947
    %1949 = vmatprep.subr.mxu0 0.0
    %v1950 = vand.u32 %v138, 4294901760
    %v1951 = vsub.f32 %v138, %v1950
    %v1952 = vand.u32 %v1951, 4294901760
    %1953 = vmatpush1.msra.mxu0 %v1952
    %v1954 = vand.u32 %v339, 4294901760
    %1955 = vmatprep.mubr.f32.mxu0 %v1954
    %v1956 = vand.u32 %v338, 4294901760
    %1957 = vmatmul.mubr.f32.gmra.mrb[0].mxu0 %v1956
    %v1958 = vpop.f32.mrb[0].mxu0
    %v1959 = vadd.f32 %v1791, %v1958
    %v1960 = vpop.f32.mrb[0].mxu0
    %1961 = vdwg.mxu0
    %1962 = vmatprep.subr.mxu0 0.0
    %v1963 = vand.u32 %v107, 4294901760
    %1964 = vmatpush1.msra.mxu0 %v1963
    %1965 = vmatprep.subr.mxu0 0.0
    %v1966 = vand.u32 %v108, 4294901760
    %1967 = vmatpush1.msra.mxu0 %v1966
    %1968 = vmatprep.subr.mxu0 0.0
    %v1969 = vand.u32 %v109, 4294901760
    %1970 = vmatpush1.msra.mxu0 %v1969
    %1971 = vmatprep.subr.mxu0 0.0
    %v1972 = vand.u32 %v110, 4294901760
    %1973 = vmatpush1.msra.mxu0 %v1972
    %1974 = vmatprep.subr.mxu0 0.0
    %v1975 = vand.u32 %v111, 4294901760
    %1976 = vmatpush1.msra.mxu0 %v1975
    %1977 = vmatprep.subr.mxu0 0.0
    %v1978 = vand.u32 %v112, 4294901760
    %1979 = vmatpush1.msra.mxu0 %v1978
    %1980 = vmatprep.subr.mxu0 0.0
    %v1981 = vand.u32 %v113, 4294901760
    %1982 = vmatpush1.msra.mxu0 %v1981
    %1983 = vmatprep.subr.mxu0 0.0
    %v1984 = vand.u32 %v114, 4294901760
    %1985 = vmatpush1.msra.mxu0 %v1984
    %1986 = vmatprep.subr.mxu0 0.0
    %v1987 = vand.u32 %v115, 4294901760
    %1988 = vmatpush1.msra.mxu0 %v1987
    %1989 = vmatprep.subr.mxu0 0.0
    %v1990 = vand.u32 %v116, 4294901760
    %1991 = vmatpush1.msra.mxu0 %v1990
    %1992 = vmatprep.subr.mxu0 0.0
    %v1993 = vand.u32 %v117, 4294901760
    %1994 = vmatpush1.msra.mxu0 %v1993
    %1995 = vmatprep.subr.mxu0 0.0
    %v1996 = vand.u32 %v118, 4294901760
    %1997 = vmatpush1.msra.mxu0 %v1996
    %1998 = vmatprep.subr.mxu0 0.0
    %v1999 = vand.u32 %v119, 4294901760
    %2000 = vmatpush1.msra.mxu0 %v1999
    %2001 = vmatprep.subr.mxu0 0.0
    %v2002 = vand.u32 %v120, 4294901760
    %2003 = vmatpush1.msra.mxu0 %v2002
    %2004 = vmatprep.subr.mxu0 0.0
    %v2005 = vand.u32 %v121, 4294901760
    %2006 = vmatpush1.msra.mxu0 %v2005
    %2007 = vmatprep.subr.mxu0 0.0
    %v2008 = vand.u32 %v122, 4294901760
    %2009 = vmatpush1.msra.mxu0 %v2008
    %2010 = vmatprep.subr.mxu0 0.0
    %v2011 = vand.u32 %v123, 4294901760
    %2012 = vmatpush1.msra.mxu0 %v2011
    %2013 = vmatprep.subr.mxu0 0.0
    %v2014 = vand.u32 %v124, 4294901760
    %2015 = vmatpush1.msra.mxu0 %v2014
    %2016 = vmatprep.subr.mxu0 0.0
    %v2017 = vand.u32 %v125, 4294901760
    %2018 = vmatpush1.msra.mxu0 %v2017
    %2019 = vmatprep.subr.mxu0 0.0
    %v2020 = vand.u32 %v126, 4294901760
    %2021 = vmatpush1.msra.mxu0 %v2020
    %2022 = vmatprep.subr.mxu0 0.0
    %v2023 = vand.u32 %v127, 4294901760
    %2024 = vmatpush1.msra.mxu0 %v2023
    %2025 = vmatprep.subr.mxu0 0.0
    %v2026 = vand.u32 %v128, 4294901760
    %2027 = vmatpush1.msra.mxu0 %v2026
    %2028 = vmatprep.subr.mxu0 0.0
    %v2029 = vand.u32 %v129, 4294901760
    %2030 = vmatpush1.msra.mxu0 %v2029
    %2031 = vmatprep.subr.mxu0 0.0
    %v2032 = vand.u32 %v130, 4294901760
    %2033 = vmatpush1.msra.mxu0 %v2032
    %2034 = vmatprep.subr.mxu0 0.0
    %v2035 = vand.u32 %v131, 4294901760
    %2036 = vmatpush1.msra.mxu0 %v2035
    %2037 = vmatprep.subr.mxu0 0.0
    %v2038 = vand.u32 %v132, 4294901760
    %2039 = vmatpush1.msra.mxu0 %v2038
    %2040 = vmatprep.subr.mxu0 0.0
    %v2041 = vand.u32 %v133, 4294901760
    %2042 = vmatpush1.msra.mxu0 %v2041
    %2043 = vmatprep.subr.mxu0 0.0
    %v2044 = vand.u32 %v134, 4294901760
    %2045 = vmatpush1.msra.mxu0 %v2044
    %2046 = vmatprep.subr.mxu0 0.0
    %v2047 = vand.u32 %v135, 4294901760
    %2048 = vmatpush1.msra.mxu0 %v2047
    %2049 = vmatprep.subr.mxu0 0.0
    %v2050 = vand.u32 %v136, 4294901760
    %2051 = vmatpush1.msra.mxu0 %v2050
    %2052 = vmatprep.subr.mxu0 0.0
    %v2053 = vand.u32 %v137, 4294901760
    %2054 = vmatpush1.msra.mxu0 %v2053
    %2055 = vmatprep.subr.mxu0 0.0
    %v2056 = vand.u32 %v138, 4294901760
    %2057 = vmatpush1.msra.mxu0 %v2056
    %v2058 = vand.u32 %v339, 4294901760
    %2059 = vmatprep.mubr.f32.mxu0 %v2058
    %v2060 = vand.u32 %v338, 4294901760
    %2061 = vmatmul.mubr.f32.gmra.mrb[0].mxu0 %v2060
    %v2062 = vpop.f32.mrb[0].mxu0
    %v2063 = vadd.f32 %v1959, %v2062
    %v2064 = vpop.f32.mrb[0].mxu0
    %2065 = vdwg.mxu0
    %2066 = vmatprep.subr.mxu0 0.0
    %v2067 = vand.u32 %v139, 4294901760
    %2068 = vmatpush1.msra.mxu0 %v2067
    %2069 = vmatprep.subr.mxu0 0.0
    %v2070 = vand.u32 %v140, 4294901760
    %2071 = vmatpush1.msra.mxu0 %v2070
    %2072 = vmatprep.subr.mxu0 0.0
    %v2073 = vand.u32 %v141, 4294901760
    %2074 = vmatpush1.msra.mxu0 %v2073
    %2075 = vmatprep.subr.mxu0 0.0
    %v2076 = vand.u32 %v142, 4294901760
    %2077 = vmatpush1.msra.mxu0 %v2076
    %2078 = vmatprep.subr.mxu0 0.0
    %v2079 = vand.u32 %v143, 4294901760
    %2080 = vmatpush1.msra.mxu0 %v2079
    %2081 = vmatprep.subr.mxu0 0.0
    %v2082 = vand.u32 %v144, 4294901760
    %2083 = vmatpush1.msra.mxu0 %v2082
    %2084 = vmatprep.subr.mxu0 0.0
    %v2085 = vand.u32 %v145, 4294901760
    %2086 = vmatpush1.msra.mxu0 %v2085
    %2087 = vmatprep.subr.mxu0 0.0
    %v2088 = vand.u32 %v146, 4294901760
    %2089 = vmatpush1.msra.mxu0 %v2088
    %2090 = vmatprep.subr.mxu0 0.0
    %v2091 = vand.u32 %v147, 4294901760
    %2092 = vmatpush1.msra.mxu0 %v2091
    %2093 = vmatprep.subr.mxu0 0.0
    %v2094 = vand.u32 %v148, 4294901760
    %2095 = vmatpush1.msra.mxu0 %v2094
    %2096 = vmatprep.subr.mxu0 0.0
    %v2097 = vand.u32 %v149, 4294901760
    %2098 = vmatpush1.msra.mxu0 %v2097
    %2099 = vmatprep.subr.mxu0 0.0
    %v2100 = vand.u32 %v150, 4294901760
    %2101 = vmatpush1.msra.mxu0 %v2100
    %2102 = vmatprep.subr.mxu0 0.0
    %v2103 = vand.u32 %v151, 4294901760
    %2104 = vmatpush1.msra.mxu0 %v2103
    %2105 = vmatprep.subr.mxu0 0.0
    %v2106 = vand.u32 %v152, 4294901760
    %2107 = vmatpush1.msra.mxu0 %v2106
    %2108 = vmatprep.subr.mxu0 0.0
    %v2109 = vand.u32 %v153, 4294901760
    %2110 = vmatpush1.msra.mxu0 %v2109
    %2111 = vmatprep.subr.mxu0 0.0
    %v2112 = vand.u32 %v154, 4294901760
    %2113 = vmatpush1.msra.mxu0 %v2112
    %2114 = vmatprep.subr.mxu0 0.0
    %v2115 = vand.u32 %v155, 4294901760
    %2116 = vmatpush1.msra.mxu0 %v2115
    %2117 = vmatprep.subr.mxu0 0.0
    %v2118 = vand.u32 %v156, 4294901760
    %2119 = vmatpush1.msra.mxu0 %v2118
    %2120 = vmatprep.subr.mxu0 0.0
    %v2121 = vand.u32 %v157, 4294901760
    %2122 = vmatpush1.msra.mxu0 %v2121
    %2123 = vmatprep.subr.mxu0 0.0
    %v2124 = vand.u32 %v158, 4294901760
    %2125 = vmatpush1.msra.mxu0 %v2124
    %2126 = vmatprep.subr.mxu0 0.0
    %v2127 = vand.u32 %v159, 4294901760
    %2128 = vmatpush1.msra.mxu0 %v2127
    %2129 = vmatprep.subr.mxu0 0.0
    %v2130 = vand.u32 %v160, 4294901760
    %2131 = vmatpush1.msra.mxu0 %v2130
    %2132 = vmatprep.subr.mxu0 0.0
    %v2133 = vand.u32 %v161, 4294901760
    %2134 = vmatpush1.msra.mxu0 %v2133
    %2135 = vmatprep.subr.mxu0 0.0
    %v2136 = vand.u32 %v162, 4294901760
    %2137 = vmatpush1.msra.mxu0 %v2136
    %2138 = vmatprep.subr.mxu0 0.0
    %v2139 = vand.u32 %v163, 4294901760
    %2140 = vmatpush1.msra.mxu0 %v2139
    %2141 = vmatprep.subr.mxu0 0.0
    %v2142 = vand.u32 %v164, 4294901760
    %2143 = vmatpush1.msra.mxu0 %v2142
    %2144 = vmatprep.subr.mxu0 0.0
    %v2145 = vand.u32 %v165, 4294901760
    %2146 = vmatpush1.msra.mxu0 %v2145
    %2147 = vmatprep.subr.mxu0 0.0
    %v2148 = vand.u32 %v166, 4294901760
    %2149 = vmatpush1.msra.mxu0 %v2148
    %2150 = vmatprep.subr.mxu0 0.0
    %v2151 = vand.u32 %v167, 4294901760
    %2152 = vmatpush1.msra.mxu0 %v2151
    %2153 = vmatprep.subr.mxu0 0.0
    %v2154 = vand.u32 %v168, 4294901760
    %2155 = vmatpush1.msra.mxu0 %v2154
    %2156 = vmatprep.subr.mxu0 0.0
    %v2157 = vand.u32 %v169, 4294901760
    %2158 = vmatpush1.msra.mxu0 %v2157
    %2159 = vmatprep.subr.mxu0 0.0
    %v2160 = vand.u32 %v170, 4294901760
    %2161 = vmatpush1.msra.mxu0 %v2160
    %v2162 = vand.u32 %v341, 4294901760
    %v2163 = vsub.f32 %v341, %v2162
    %v2164 = vand.u32 %v2163, 4294901760
    %v2165 = vsub.f32 %v2163, %v2164
    %v2166 = vand.u32 %v2165, 4294901760
    %2167 = vmatprep.mubr.f32.mxu0 %v2166
    %v2168 = vand.u32 %v340, 4294901760
    %v2169 = vsub.f32 %v340, %v2168
    %v2170 = vand.u32 %v2169, 4294901760
    %v2171 = vsub.f32 %v2169, %v2170
    %v2172 = vand.u32 %v2171, 4294901760
    %2173 = vmatmul.mubr.f32.gmra.mrb[0].mxu0 %v2172
    %v2174 = vpop.f32.mrb[0].mxu0
    %v2175 = vadd.f32 %v2063, %v2174
    %v2176 = vpop.f32.mrb[0].mxu0
    %2177 = vdwg.mxu0
    %2178 = vmatprep.subr.mxu0 0.0
    %v2179 = vand.u32 %v139, 4294901760
    %v2180 = vsub.f32 %v139, %v2179
    %v2181 = vand.u32 %v2180, 4294901760
    %v2182 = vsub.f32 %v2180, %v2181
    %v2183 = vand.u32 %v2182, 4294901760
    %2184 = vmatpush1.msra.mxu0 %v2183
    %2185 = vmatprep.subr.mxu0 0.0
    %v2186 = vand.u32 %v140, 4294901760
    %v2187 = vsub.f32 %v140, %v2186
    %v2188 = vand.u32 %v2187, 4294901760
    %v2189 = vsub.f32 %v2187, %v2188
    %v2190 = vand.u32 %v2189, 4294901760
    %2191 = vmatpush1.msra.mxu0 %v2190
    %2192 = vmatprep.subr.mxu0 0.0
    %v2193 = vand.u32 %v141, 4294901760
    %v2194 = vsub.f32 %v141, %v2193
    %v2195 = vand.u32 %v2194, 4294901760
    %v2196 = vsub.f32 %v2194, %v2195
    %v2197 = vand.u32 %v2196, 4294901760
    %2198 = vmatpush1.msra.mxu0 %v2197
    %2199 = vmatprep.subr.mxu0 0.0
    %v2200 = vand.u32 %v142, 4294901760
    %v2201 = vsub.f32 %v142, %v2200
    %v2202 = vand.u32 %v2201, 4294901760
    %v2203 = vsub.f32 %v2201, %v2202
    %v2204 = vand.u32 %v2203, 4294901760
    %2205 = vmatpush1.msra.mxu0 %v2204
    %2206 = vmatprep.subr.mxu0 0.0
    %v2207 = vand.u32 %v143, 4294901760
    %v2208 = vsub.f32 %v143, %v2207
    %v2209 = vand.u32 %v2208, 4294901760
    %v2210 = vsub.f32 %v2208, %v2209
    %v2211 = vand.u32 %v2210, 4294901760
    %2212 = vmatpush1.msra.mxu0 %v2211
    %2213 = vmatprep.subr.mxu0 0.0
    %v2214 = vand.u32 %v144, 4294901760
    %v2215 = vsub.f32 %v144, %v2214
    %v2216 = vand.u32 %v2215, 4294901760
    %v2217 = vsub.f32 %v2215, %v2216
    %v2218 = vand.u32 %v2217, 4294901760
    %2219 = vmatpush1.msra.mxu0 %v2218
    %2220 = vmatprep.subr.mxu0 0.0
    %v2221 = vand.u32 %v145, 4294901760
    %v2222 = vsub.f32 %v145, %v2221
    %v2223 = vand.u32 %v2222, 4294901760
    %v2224 = vsub.f32 %v2222, %v2223
    %v2225 = vand.u32 %v2224, 4294901760
    %2226 = vmatpush1.msra.mxu0 %v2225
    %2227 = vmatprep.subr.mxu0 0.0
    %v2228 = vand.u32 %v146, 4294901760
    %v2229 = vsub.f32 %v146, %v2228
    %v2230 = vand.u32 %v2229, 4294901760
    %v2231 = vsub.f32 %v2229, %v2230
    %v2232 = vand.u32 %v2231, 4294901760
    %2233 = vmatpush1.msra.mxu0 %v2232
    %2234 = vmatprep.subr.mxu0 0.0
    %v2235 = vand.u32 %v147, 4294901760
    %v2236 = vsub.f32 %v147, %v2235
    %v2237 = vand.u32 %v2236, 4294901760
    %v2238 = vsub.f32 %v2236, %v2237
    %v2239 = vand.u32 %v2238, 4294901760
    %2240 = vmatpush1.msra.mxu0 %v2239
    %2241 = vmatprep.subr.mxu0 0.0
    %v2242 = vand.u32 %v148, 4294901760
    %v2243 = vsub.f32 %v148, %v2242
    %v2244 = vand.u32 %v2243, 4294901760
    %v2245 = vsub.f32 %v2243, %v2244
    %v2246 = vand.u32 %v2245, 4294901760
    %2247 = vmatpush1.msra.mxu0 %v2246
    %2248 = vmatprep.subr.mxu0 0.0
    %v2249 = vand.u32 %v149, 4294901760
    %v2250 = vsub.f32 %v149, %v2249
    %v2251 = vand.u32 %v2250, 4294901760
    %v2252 = vsub.f32 %v2250, %v2251
    %v2253 = vand.u32 %v2252, 4294901760
    %2254 = vmatpush1.msra.mxu0 %v2253
    %2255 = vmatprep.subr.mxu0 0.0
    %v2256 = vand.u32 %v150, 4294901760
    %v2257 = vsub.f32 %v150, %v2256
    %v2258 = vand.u32 %v2257, 4294901760
    %v2259 = vsub.f32 %v2257, %v2258
    %v2260 = vand.u32 %v2259, 4294901760
    %2261 = vmatpush1.msra.mxu0 %v2260
    %2262 = vmatprep.subr.mxu0 0.0
    %v2263 = vand.u32 %v151, 4294901760
    %v2264 = vsub.f32 %v151, %v2263
    %v2265 = vand.u32 %v2264, 4294901760
    %v2266 = vsub.f32 %v2264, %v2265
    %v2267 = vand.u32 %v2266, 4294901760
    %2268 = vmatpush1.msra.mxu0 %v2267
    %2269 = vmatprep.subr.mxu0 0.0
    %v2270 = vand.u32 %v152, 4294901760
    %v2271 = vsub.f32 %v152, %v2270
    %v2272 = vand.u32 %v2271, 4294901760
    %v2273 = vsub.f32 %v2271, %v2272
    %v2274 = vand.u32 %v2273, 4294901760
    %2275 = vmatpush1.msra.mxu0 %v2274
    %2276 = vmatprep.subr.mxu0 0.0
    %v2277 = vand.u32 %v153, 4294901760
    %v2278 = vsub.f32 %v153, %v2277
    %v2279 = vand.u32 %v2278, 4294901760
    %v2280 = vsub.f32 %v2278, %v2279
    %v2281 = vand.u32 %v2280, 4294901760
    %2282 = vmatpush1.msra.mxu0 %v2281
    %2283 = vmatprep.subr.mxu0 0.0
    %v2284 = vand.u32 %v154, 4294901760
    %v2285 = vsub.f32 %v154, %v2284
    %v2286 = vand.u32 %v2285, 4294901760
    %v2287 = vsub.f32 %v2285, %v2286
    %v2288 = vand.u32 %v2287, 4294901760
    %2289 = vmatpush1.msra.mxu0 %v2288
    %2290 = vmatprep.subr.mxu0 0.0
    %v2291 = vand.u32 %v155, 4294901760
    %v2292 = vsub.f32 %v155, %v2291
    %v2293 = vand.u32 %v2292, 4294901760
    %v2294 = vsub.f32 %v2292, %v2293
    %v2295 = vand.u32 %v2294, 4294901760
    %2296 = vmatpush1.msra.mxu0 %v2295
    %2297 = vmatprep.subr.mxu0 0.0
    %v2298 = vand.u32 %v156, 4294901760
    %v2299 = vsub.f32 %v156, %v2298
    %v2300 = vand.u32 %v2299, 4294901760
    %v2301 = vsub.f32 %v2299, %v2300
    %v2302 = vand.u32 %v2301, 4294901760
    %2303 = vmatpush1.msra.mxu0 %v2302
    %2304 = vmatprep.subr.mxu0 0.0
    %v2305 = vand.u32 %v157, 4294901760
    %v2306 = vsub.f32 %v157, %v2305
    %v2307 = vand.u32 %v2306, 4294901760
    %v2308 = vsub.f32 %v2306, %v2307
    %v2309 = vand.u32 %v2308, 4294901760
    %2310 = vmatpush1.msra.mxu0 %v2309
    %2311 = vmatprep.subr.mxu0 0.0
    %v2312 = vand.u32 %v158, 4294901760
    %v2313 = vsub.f32 %v158, %v2312
    %v2314 = vand.u32 %v2313, 4294901760
    %v2315 = vsub.f32 %v2313, %v2314
    %v2316 = vand.u32 %v2315, 4294901760
    %2317 = vmatpush1.msra.mxu0 %v2316
    %2318 = vmatprep.subr.mxu0 0.0
    %v2319 = vand.u32 %v159, 4294901760
    %v2320 = vsub.f32 %v159, %v2319
    %v2321 = vand.u32 %v2320, 4294901760
    %v2322 = vsub.f32 %v2320, %v2321
    %v2323 = vand.u32 %v2322, 4294901760
    %2324 = vmatpush1.msra.mxu0 %v2323
    %2325 = vmatprep.subr.mxu0 0.0
    %v2326 = vand.u32 %v160, 4294901760
    %v2327 = vsub.f32 %v160, %v2326
    %v2328 = vand.u32 %v2327, 4294901760
    %v2329 = vsub.f32 %v2327, %v2328
    %v2330 = vand.u32 %v2329, 4294901760
    %2331 = vmatpush1.msra.mxu0 %v2330
    %2332 = vmatprep.subr.mxu0 0.0
    %v2333 = vand.u32 %v161, 4294901760
    %v2334 = vsub.f32 %v161, %v2333
    %v2335 = vand.u32 %v2334, 4294901760
    %v2336 = vsub.f32 %v2334, %v2335
    %v2337 = vand.u32 %v2336, 4294901760
    %2338 = vmatpush1.msra.mxu0 %v2337
    %2339 = vmatprep.subr.mxu0 0.0
    %v2340 = vand.u32 %v162, 4294901760
    %v2341 = vsub.f32 %v162, %v2340
    %v2342 = vand.u32 %v2341, 4294901760
    %v2343 = vsub.f32 %v2341, %v2342
    %v2344 = vand.u32 %v2343, 4294901760
    %2345 = vmatpush1.msra.mxu0 %v2344
    %2346 = vmatprep.subr.mxu0 0.0
    %v2347 = vand.u32 %v163, 4294901760
    %v2348 = vsub.f32 %v163, %v2347
    %v2349 = vand.u32 %v2348, 4294901760
    %v2350 = vsub.f32 %v2348, %v2349
    %v2351 = vand.u32 %v2350, 4294901760
    %2352 = vmatpush1.msra.mxu0 %v2351
    %2353 = vmatprep.subr.mxu0 0.0
    %v2354 = vand.u32 %v164, 4294901760
    %v2355 = vsub.f32 %v164, %v2354
    %v2356 = vand.u32 %v2355, 4294901760
    %v2357 = vsub.f32 %v2355, %v2356
    %v2358 = vand.u32 %v2357, 4294901760
    %2359 = vmatpush1.msra.mxu0 %v2358
    %2360 = vmatprep.subr.mxu0 0.0
    %v2361 = vand.u32 %v165, 4294901760
    %v2362 = vsub.f32 %v165, %v2361
    %v2363 = vand.u32 %v2362, 4294901760
    %v2364 = vsub.f32 %v2362, %v2363
    %v2365 = vand.u32 %v2364, 4294901760
    %2366 = vmatpush1.msra.mxu0 %v2365
    %2367 = vmatprep.subr.mxu0 0.0
    %v2368 = vand.u32 %v166, 4294901760
    %v2369 = vsub.f32 %v166, %v2368
    %v2370 = vand.u32 %v2369, 4294901760
    %v2371 = vsub.f32 %v2369, %v2370
    %v2372 = vand.u32 %v2371, 4294901760
    %2373 = vmatpush1.msra.mxu0 %v2372
    %2374 = vmatprep.subr.mxu0 0.0
    %v2375 = vand.u32 %v167, 4294901760
    %v2376 = vsub.f32 %v167, %v2375
    %v2377 = vand.u32 %v2376, 4294901760
    %v2378 = vsub.f32 %v2376, %v2377
    %v2379 = vand.u32 %v2378, 4294901760
    %2380 = vmatpush1.msra.mxu0 %v2379
    %2381 = vmatprep.subr.mxu0 0.0
    %v2382 = vand.u32 %v168, 4294901760
    %v2383 = vsub.f32 %v168, %v2382
    %v2384 = vand.u32 %v2383, 4294901760
    %v2385 = vsub.f32 %v2383, %v2384
    %v2386 = vand.u32 %v2385, 4294901760
    %2387 = vmatpush1.msra.mxu0 %v2386
    %2388 = vmatprep.subr.mxu0 0.0
    %v2389 = vand.u32 %v169, 4294901760
    %v2390 = vsub.f32 %v169, %v2389
    %v2391 = vand.u32 %v2390, 4294901760
    %v2392 = vsub.f32 %v2390, %v2391
    %v2393 = vand.u32 %v2392, 4294901760
    %2394 = vmatpush1.msra.mxu0 %v2393
    %2395 = vmatprep.subr.mxu0 0.0
    %v2396 = vand.u32 %v170, 4294901760
    %v2397 = vsub.f32 %v170, %v2396
    %v2398 = vand.u32 %v2397, 4294901760
    %v2399 = vsub.f32 %v2397, %v2398
    %v2400 = vand.u32 %v2399, 4294901760
    %2401 = vmatpush1.msra.mxu0 %v2400
    %v2402 = vand.u32 %v341, 4294901760
    %2403 = vmatprep.mubr.f32.mxu0 %v2402
    %v2404 = vand.u32 %v340, 4294901760
    %2405 = vmatmul.mubr.f32.gmra.mrb[0].mxu0 %v2404
    %v2406 = vpop.f32.mrb[0].mxu0
    %v2407 = vadd.f32 %v2175, %v2406
    %v2408 = vpop.f32.mrb[0].mxu0
    %2409 = vdwg.mxu0
    %2410 = vmatprep.subr.mxu0 0.0
    %v2411 = vand.u32 %v139, 4294901760
    %v2412 = vsub.f32 %v139, %v2411
    %2413 = vmatpush1.msra.mxu0 %v2412
    %2414 = vmatprep.subr.mxu0 0.0
    %v2415 = vand.u32 %v140, 4294901760
    %v2416 = vsub.f32 %v140, %v2415
    %2417 = vmatpush1.msra.mxu0 %v2416
    %2418 = vmatprep.subr.mxu0 0.0
    %v2419 = vand.u32 %v141, 4294901760
    %v2420 = vsub.f32 %v141, %v2419
    %2421 = vmatpush1.msra.mxu0 %v2420
    %2422 = vmatprep.subr.mxu0 0.0
    %v2423 = vand.u32 %v142, 4294901760
    %v2424 = vsub.f32 %v142, %v2423
    %2425 = vmatpush1.msra.mxu0 %v2424
    %2426 = vmatprep.subr.mxu0 0.0
    %v2427 = vand.u32 %v143, 4294901760
    %v2428 = vsub.f32 %v143, %v2427
    %2429 = vmatpush1.msra.mxu0 %v2428
    %2430 = vmatprep.subr.mxu0 0.0
    %v2431 = vand.u32 %v144, 4294901760
    %v2432 = vsub.f32 %v144, %v2431
    %2433 = vmatpush1.msra.mxu0 %v2432
    %2434 = vmatprep.subr.mxu0 0.0
    %v2435 = vand.u32 %v145, 4294901760
    %v2436 = vsub.f32 %v145, %v2435
    %2437 = vmatpush1.msra.mxu0 %v2436
    %2438 = vmatprep.subr.mxu0 0.0
    %v2439 = vand.u32 %v146, 4294901760
    %v2440 = vsub.f32 %v146, %v2439
    %2441 = vmatpush1.msra.mxu0 %v2440
    %2442 = vmatprep.subr.mxu0 0.0
    %v2443 = vand.u32 %v147, 4294901760
    %v2444 = vsub.f32 %v147, %v2443
    %2445 = vmatpush1.msra.mxu0 %v2444
    %2446 = vmatprep.subr.mxu0 0.0
    %v2447 = vand.u32 %v148, 4294901760
    %v2448 = vsub.f32 %v148, %v2447
    %2449 = vmatpush1.msra.mxu0 %v2448
    %2450 = vmatprep.subr.mxu0 0.0
    %v2451 = vand.u32 %v149, 4294901760
    %v2452 = vsub.f32 %v149, %v2451
    %2453 = vmatpush1.msra.mxu0 %v2452
    %2454 = vmatprep.subr.mxu0 0.0
    %v2455 = vand.u32 %v150, 4294901760
    %v2456 = vsub.f32 %v150, %v2455
    %2457 = vmatpush1.msra.mxu0 %v2456
    %2458 = vmatprep.subr.mxu0 0.0
    %v2459 = vand.u32 %v151, 4294901760
    %v2460 = vsub.f32 %v151, %v2459
    %2461 = vmatpush1.msra.mxu0 %v2460
    %2462 = vmatprep.subr.mxu0 0.0
    %v2463 = vand.u32 %v152, 4294901760
    %v2464 = vsub.f32 %v152, %v2463
    %2465 = vmatpush1.msra.mxu0 %v2464
    %2466 = vmatprep.subr.mxu0 0.0
    %v2467 = vand.u32 %v153, 4294901760
    %v2468 = vsub.f32 %v153, %v2467
    %2469 = vmatpush1.msra.mxu0 %v2468
    %2470 = vmatprep.subr.mxu0 0.0
    %v2471 = vand.u32 %v154, 4294901760
    %v2472 = vsub.f32 %v154, %v2471
    %2473 = vmatpush1.msra.mxu0 %v2472
    %2474 = vmatprep.subr.mxu0 0.0
    %v2475 = vand.u32 %v155, 4294901760
    %v2476 = vsub.f32 %v155, %v2475
    %2477 = vmatpush1.msra.mxu0 %v2476
    %2478 = vmatprep.subr.mxu0 0.0
    %v2479 = vand.u32 %v156, 4294901760
    %v2480 = vsub.f32 %v156, %v2479
    %2481 = vmatpush1.msra.mxu0 %v2480
    %2482 = vmatprep.subr.mxu0 0.0
    %v2483 = vand.u32 %v157, 4294901760
    %v2484 = vsub.f32 %v157, %v2483
    %2485 = vmatpush1.msra.mxu0 %v2484
    %2486 = vmatprep.subr.mxu0 0.0
    %v2487 = vand.u32 %v158, 4294901760
    %v2488 = vsub.f32 %v158, %v2487
    %2489 = vmatpush1.msra.mxu0 %v2488
    %2490 = vmatprep.subr.mxu0 0.0
    %v2491 = vand.u32 %v159, 4294901760
    %v2492 = vsub.f32 %v159, %v2491
    %2493 = vmatpush1.msra.mxu0 %v2492
    %2494 = vmatprep.subr.mxu0 0.0
    %v2495 = vand.u32 %v160, 4294901760
    %v2496 = vsub.f32 %v160, %v2495
    %2497 = vmatpush1.msra.mxu0 %v2496
    %2498 = vmatprep.subr.mxu0 0.0
    %v2499 = vand.u32 %v161, 4294901760
    %v2500 = vsub.f32 %v161, %v2499
    %2501 = vmatpush1.msra.mxu0 %v2500
    %2502 = vmatprep.subr.mxu0 0.0
    %v2503 = vand.u32 %v162, 4294901760
    %v2504 = vsub.f32 %v162, %v2503
    %2505 = vmatpush1.msra.mxu0 %v2504
    %2506 = vmatprep.subr.mxu0 0.0
    %v2507 = vand.u32 %v163, 4294901760
    %v2508 = vsub.f32 %v163, %v2507
    %2509 = vmatpush1.msra.mxu0 %v2508
    %2510 = vmatprep.subr.mxu0 0.0
    %v2511 = vand.u32 %v164, 4294901760
    %v2512 = vsub.f32 %v164, %v2511
    %2513 = vmatpush1.msra.mxu0 %v2512
    %2514 = vmatprep.subr.mxu0 0.0
    %v2515 = vand.u32 %v165, 4294901760
    %v2516 = vsub.f32 %v165, %v2515
    %2517 = vmatpush1.msra.mxu0 %v2516
    %2518 = vmatprep.subr.mxu0 0.0
    %v2519 = vand.u32 %v166, 4294901760
    %v2520 = vsub.f32 %v166, %v2519
    %2521 = vmatpush1.msra.mxu0 %v2520
    %2522 = vmatprep.subr.mxu0 0.0
    %v2523 = vand.u32 %v167, 4294901760
    %v2524 = vsub.f32 %v167, %v2523
    %2525 = vmatpush1.msra.mxu0 %v2524
    %2526 = vmatprep.subr.mxu0 0.0
    %v2527 = vand.u32 %v168, 4294901760
    %v2528 = vsub.f32 %v168, %v2527
    %2529 = vmatpush1.msra.mxu0 %v2528
    %2530 = vmatprep.subr.mxu0 0.0
    %v2531 = vand.u32 %v169, 4294901760
    %v2532 = vsub.f32 %v169, %v2531
    %2533 = vmatpush1.msra.mxu0 %v2532
    %2534 = vmatprep.subr.mxu0 0.0
    %v2535 = vand.u32 %v170, 4294901760
    %v2536 = vsub.f32 %v170, %v2535
    %2537 = vmatpush1.msra.mxu0 %v2536
    %v2538 = vand.u32 %v341, 4294901760
    %v2539 = vsub.f32 %v341, %v2538
    %2540 = vmatprep.mubr.f32.mxu0 %v2539
    %v2541 = vand.u32 %v340, 4294901760
    %v2542 = vsub.f32 %v340, %v2541
    %2543 = vmatmul.mubr.f32.gmra.mrb[0].mxu0 %v2542
    %v2544 = vpop.f32.mrb[0].mxu0
    %v2545 = vadd.f32 %v2407, %v2544
    %v2546 = vpop.f32.mrb[0].mxu0
    %2547 = vdwg.mxu0
    %2548 = vmatprep.subr.mxu0 0.0
    %v2549 = vand.u32 %v139, 4294901760
    %2550 = vmatpush1.msra.mxu0 %v2549
    %2551 = vmatprep.subr.mxu0 0.0
    %v2552 = vand.u32 %v140, 4294901760
    %2553 = vmatpush1.msra.mxu0 %v2552
    %2554 = vmatprep.subr.mxu0 0.0
    %v2555 = vand.u32 %v141, 4294901760
    %2556 = vmatpush1.msra.mxu0 %v2555
    %2557 = vmatprep.subr.mxu0 0.0
    %v2558 = vand.u32 %v142, 4294901760
    %2559 = vmatpush1.msra.mxu0 %v2558
    %2560 = vmatprep.subr.mxu0 0.0
    %v2561 = vand.u32 %v143, 4294901760
    %2562 = vmatpush1.msra.mxu0 %v2561
    %2563 = vmatprep.subr.mxu0 0.0
    %v2564 = vand.u32 %v144, 4294901760
    %2565 = vmatpush1.msra.mxu0 %v2564
    %2566 = vmatprep.subr.mxu0 0.0
    %v2567 = vand.u32 %v145, 4294901760
    %2568 = vmatpush1.msra.mxu0 %v2567
    %2569 = vmatprep.subr.mxu0 0.0
    %v2570 = vand.u32 %v146, 4294901760
    %2571 = vmatpush1.msra.mxu0 %v2570
    %2572 = vmatprep.subr.mxu0 0.0
    %v2573 = vand.u32 %v147, 4294901760
    %2574 = vmatpush1.msra.mxu0 %v2573
    %2575 = vmatprep.subr.mxu0 0.0
    %v2576 = vand.u32 %v148, 4294901760
    %2577 = vmatpush1.msra.mxu0 %v2576
    %2578 = vmatprep.subr.mxu0 0.0
    %v2579 = vand.u32 %v149, 4294901760
    %2580 = vmatpush1.msra.mxu0 %v2579
    %2581 = vmatprep.subr.mxu0 0.0
    %v2582 = vand.u32 %v150, 4294901760
    %2583 = vmatpush1.msra.mxu0 %v2582
    %2584 = vmatprep.subr.mxu0 0.0
    %v2585 = vand.u32 %v151, 4294901760
    %2586 = vmatpush1.msra.mxu0 %v2585
    %2587 = vmatprep.subr.mxu0 0.0
    %v2588 = vand.u32 %v152, 4294901760
    %2589 = vmatpush1.msra.mxu0 %v2588
    %2590 = vmatprep.subr.mxu0 0.0
    %v2591 = vand.u32 %v153, 4294901760
    %2592 = vmatpush1.msra.mxu0 %v2591
    %2593 = vmatprep.subr.mxu0 0.0
    %v2594 = vand.u32 %v154, 4294901760
    %2595 = vmatpush1.msra.mxu0 %v2594
    %2596 = vmatprep.subr.mxu0 0.0
    %v2597 = vand.u32 %v155, 4294901760
    %2598 = vmatpush1.msra.mxu0 %v2597
    %2599 = vmatprep.subr.mxu0 0.0
    %v2600 = vand.u32 %v156, 4294901760
    %2601 = vmatpush1.msra.mxu0 %v2600
    %2602 = vmatprep.subr.mxu0 0.0
    %v2603 = vand.u32 %v157, 4294901760
    %2604 = vmatpush1.msra.mxu0 %v2603
    %2605 = vmatprep.subr.mxu0 0.0
    %v2606 = vand.u32 %v158, 4294901760
    %2607 = vmatpush1.msra.mxu0 %v2606
    %2608 = vmatprep.subr.mxu0 0.0
    %v2609 = vand.u32 %v159, 4294901760
    %2610 = vmatpush1.msra.mxu0 %v2609
    %2611 = vmatprep.subr.mxu0 0.0
    %v2612 = vand.u32 %v160, 4294901760
    %2613 = vmatpush1.msra.mxu0 %v2612
    %2614 = vmatprep.subr.mxu0 0.0
    %v2615 = vand.u32 %v161, 4294901760
    %2616 = vmatpush1.msra.mxu0 %v2615
    %2617 = vmatprep.subr.mxu0 0.0
    %v2618 = vand.u32 %v162, 4294901760
    %2619 = vmatpush1.msra.mxu0 %v2618
    %2620 = vmatprep.subr.mxu0 0.0
    %v2621 = vand.u32 %v163, 4294901760
    %2622 = vmatpush1.msra.mxu0 %v2621
    %2623 = vmatprep.subr.mxu0 0.0
    %v2624 = vand.u32 %v164, 4294901760
    %2625 = vmatpush1.msra.mxu0 %v2624
    %2626 = vmatprep.subr.mxu0 0.0
    %v2627 = vand.u32 %v165, 4294901760
    %2628 = vmatpush1.msra.mxu0 %v2627
    %2629 = vmatprep.subr.mxu0 0.0
    %v2630 = vand.u32 %v166, 4294901760
    %2631 = vmatpush1.msra.mxu0 %v2630
    %2632 = vmatprep.subr.mxu0 0.0
    %v2633 = vand.u32 %v167, 4294901760
    %2634 = vmatpush1.msra.mxu0 %v2633
    %2635 = vmatprep.subr.mxu0 0.0
    %v2636 = vand.u32 %v168, 4294901760
    %2637 = vmatpush1.msra.mxu0 %v2636
    %2638 = vmatprep.subr.mxu0 0.0
    %v2639 = vand.u32 %v169, 4294901760
    %2640 = vmatpush1.msra.mxu0 %v2639
    %2641 = vmatprep.subr.mxu0 0.0
    %v2642 = vand.u32 %v170, 4294901760
    %2643 = vmatpush1.msra.mxu0 %v2642
    %v2644 = vand.u32 %v341, 4294901760
    %v2645 = vsub.f32 %v341, %v2644
    %v2646 = vand.u32 %v2645, 4294901760
    %2647 = vmatprep.mubr.f32.mxu0 %v2646
    %v2648 = vand.u32 %v340, 4294901760
    %v2649 = vsub.f32 %v340, %v2648
    %v2650 = vand.u32 %v2649, 4294901760
    %2651 = vmatmul.mubr.f32.gmra.mrb[0].mxu0 %v2650
    %v2652 = vpop.f32.mrb[0].mxu0
    %v2653 = vadd.f32 %v2545, %v2652
    %v2654 = vpop.f32.mrb[0].mxu0
    %2655 = vdwg.mxu0
    %2656 = vmatprep.subr.mxu0 0.0
    %v2657 = vand.u32 %v139, 4294901760
    %v2658 = vsub.f32 %v139, %v2657
    %v2659 = vand.u32 %v2658, 4294901760
    %2660 = vmatpush1.msra.mxu0 %v2659
    %2661 = vmatprep.subr.mxu0 0.0
    %v2662 = vand.u32 %v140, 4294901760
    %v2663 = vsub.f32 %v140, %v2662
    %v2664 = vand.u32 %v2663, 4294901760
    %2665 = vmatpush1.msra.mxu0 %v2664
    %2666 = vmatprep.subr.mxu0 0.0
    %v2667 = vand.u32 %v141, 4294901760
    %v2668 = vsub.f32 %v141, %v2667
    %v2669 = vand.u32 %v2668, 4294901760
    %2670 = vmatpush1.msra.mxu0 %v2669
    %2671 = vmatprep.subr.mxu0 0.0
    %v2672 = vand.u32 %v142, 4294901760
    %v2673 = vsub.f32 %v142, %v2672
    %v2674 = vand.u32 %v2673, 4294901760
    %2675 = vmatpush1.msra.mxu0 %v2674
    %2676 = vmatprep.subr.mxu0 0.0
    %v2677 = vand.u32 %v143, 4294901760
    %v2678 = vsub.f32 %v143, %v2677
    %v2679 = vand.u32 %v2678, 4294901760
    %2680 = vmatpush1.msra.mxu0 %v2679
    %2681 = vmatprep.subr.mxu0 0.0
    %v2682 = vand.u32 %v144, 4294901760
    %v2683 = vsub.f32 %v144, %v2682
    %v2684 = vand.u32 %v2683, 4294901760
    %2685 = vmatpush1.msra.mxu0 %v2684
    %2686 = vmatprep.subr.mxu0 0.0
    %v2687 = vand.u32 %v145, 4294901760
    %v2688 = vsub.f32 %v145, %v2687
    %v2689 = vand.u32 %v2688, 4294901760
    %2690 = vmatpush1.msra.mxu0 %v2689
    %2691 = vmatprep.subr.mxu0 0.0
    %v2692 = vand.u32 %v146, 4294901760
    %v2693 = vsub.f32 %v146, %v2692
    %v2694 = vand.u32 %v2693, 4294901760
    %2695 = vmatpush1.msra.mxu0 %v2694
    %2696 = vmatprep.subr.mxu0 0.0
    %v2697 = vand.u32 %v147, 4294901760
    %v2698 = vsub.f32 %v147, %v2697
    %v2699 = vand.u32 %v2698, 4294901760
    %2700 = vmatpush1.msra.mxu0 %v2699
    %2701 = vmatprep.subr.mxu0 0.0
    %v2702 = vand.u32 %v148, 4294901760
    %v2703 = vsub.f32 %v148, %v2702
    %v2704 = vand.u32 %v2703, 4294901760
    %2705 = vmatpush1.msra.mxu0 %v2704
    %2706 = vmatprep.subr.mxu0 0.0
    %v2707 = vand.u32 %v149, 4294901760
    %v2708 = vsub.f32 %v149, %v2707
    %v2709 = vand.u32 %v2708, 4294901760
    %2710 = vmatpush1.msra.mxu0 %v2709
    %2711 = vmatprep.subr.mxu0 0.0
    %v2712 = vand.u32 %v150, 4294901760
    %v2713 = vsub.f32 %v150, %v2712
    %v2714 = vand.u32 %v2713, 4294901760
    %2715 = vmatpush1.msra.mxu0 %v2714
    %2716 = vmatprep.subr.mxu0 0.0
    %v2717 = vand.u32 %v151, 4294901760
    %v2718 = vsub.f32 %v151, %v2717
    %v2719 = vand.u32 %v2718, 4294901760
    %2720 = vmatpush1.msra.mxu0 %v2719
    %2721 = vmatprep.subr.mxu0 0.0
    %v2722 = vand.u32 %v152, 4294901760
    %v2723 = vsub.f32 %v152, %v2722
    %v2724 = vand.u32 %v2723, 4294901760
    %2725 = vmatpush1.msra.mxu0 %v2724
    %2726 = vmatprep.subr.mxu0 0.0
    %v2727 = vand.u32 %v153, 4294901760
    %v2728 = vsub.f32 %v153, %v2727
    %v2729 = vand.u32 %v2728, 4294901760
    %2730 = vmatpush1.msra.mxu0 %v2729
    %2731 = vmatprep.subr.mxu0 0.0
    %v2732 = vand.u32 %v154, 4294901760
    %v2733 = vsub.f32 %v154, %v2732
    %v2734 = vand.u32 %v2733, 4294901760
    %2735 = vmatpush1.msra.mxu0 %v2734
    %2736 = vmatprep.subr.mxu0 0.0
    %v2737 = vand.u32 %v155, 4294901760
    %v2738 = vsub.f32 %v155, %v2737
    %v2739 = vand.u32 %v2738, 4294901760
    %2740 = vmatpush1.msra.mxu0 %v2739
    %2741 = vmatprep.subr.mxu0 0.0
    %v2742 = vand.u32 %v156, 4294901760
    %v2743 = vsub.f32 %v156, %v2742
    %v2744 = vand.u32 %v2743, 4294901760
    %2745 = vmatpush1.msra.mxu0 %v2744
    %2746 = vmatprep.subr.mxu0 0.0
    %v2747 = vand.u32 %v157, 4294901760
    %v2748 = vsub.f32 %v157, %v2747
    %v2749 = vand.u32 %v2748, 4294901760
    %2750 = vmatpush1.msra.mxu0 %v2749
    %2751 = vmatprep.subr.mxu0 0.0
    %v2752 = vand.u32 %v158, 4294901760
    %v2753 = vsub.f32 %v158, %v2752
    %v2754 = vand.u32 %v2753, 4294901760
    %2755 = vmatpush1.msra.mxu0 %v2754
    %2756 = vmatprep.subr.mxu0 0.0
    %v2757 = vand.u32 %v159, 4294901760
    %v2758 = vsub.f32 %v159, %v2757
    %v2759 = vand.u32 %v2758, 4294901760
    %2760 = vmatpush1.msra.mxu0 %v2759
    %2761 = vmatprep.subr.mxu0 0.0
    %v2762 = vand.u32 %v160, 4294901760
    %v2763 = vsub.f32 %v160, %v2762
    %v2764 = vand.u32 %v2763, 4294901760
    %2765 = vmatpush1.msra.mxu0 %v2764
    %2766 = vmatprep.subr.mxu0 0.0
    %v2767 = vand.u32 %v161, 4294901760
    %v2768 = vsub.f32 %v161, %v2767
    %v2769 = vand.u32 %v2768, 4294901760
    %2770 = vmatpush1.msra.mxu0 %v2769
    %2771 = vmatprep.subr.mxu0 0.0
    %v2772 = vand.u32 %v162, 4294901760
    %v2773 = vsub.f32 %v162, %v2772
    %v2774 = vand.u32 %v2773, 4294901760
    %2775 = vmatpush1.msra.mxu0 %v2774
    %2776 = vmatprep.subr.mxu0 0.0
    %v2777 = vand.u32 %v163, 4294901760
    %v2778 = vsub.f32 %v163, %v2777
    %v2779 = vand.u32 %v2778, 4294901760
    %2780 = vmatpush1.msra.mxu0 %v2779
    %2781 = vmatprep.subr.mxu0 0.0
    %v2782 = vand.u32 %v164, 4294901760
    %v2783 = vsub.f32 %v164, %v2782
    %v2784 = vand.u32 %v2783, 4294901760
    %2785 = vmatpush1.msra.mxu0 %v2784
    %2786 = vmatprep.subr.mxu0 0.0
    %v2787 = vand.u32 %v165, 4294901760
    %v2788 = vsub.f32 %v165, %v2787
    %v2789 = vand.u32 %v2788, 4294901760
    %2790 = vmatpush1.msra.mxu0 %v2789
    %2791 = vmatprep.subr.mxu0 0.0
    %v2792 = vand.u32 %v166, 4294901760
    %v2793 = vsub.f32 %v166, %v2792
    %v2794 = vand.u32 %v2793, 4294901760
    %2795 = vmatpush1.msra.mxu0 %v2794
    %2796 = vmatprep.subr.mxu0 0.0
    %v2797 = vand.u32 %v167, 4294901760
    %v2798 = vsub.f32 %v167, %v2797
    %v2799 = vand.u32 %v2798, 4294901760
    %2800 = vmatpush1.msra.mxu0 %v2799
    %2801 = vmatprep.subr.mxu0 0.0
    %v2802 = vand.u32 %v168, 4294901760
    %v2803 = vsub.f32 %v168, %v2802
    %v2804 = vand.u32 %v2803, 4294901760
    %2805 = vmatpush1.msra.mxu0 %v2804
    %2806 = vmatprep.subr.mxu0 0.0
    %v2807 = vand.u32 %v169, 4294901760
    %v2808 = vsub.f32 %v169, %v2807
    %v2809 = vand.u32 %v2808, 4294901760
    %2810 = vmatpush1.msra.mxu0 %v2809
    %2811 = vmatprep.subr.mxu0 0.0
    %v2812 = vand.u32 %v170, 4294901760
    %v2813 = vsub.f32 %v170, %v2812
    %v2814 = vand.u32 %v2813, 4294901760
    %2815 = vmatpush1.msra.mxu0 %v2814
    %v2816 = vand.u32 %v341, 4294901760
    %2817 = vmatprep.mubr.f32.mxu0 %v2816
    %v2818 = vand.u32 %v340, 4294901760
    %2819 = vmatmul.mubr.f32.gmra.mrb[0].mxu0 %v2818
    %v2820 = vpop.f32.mrb[0].mxu0
    %v2821 = vadd.f32 %v2653, %v2820
    %v2822 = vpop.f32.mrb[0].mxu0
    %2823 = vdwg.mxu0
    %2824 = vmatprep.subr.mxu0 0.0
    %v2825 = vand.u32 %v139, 4294901760
    %2826 = vmatpush1.msra.mxu0 %v2825
    %2827 = vmatprep.subr.mxu0 0.0
    %v2828 = vand.u32 %v140, 4294901760
    %2829 = vmatpush1.msra.mxu0 %v2828
    %2830 = vmatprep.subr.mxu0 0.0
    %v2831 = vand.u32 %v141, 4294901760
    %2832 = vmatpush1.msra.mxu0 %v2831
    %2833 = vmatprep.subr.mxu0 0.0
    %v2834 = vand.u32 %v142, 4294901760
    %2835 = vmatpush1.msra.mxu0 %v2834
    %2836 = vmatprep.subr.mxu0 0.0
    %v2837 = vand.u32 %v143, 4294901760
    %2838 = vmatpush1.msra.mxu0 %v2837
    %2839 = vmatprep.subr.mxu0 0.0
    %v2840 = vand.u32 %v144, 4294901760
    %2841 = vmatpush1.msra.mxu0 %v2840
    %2842 = vmatprep.subr.mxu0 0.0
    %v2843 = vand.u32 %v145, 4294901760
    %2844 = vmatpush1.msra.mxu0 %v2843
    %2845 = vmatprep.subr.mxu0 0.0
    %v2846 = vand.u32 %v146, 4294901760
    %2847 = vmatpush1.msra.mxu0 %v2846
    %2848 = vmatprep.subr.mxu0 0.0
    %v2849 = vand.u32 %v147, 4294901760
    %2850 = vmatpush1.msra.mxu0 %v2849
    %2851 = vmatprep.subr.mxu0 0.0
    %v2852 = vand.u32 %v148, 4294901760
    %2853 = vmatpush1.msra.mxu0 %v2852
    %2854 = vmatprep.subr.mxu0 0.0
    %v2855 = vand.u32 %v149, 4294901760
    %2856 = vmatpush1.msra.mxu0 %v2855
    %2857 = vmatprep.subr.mxu0 0.0
    %v2858 = vand.u32 %v150, 4294901760
    %2859 = vmatpush1.msra.mxu0 %v2858
    %2860 = vmatprep.subr.mxu0 0.0
    %v2861 = vand.u32 %v151, 4294901760
    %2862 = vmatpush1.msra.mxu0 %v2861
    %2863 = vmatprep.subr.mxu0 0.0
    %v2864 = vand.u32 %v152, 4294901760
    %2865 = vmatpush1.msra.mxu0 %v2864
    %2866 = vmatprep.subr.mxu0 0.0
    %v2867 = vand.u32 %v153, 4294901760
    %2868 = vmatpush1.msra.mxu0 %v2867
    %2869 = vmatprep.subr.mxu0 0.0
    %v2870 = vand.u32 %v154, 4294901760
    %2871 = vmatpush1.msra.mxu0 %v2870
    %2872 = vmatprep.subr.mxu0 0.0
    %v2873 = vand.u32 %v155, 4294901760
    %2874 = vmatpush1.msra.mxu0 %v2873
    %2875 = vmatprep.subr.mxu0 0.0
    %v2876 = vand.u32 %v156, 4294901760
    %2877 = vmatpush1.msra.mxu0 %v2876
    %2878 = vmatprep.subr.mxu0 0.0
    %v2879 = vand.u32 %v157, 4294901760
    %2880 = vmatpush1.msra.mxu0 %v2879
    %2881 = vmatprep.subr.mxu0 0.0
    %v2882 = vand.u32 %v158, 4294901760
    %2883 = vmatpush1.msra.mxu0 %v2882
    %2884 = vmatprep.subr.mxu0 0.0
    %v2885 = vand.u32 %v159, 4294901760
    %2886 = vmatpush1.msra.mxu0 %v2885
    %2887 = vmatprep.subr.mxu0 0.0
    %v2888 = vand.u32 %v160, 4294901760
    %2889 = vmatpush1.msra.mxu0 %v2888
    %2890 = vmatprep.subr.mxu0 0.0
    %v2891 = vand.u32 %v161, 4294901760
    %2892 = vmatpush1.msra.mxu0 %v2891
    %2893 = vmatprep.subr.mxu0 0.0
    %v2894 = vand.u32 %v162, 4294901760
    %2895 = vmatpush1.msra.mxu0 %v2894
    %2896 = vmatprep.subr.mxu0 0.0
    %v2897 = vand.u32 %v163, 4294901760
    %2898 = vmatpush1.msra.mxu0 %v2897
    %2899 = vmatprep.subr.mxu0 0.0
    %v2900 = vand.u32 %v164, 4294901760
    %2901 = vmatpush1.msra.mxu0 %v2900
    %2902 = vmatprep.subr.mxu0 0.0
    %v2903 = vand.u32 %v165, 4294901760
    %2904 = vmatpush1.msra.mxu0 %v2903
    %2905 = vmatprep.subr.mxu0 0.0
    %v2906 = vand.u32 %v166, 4294901760
    %2907 = vmatpush1.msra.mxu0 %v2906
    %2908 = vmatprep.subr.mxu0 0.0
    %v2909 = vand.u32 %v167, 4294901760
    %2910 = vmatpush1.msra.mxu0 %v2909
    %2911 = vmatprep.subr.mxu0 0.0
    %v2912 = vand.u32 %v168, 4294901760
    %2913 = vmatpush1.msra.mxu0 %v2912
    %2914 = vmatprep.subr.mxu0 0.0
    %v2915 = vand.u32 %v169, 4294901760
    %2916 = vmatpush1.msra.mxu0 %v2915
    %2917 = vmatprep.subr.mxu0 0.0
    %v2918 = vand.u32 %v170, 4294901760
    %2919 = vmatpush1.msra.mxu0 %v2918
    %v2920 = vand.u32 %v341, 4294901760
    %2921 = vmatprep.mubr.f32.mxu0 %v2920
    %v2922 = vand.u32 %v340, 4294901760
    %2923 = vmatmul.mubr.f32.gmra.mrb[0].mxu0 %v2922
    %v2924 = vpop.f32.mrb[0].mxu0
    %v2925 = vadd.f32 %v2821, %v2924
    %v2926 = vpop.f32.mrb[0].mxu0
    %2927 = vdwg.mxu0
    %v2928 = vmul.f32 %v2925, 0.16666667
    %v2929 = vmul.f32 %v2928, %v2928
    %v2931 = vrot.slane %v2929, 7
    %v2933 = vsub.f32 %v2928, %v2931
    %v2934 = vadd.f32 %v2933, 1e-05
    %v2935 = vrsqrt.pop %v2934
    %v2937 = vrot.slane %v2935, 1
    %v2939 = vmul.f32 %v2928, %v2937
    %v2941 = vrot.slane %v2939, 7
    %v2943 = vsel %vm335, %v2937, %v2941
    %v2944 = vand.u32 %v172, 4294901760
    %2945 = vmatprep.subr.mxu0 %v2944
    %v2946 = vand.u32 %v171, 4294901760
    %2947 = vmatpush1.msra.mxu0 %v2946
    %v2948 = vand.u32 %v178, 4294901760
    %2949 = vmatprep.subr.mxu0 %v2948
    %v2950 = vand.u32 %v177, 4294901760
    %2951 = vmatpush1.msra.mxu0 %v2950
    %v2952 = vand.u32 %v184, 4294901760
    %2953 = vmatprep.subr.mxu0 %v2952
    %v2954 = vand.u32 %v183, 4294901760
    %2955 = vmatpush1.msra.mxu0 %v2954
    %v2956 = vand.u32 %v190, 4294901760
    %2957 = vmatprep.subr.mxu0 %v2956
    %v2958 = vand.u32 %v189, 4294901760
    %2959 = vmatpush1.msra.mxu0 %v2958
    %v2960 = vand.u32 %v196, 4294901760
    %2961 = vmatprep.subr.mxu0 %v2960
    %v2962 = vand.u32 %v195, 4294901760
    %2963 = vmatpush1.msra.mxu0 %v2962
    %v2964 = vand.u32 %v202, 4294901760
    %2965 = vmatprep.subr.mxu0 %v2964
    %v2966 = vand.u32 %v201, 4294901760
    %2967 = vmatpush1.msra.mxu0 %v2966
    %v2968 = vand.u32 %v208, 4294901760
    %2969 = vmatprep.subr.mxu0 %v2968
    %v2970 = vand.u32 %v207, 4294901760
    %2971 = vmatpush1.msra.mxu0 %v2970
    %v2972 = vand.u32 %v214, 4294901760
    %2973 = vmatprep.subr.mxu0 %v2972
    %v2974 = vand.u32 %v213, 4294901760
    %2975 = vmatpush1.msra.mxu0 %v2974
    %v2976 = vand.u32 %v220, 4294901760
    %2977 = vmatprep.subr.mxu0 %v2976
    %v2978 = vand.u32 %v219, 4294901760
    %2979 = vmatpush1.msra.mxu0 %v2978
    %v2980 = vand.u32 %v226, 4294901760
    %2981 = vmatprep.subr.mxu0 %v2980
    %v2982 = vand.u32 %v225, 4294901760
    %2983 = vmatpush1.msra.mxu0 %v2982
    %v2984 = vand.u32 %v232, 4294901760
    %2985 = vmatprep.subr.mxu0 %v2984
    %v2986 = vand.u32 %v231, 4294901760
    %2987 = vmatpush1.msra.mxu0 %v2986
    %v2988 = vand.u32 %v238, 4294901760
    %2989 = vmatprep.subr.mxu0 %v2988
    %v2990 = vand.u32 %v237, 4294901760
    %2991 = vmatpush1.msra.mxu0 %v2990
    %v2992 = vand.u32 %v244, 4294901760
    %2993 = vmatprep.subr.mxu0 %v2992
    %v2994 = vand.u32 %v243, 4294901760
    %2995 = vmatpush1.msra.mxu0 %v2994
    %v2996 = vand.u32 %v250, 4294901760
    %2997 = vmatprep.subr.mxu0 %v2996
    %v2998 = vand.u32 %v249, 4294901760
    %2999 = vmatpush1.msra.mxu0 %v2998
    %v3000 = vand.u32 %v256, 4294901760
    %3001 = vmatprep.subr.mxu0 %v3000
    %v3002 = vand.u32 %v255, 4294901760
    %3003 = vmatpush1.msra.mxu0 %v3002
    %v3004 = vand.u32 %v262, 4294901760
    %3005 = vmatprep.subr.mxu0 %v3004
    %v3006 = vand.u32 %v261, 4294901760
    %3007 = vmatpush1.msra.mxu0 %v3006
    %3008 = vmatprep.subr.mxu0 0.0
    %3009 = vmatpush1.msra.mxu0 0.0
    %3010 = vmatprep.subr.mxu0 0.0
    %3011 = vmatpush1.msra.mxu0 0.0
    %3012 = vmatprep.subr.mxu0 0.0
    %3013 = vmatpush1.msra.mxu0 0.0
    %3014 = vmatprep.subr.mxu0 0.0
    %3015 = vmatpush1.msra.mxu0 0.0
    %3016 = vmatprep.subr.mxu0 0.0
    %3017 = vmatpush1.msra.mxu0 0.0
    %3018 = vmatprep.subr.mxu0 0.0
    %3019 = vmatpush1.msra.mxu0 0.0
    %3020 = vmatprep.subr.mxu0 0.0
    %3021 = vmatpush1.msra.mxu0 0.0
    %3022 = vmatprep.subr.mxu0 0.0
    %3023 = vmatpush1.msra.mxu0 0.0
    %3024 = vmatprep.subr.mxu0 0.0
    %3025 = vmatpush1.msra.mxu0 0.0
    %3026 = vmatprep.subr.mxu0 0.0
    %3027 = vmatpush1.msra.mxu0 0.0
    %3028 = vmatprep.subr.mxu0 0.0
    %3029 = vmatpush1.msra.mxu0 0.0
    %3030 = vmatprep.subr.mxu0 0.0
    %3031 = vmatpush1.msra.mxu0 0.0
    %3032 = vmatprep.subr.mxu0 0.0
    %3033 = vmatpush1.msra.mxu0 0.0
    %3034 = vmatprep.subr.mxu0 0.0
    %3035 = vmatpush1.msra.mxu0 0.0
    %3036 = vmatprep.subr.mxu0 0.0
    %3037 = vmatpush1.msra.mxu0 0.0
    %3038 = vmatprep.subr.mxu0 0.0
    %3039 = vmatpush1.msra.mxu0 0.0
    %3040 = vmatprep.mubr.f32.mxu0 0.0
    %v3041 = vand.u32 %v2943, 4294901760
    %v3042 = vsub.f32 %v2943, %v3041
    %v3043 = vand.u32 %v3042, 4294901760
    %v3044 = vsub.f32 %v3042, %v3043
    %v3045 = vand.u32 %v3044, 4294901760
    %3046 = vmatmul.mubr.f32.gmra.mrb[0].mxu0 %v3045
    %v3047 = vpop.f32.mrb[0].mxu0
    %v3048 = vadd.f32 0.0, %v3047
    %v3049 = vpop.f32.mrb[0].mxu0
    %v3050 = vadd.f32 0.0, %v3049
    %3051 = vdwg.mxu0
    %v3052 = vand.u32 %v172, 4294901760
    %v3053 = vsub.f32 %v172, %v3052
    %v3054 = vand.u32 %v3053, 4294901760
    %v3055 = vsub.f32 %v3053, %v3054
    %v3056 = vand.u32 %v3055, 4294901760
    %3057 = vmatprep.subr.mxu0 %v3056
    %v3058 = vand.u32 %v171, 4294901760
    %v3059 = vsub.f32 %v171, %v3058
    %v3060 = vand.u32 %v3059, 4294901760
    %v3061 = vsub.f32 %v3059, %v3060
    %v3062 = vand.u32 %v3061, 4294901760
    %3063 = vmatpush1.msra.mxu0 %v3062
    %v3064 = vand.u32 %v178, 4294901760
    %v3065 = vsub.f32 %v178, %v3064
    %v3066 = vand.u32 %v3065, 4294901760
    %v3067 = vsub.f32 %v3065, %v3066
    %v3068 = vand.u32 %v3067, 4294901760
    %3069 = vmatprep.subr.mxu0 %v3068
    %v3070 = vand.u32 %v177, 4294901760
    %v3071 = vsub.f32 %v177, %v3070
    %v3072 = vand.u32 %v3071, 4294901760
    %v3073 = vsub.f32 %v3071, %v3072
    %v3074 = vand.u32 %v3073, 4294901760
    %3075 = vmatpush1.msra.mxu0 %v3074
    %v3076 = vand.u32 %v184, 4294901760
    %v3077 = vsub.f32 %v184, %v3076
    %v3078 = vand.u32 %v3077, 4294901760
    %v3079 = vsub.f32 %v3077, %v3078
    %v3080 = vand.u32 %v3079, 4294901760
    %3081 = vmatprep.subr.mxu0 %v3080
    %v3082 = vand.u32 %v183, 4294901760
    %v3083 = vsub.f32 %v183, %v3082
    %v3084 = vand.u32 %v3083, 4294901760
    %v3085 = vsub.f32 %v3083, %v3084
    %v3086 = vand.u32 %v3085, 4294901760
    %3087 = vmatpush1.msra.mxu0 %v3086
    %v3088 = vand.u32 %v190, 4294901760
    %v3089 = vsub.f32 %v190, %v3088
    %v3090 = vand.u32 %v3089, 4294901760
    %v3091 = vsub.f32 %v3089, %v3090
    %v3092 = vand.u32 %v3091, 4294901760
    %3093 = vmatprep.subr.mxu0 %v3092
    %v3094 = vand.u32 %v189, 4294901760
    %v3095 = vsub.f32 %v189, %v3094
    %v3096 = vand.u32 %v3095, 4294901760
    %v3097 = vsub.f32 %v3095, %v3096
    %v3098 = vand.u32 %v3097, 4294901760
    %3099 = vmatpush1.msra.mxu0 %v3098
    %v3100 = vand.u32 %v196, 4294901760
    %v3101 = vsub.f32 %v196, %v3100
    %v3102 = vand.u32 %v3101, 4294901760
    %v3103 = vsub.f32 %v3101, %v3102
    %v3104 = vand.u32 %v3103, 4294901760
    %3105 = vmatprep.subr.mxu0 %v3104
    %v3106 = vand.u32 %v195, 4294901760
    %v3107 = vsub.f32 %v195, %v3106
    %v3108 = vand.u32 %v3107, 4294901760
    %v3109 = vsub.f32 %v3107, %v3108
    %v3110 = vand.u32 %v3109, 4294901760
    %3111 = vmatpush1.msra.mxu0 %v3110
    %v3112 = vand.u32 %v202, 4294901760
    %v3113 = vsub.f32 %v202, %v3112
    %v3114 = vand.u32 %v3113, 4294901760
    %v3115 = vsub.f32 %v3113, %v3114
    %v3116 = vand.u32 %v3115, 4294901760
    %3117 = vmatprep.subr.mxu0 %v3116
    %v3118 = vand.u32 %v201, 4294901760
    %v3119 = vsub.f32 %v201, %v3118
    %v3120 = vand.u32 %v3119, 4294901760
    %v3121 = vsub.f32 %v3119, %v3120
    %v3122 = vand.u32 %v3121, 4294901760
    %3123 = vmatpush1.msra.mxu0 %v3122
    %v3124 = vand.u32 %v208, 4294901760
    %v3125 = vsub.f32 %v208, %v3124
    %v3126 = vand.u32 %v3125, 4294901760
    %v3127 = vsub.f32 %v3125, %v3126
    %v3128 = vand.u32 %v3127, 4294901760
    %3129 = vmatprep.subr.mxu0 %v3128
    %v3130 = vand.u32 %v207, 4294901760
    %v3131 = vsub.f32 %v207, %v3130
    %v3132 = vand.u32 %v3131, 4294901760
    %v3133 = vsub.f32 %v3131, %v3132
    %v3134 = vand.u32 %v3133, 4294901760
    %3135 = vmatpush1.msra.mxu0 %v3134
    %v3136 = vand.u32 %v214, 4294901760
    %v3137 = vsub.f32 %v214, %v3136
    %v3138 = vand.u32 %v3137, 4294901760
    %v3139 = vsub.f32 %v3137, %v3138
    %v3140 = vand.u32 %v3139, 4294901760
    %3141 = vmatprep.subr.mxu0 %v3140
    %v3142 = vand.u32 %v213, 4294901760
    %v3143 = vsub.f32 %v213, %v3142
    %v3144 = vand.u32 %v3143, 4294901760
    %v3145 = vsub.f32 %v3143, %v3144
    %v3146 = vand.u32 %v3145, 4294901760
    %3147 = vmatpush1.msra.mxu0 %v3146
    %v3148 = vand.u32 %v220, 4294901760
    %v3149 = vsub.f32 %v220, %v3148
    %v3150 = vand.u32 %v3149, 4294901760
    %v3151 = vsub.f32 %v3149, %v3150
    %v3152 = vand.u32 %v3151, 4294901760
    %3153 = vmatprep.subr.mxu0 %v3152
    %v3154 = vand.u32 %v219, 4294901760
    %v3155 = vsub.f32 %v219, %v3154
    %v3156 = vand.u32 %v3155, 4294901760
    %v3157 = vsub.f32 %v3155, %v3156
    %v3158 = vand.u32 %v3157, 4294901760
    %3159 = vmatpush1.msra.mxu0 %v3158
    %v3160 = vand.u32 %v226, 4294901760
    %v3161 = vsub.f32 %v226, %v3160
    %v3162 = vand.u32 %v3161, 4294901760
    %v3163 = vsub.f32 %v3161, %v3162
    %v3164 = vand.u32 %v3163, 4294901760
    %3165 = vmatprep.subr.mxu0 %v3164
    %v3166 = vand.u32 %v225, 4294901760
    %v3167 = vsub.f32 %v225, %v3166
    %v3168 = vand.u32 %v3167, 4294901760
    %v3169 = vsub.f32 %v3167, %v3168
    %v3170 = vand.u32 %v3169, 4294901760
    %3171 = vmatpush1.msra.mxu0 %v3170
    %v3172 = vand.u32 %v232, 4294901760
    %v3173 = vsub.f32 %v232, %v3172
    %v3174 = vand.u32 %v3173, 4294901760
    %v3175 = vsub.f32 %v3173, %v3174
    %v3176 = vand.u32 %v3175, 4294901760
    %3177 = vmatprep.subr.mxu0 %v3176
    %v3178 = vand.u32 %v231, 4294901760
    %v3179 = vsub.f32 %v231, %v3178
    %v3180 = vand.u32 %v3179, 4294901760
    %v3181 = vsub.f32 %v3179, %v3180
    %v3182 = vand.u32 %v3181, 4294901760
    %3183 = vmatpush1.msra.mxu0 %v3182
    %v3184 = vand.u32 %v238, 4294901760
    %v3185 = vsub.f32 %v238, %v3184
    %v3186 = vand.u32 %v3185, 4294901760
    %v3187 = vsub.f32 %v3185, %v3186
    %v3188 = vand.u32 %v3187, 4294901760
    %3189 = vmatprep.subr.mxu0 %v3188
    %v3190 = vand.u32 %v237, 4294901760
    %v3191 = vsub.f32 %v237, %v3190
    %v3192 = vand.u32 %v3191, 4294901760
    %v3193 = vsub.f32 %v3191, %v3192
    %v3194 = vand.u32 %v3193, 4294901760
    %3195 = vmatpush1.msra.mxu0 %v3194
    %v3196 = vand.u32 %v244, 4294901760
    %v3197 = vsub.f32 %v244, %v3196
    %v3198 = vand.u32 %v3197, 4294901760
    %v3199 = vsub.f32 %v3197, %v3198
    %v3200 = vand.u32 %v3199, 4294901760
    %3201 = vmatprep.subr.mxu0 %v3200
    %v3202 = vand.u32 %v243, 4294901760
    %v3203 = vsub.f32 %v243, %v3202
    %v3204 = vand.u32 %v3203, 4294901760
    %v3205 = vsub.f32 %v3203, %v3204
    %v3206 = vand.u32 %v3205, 4294901760
    %3207 = vmatpush1.msra.mxu0 %v3206
    %v3208 = vand.u32 %v250, 4294901760
    %v3209 = vsub.f32 %v250, %v3208
    %v3210 = vand.u32 %v3209, 4294901760
    %v3211 = vsub.f32 %v3209, %v3210
    %v3212 = vand.u32 %v3211, 4294901760
    %3213 = vmatprep.subr.mxu0 %v3212
    %v3214 = vand.u32 %v249, 4294901760
    %v3215 = vsub.f32 %v249, %v3214
    %v3216 = vand.u32 %v3215, 4294901760
    %v3217 = vsub.f32 %v3215, %v3216
    %v3218 = vand.u32 %v3217, 4294901760
    %3219 = vmatpush1.msra.mxu0 %v3218
    %v3220 = vand.u32 %v256, 4294901760
    %v3221 = vsub.f32 %v256, %v3220
    %v3222 = vand.u32 %v3221, 4294901760
    %v3223 = vsub.f32 %v3221, %v3222
    %v3224 = vand.u32 %v3223, 4294901760
    %3225 = vmatprep.subr.mxu0 %v3224
    %v3226 = vand.u32 %v255, 4294901760
    %v3227 = vsub.f32 %v255, %v3226
    %v3228 = vand.u32 %v3227, 4294901760
    %v3229 = vsub.f32 %v3227, %v3228
    %v3230 = vand.u32 %v3229, 4294901760
    %3231 = vmatpush1.msra.mxu0 %v3230
    %v3232 = vand.u32 %v262, 4294901760
    %v3233 = vsub.f32 %v262, %v3232
    %v3234 = vand.u32 %v3233, 4294901760
    %v3235 = vsub.f32 %v3233, %v3234
    %v3236 = vand.u32 %v3235, 4294901760
    %3237 = vmatprep.subr.mxu0 %v3236
    %v3238 = vand.u32 %v261, 4294901760
    %v3239 = vsub.f32 %v261, %v3238
    %v3240 = vand.u32 %v3239, 4294901760
    %v3241 = vsub.f32 %v3239, %v3240
    %v3242 = vand.u32 %v3241, 4294901760
    %3243 = vmatpush1.msra.mxu0 %v3242
    %3244 = vmatprep.subr.mxu0 0.0
    %3245 = vmatpush1.msra.mxu0 0.0
    %3246 = vmatprep.subr.mxu0 0.0
    %3247 = vmatpush1.msra.mxu0 0.0
    %3248 = vmatprep.subr.mxu0 0.0
    %3249 = vmatpush1.msra.mxu0 0.0
    %3250 = vmatprep.subr.mxu0 0.0
    %3251 = vmatpush1.msra.mxu0 0.0
    %3252 = vmatprep.subr.mxu0 0.0
    %3253 = vmatpush1.msra.mxu0 0.0
    %3254 = vmatprep.subr.mxu0 0.0
    %3255 = vmatpush1.msra.mxu0 0.0
    %3256 = vmatprep.subr.mxu0 0.0
    %3257 = vmatpush1.msra.mxu0 0.0
    %3258 = vmatprep.subr.mxu0 0.0
    %3259 = vmatpush1.msra.mxu0 0.0
    %3260 = vmatprep.subr.mxu0 0.0
    %3261 = vmatpush1.msra.mxu0 0.0
    %3262 = vmatprep.subr.mxu0 0.0
    %3263 = vmatpush1.msra.mxu0 0.0
    %3264 = vmatprep.subr.mxu0 0.0
    %3265 = vmatpush1.msra.mxu0 0.0
    %3266 = vmatprep.subr.mxu0 0.0
    %3267 = vmatpush1.msra.mxu0 0.0
    %3268 = vmatprep.subr.mxu0 0.0
    %3269 = vmatpush1.msra.mxu0 0.0
    %3270 = vmatprep.subr.mxu0 0.0
    %3271 = vmatpush1.msra.mxu0 0.0
    %3272 = vmatprep.subr.mxu0 0.0
    %3273 = vmatpush1.msra.mxu0 0.0
    %3274 = vmatprep.subr.mxu0 0.0
    %3275 = vmatpush1.msra.mxu0 0.0
    %3276 = vmatprep.mubr.f32.mxu0 0.0
    %v3277 = vand.u32 %v2943, 4294901760
    %3278 = vmatmul.mubr.f32.gmra.mrb[0].mxu0 %v3277
    %v3279 = vpop.f32.mrb[0].mxu0
    %v3280 = vadd.f32 %v3048, %v3279
    %v3281 = vpop.f32.mrb[0].mxu0
    %v3282 = vadd.f32 %v3050, %v3281
    %3283 = vdwg.mxu0
    %v3284 = vand.u32 %v172, 4294901760
    %v3285 = vsub.f32 %v172, %v3284
    %3286 = vmatprep.subr.mxu0 %v3285
    %v3287 = vand.u32 %v171, 4294901760
    %v3288 = vsub.f32 %v171, %v3287
    %3289 = vmatpush1.msra.mxu0 %v3288
    %v3290 = vand.u32 %v178, 4294901760
    %v3291 = vsub.f32 %v178, %v3290
    %3292 = vmatprep.subr.mxu0 %v3291
    %v3293 = vand.u32 %v177, 4294901760
    %v3294 = vsub.f32 %v177, %v3293
    %3295 = vmatpush1.msra.mxu0 %v3294
    %v3296 = vand.u32 %v184, 4294901760
    %v3297 = vsub.f32 %v184, %v3296
    %3298 = vmatprep.subr.mxu0 %v3297
    %v3299 = vand.u32 %v183, 4294901760
    %v3300 = vsub.f32 %v183, %v3299
    %3301 = vmatpush1.msra.mxu0 %v3300
    %v3302 = vand.u32 %v190, 4294901760
    %v3303 = vsub.f32 %v190, %v3302
    %3304 = vmatprep.subr.mxu0 %v3303
    %v3305 = vand.u32 %v189, 4294901760
    %v3306 = vsub.f32 %v189, %v3305
    %3307 = vmatpush1.msra.mxu0 %v3306
    %v3308 = vand.u32 %v196, 4294901760
    %v3309 = vsub.f32 %v196, %v3308
    %3310 = vmatprep.subr.mxu0 %v3309
    %v3311 = vand.u32 %v195, 4294901760
    %v3312 = vsub.f32 %v195, %v3311
    %3313 = vmatpush1.msra.mxu0 %v3312
    %v3314 = vand.u32 %v202, 4294901760
    %v3315 = vsub.f32 %v202, %v3314
    %3316 = vmatprep.subr.mxu0 %v3315
    %v3317 = vand.u32 %v201, 4294901760
    %v3318 = vsub.f32 %v201, %v3317
    %3319 = vmatpush1.msra.mxu0 %v3318
    %v3320 = vand.u32 %v208, 4294901760
    %v3321 = vsub.f32 %v208, %v3320
    %3322 = vmatprep.subr.mxu0 %v3321
    %v3323 = vand.u32 %v207, 4294901760
    %v3324 = vsub.f32 %v207, %v3323
    %3325 = vmatpush1.msra.mxu0 %v3324
    %v3326 = vand.u32 %v214, 4294901760
    %v3327 = vsub.f32 %v214, %v3326
    %3328 = vmatprep.subr.mxu0 %v3327
    %v3329 = vand.u32 %v213, 4294901760
    %v3330 = vsub.f32 %v213, %v3329
    %3331 = vmatpush1.msra.mxu0 %v3330
    %v3332 = vand.u32 %v220, 4294901760
    %v3333 = vsub.f32 %v220, %v3332
    %3334 = vmatprep.subr.mxu0 %v3333
    %v3335 = vand.u32 %v219, 4294901760
    %v3336 = vsub.f32 %v219, %v3335
    %3337 = vmatpush1.msra.mxu0 %v3336
    %v3338 = vand.u32 %v226, 4294901760
    %v3339 = vsub.f32 %v226, %v3338
    %3340 = vmatprep.subr.mxu0 %v3339
    %v3341 = vand.u32 %v225, 4294901760
    %v3342 = vsub.f32 %v225, %v3341
    %3343 = vmatpush1.msra.mxu0 %v3342
    %v3344 = vand.u32 %v232, 4294901760
    %v3345 = vsub.f32 %v232, %v3344
    %3346 = vmatprep.subr.mxu0 %v3345
    %v3347 = vand.u32 %v231, 4294901760
    %v3348 = vsub.f32 %v231, %v3347
    %3349 = vmatpush1.msra.mxu0 %v3348
    %v3350 = vand.u32 %v238, 4294901760
    %v3351 = vsub.f32 %v238, %v3350
    %3352 = vmatprep.subr.mxu0 %v3351
    %v3353 = vand.u32 %v237, 4294901760
    %v3354 = vsub.f32 %v237, %v3353
    %3355 = vmatpush1.msra.mxu0 %v3354
    %v3356 = vand.u32 %v244, 4294901760
    %v3357 = vsub.f32 %v244, %v3356
    %3358 = vmatprep.subr.mxu0 %v3357
    %v3359 = vand.u32 %v243, 4294901760
    %v3360 = vsub.f32 %v243, %v3359
    %3361 = vmatpush1.msra.mxu0 %v3360
    %v3362 = vand.u32 %v250, 4294901760
    %v3363 = vsub.f32 %v250, %v3362
    %3364 = vmatprep.subr.mxu0 %v3363
    %v3365 = vand.u32 %v249, 4294901760
    %v3366 = vsub.f32 %v249, %v3365
    %3367 = vmatpush1.msra.mxu0 %v3366
    %v3368 = vand.u32 %v256, 4294901760
    %v3369 = vsub.f32 %v256, %v3368
    %3370 = vmatprep.subr.mxu0 %v3369
    %v3371 = vand.u32 %v255, 4294901760
    %v3372 = vsub.f32 %v255, %v3371
    %3373 = vmatpush1.msra.mxu0 %v3372
    %v3374 = vand.u32 %v262, 4294901760
    %v3375 = vsub.f32 %v262, %v3374
    %3376 = vmatprep.subr.mxu0 %v3375
    %v3377 = vand.u32 %v261, 4294901760
    %v3378 = vsub.f32 %v261, %v3377
    %3379 = vmatpush1.msra.mxu0 %v3378
    %3380 = vmatprep.subr.mxu0 0.0
    %3381 = vmatpush1.msra.mxu0 0.0
    %3382 = vmatprep.subr.mxu0 0.0
    %3383 = vmatpush1.msra.mxu0 0.0
    %3384 = vmatprep.subr.mxu0 0.0
    %3385 = vmatpush1.msra.mxu0 0.0
    %3386 = vmatprep.subr.mxu0 0.0
    %3387 = vmatpush1.msra.mxu0 0.0
    %3388 = vmatprep.subr.mxu0 0.0
    %3389 = vmatpush1.msra.mxu0 0.0
    %3390 = vmatprep.subr.mxu0 0.0
    %3391 = vmatpush1.msra.mxu0 0.0
    %3392 = vmatprep.subr.mxu0 0.0
    %3393 = vmatpush1.msra.mxu0 0.0
    %3394 = vmatprep.subr.mxu0 0.0
    %3395 = vmatpush1.msra.mxu0 0.0
    %3396 = vmatprep.subr.mxu0 0.0
    %3397 = vmatpush1.msra.mxu0 0.0
    %3398 = vmatprep.subr.mxu0 0.0
    %3399 = vmatpush1.msra.mxu0 0.0
    %3400 = vmatprep.subr.mxu0 0.0
    %3401 = vmatpush1.msra.mxu0 0.0
    %3402 = vmatprep.subr.mxu0 0.0
    %3403 = vmatpush1.msra.mxu0 0.0
    %3404 = vmatprep.subr.mxu0 0.0
    %3405 = vmatpush1.msra.mxu0 0.0
    %3406 = vmatprep.subr.mxu0 0.0
    %3407 = vmatpush1.msra.mxu0 0.0
    %3408 = vmatprep.subr.mxu0 0.0
    %3409 = vmatpush1.msra.mxu0 0.0
    %3410 = vmatprep.subr.mxu0 0.0
    %3411 = vmatpush1.msra.mxu0 0.0
    %3412 = vmatprep.mubr.f32.mxu0 0.0
    %v3413 = vand.u32 %v2943, 4294901760
    %v3414 = vsub.f32 %v2943, %v3413
    %3415 = vmatmul.mubr.f32.gmra.mrb[0].mxu0 %v3414
    %v3416 = vpop.f32.mrb[0].mxu0
    %v3417 = vadd.f32 %v3280, %v3416
    %v3418 = vpop.f32.mrb[0].mxu0
    %v3419 = vadd.f32 %v3282, %v3418
    %3420 = vdwg.mxu0
    %v3421 = vand.u32 %v172, 4294901760
    %3422 = vmatprep.subr.mxu0 %v3421
    %v3423 = vand.u32 %v171, 4294901760
    %3424 = vmatpush1.msra.mxu0 %v3423
    %v3425 = vand.u32 %v178, 4294901760
    %3426 = vmatprep.subr.mxu0 %v3425
    %v3427 = vand.u32 %v177, 4294901760
    %3428 = vmatpush1.msra.mxu0 %v3427
    %v3429 = vand.u32 %v184, 4294901760
    %3430 = vmatprep.subr.mxu0 %v3429
    %v3431 = vand.u32 %v183, 4294901760
    %3432 = vmatpush1.msra.mxu0 %v3431
    %v3433 = vand.u32 %v190, 4294901760
    %3434 = vmatprep.subr.mxu0 %v3433
    %v3435 = vand.u32 %v189, 4294901760
    %3436 = vmatpush1.msra.mxu0 %v3435
    %v3437 = vand.u32 %v196, 4294901760
    %3438 = vmatprep.subr.mxu0 %v3437
    %v3439 = vand.u32 %v195, 4294901760
    %3440 = vmatpush1.msra.mxu0 %v3439
    %v3441 = vand.u32 %v202, 4294901760
    %3442 = vmatprep.subr.mxu0 %v3441
    %v3443 = vand.u32 %v201, 4294901760
    %3444 = vmatpush1.msra.mxu0 %v3443
    %v3445 = vand.u32 %v208, 4294901760
    %3446 = vmatprep.subr.mxu0 %v3445
    %v3447 = vand.u32 %v207, 4294901760
    %3448 = vmatpush1.msra.mxu0 %v3447
    %v3449 = vand.u32 %v214, 4294901760
    %3450 = vmatprep.subr.mxu0 %v3449
    %v3451 = vand.u32 %v213, 4294901760
    %3452 = vmatpush1.msra.mxu0 %v3451
    %v3453 = vand.u32 %v220, 4294901760
    %3454 = vmatprep.subr.mxu0 %v3453
    %v3455 = vand.u32 %v219, 4294901760
    %3456 = vmatpush1.msra.mxu0 %v3455
    %v3457 = vand.u32 %v226, 4294901760
    %3458 = vmatprep.subr.mxu0 %v3457
    %v3459 = vand.u32 %v225, 4294901760
    %3460 = vmatpush1.msra.mxu0 %v3459
    %v3461 = vand.u32 %v232, 4294901760
    %3462 = vmatprep.subr.mxu0 %v3461
    %v3463 = vand.u32 %v231, 4294901760
    %3464 = vmatpush1.msra.mxu0 %v3463
    %v3465 = vand.u32 %v238, 4294901760
    %3466 = vmatprep.subr.mxu0 %v3465
    %v3467 = vand.u32 %v237, 4294901760
    %3468 = vmatpush1.msra.mxu0 %v3467
    %v3469 = vand.u32 %v244, 4294901760
    %3470 = vmatprep.subr.mxu0 %v3469
    %v3471 = vand.u32 %v243, 4294901760
    %3472 = vmatpush1.msra.mxu0 %v3471
    %v3473 = vand.u32 %v250, 4294901760
    %3474 = vmatprep.subr.mxu0 %v3473
    %v3475 = vand.u32 %v249, 4294901760
    %3476 = vmatpush1.msra.mxu0 %v3475
    %v3477 = vand.u32 %v256, 4294901760
    %3478 = vmatprep.subr.mxu0 %v3477
    %v3479 = vand.u32 %v255, 4294901760
    %3480 = vmatpush1.msra.mxu0 %v3479
    %v3481 = vand.u32 %v262, 4294901760
    %3482 = vmatprep.subr.mxu0 %v3481
    %v3483 = vand.u32 %v261, 4294901760
    %3484 = vmatpush1.msra.mxu0 %v3483
    %3485 = vmatprep.subr.mxu0 0.0
    %3486 = vmatpush1.msra.mxu0 0.0
    %3487 = vmatprep.subr.mxu0 0.0
    %3488 = vmatpush1.msra.mxu0 0.0
    %3489 = vmatprep.subr.mxu0 0.0
    %3490 = vmatpush1.msra.mxu0 0.0
    %3491 = vmatprep.subr.mxu0 0.0
    %3492 = vmatpush1.msra.mxu0 0.0
    %3493 = vmatprep.subr.mxu0 0.0
    %3494 = vmatpush1.msra.mxu0 0.0
    %3495 = vmatprep.subr.mxu0 0.0
    %3496 = vmatpush1.msra.mxu0 0.0
    %3497 = vmatprep.subr.mxu0 0.0
    %3498 = vmatpush1.msra.mxu0 0.0
    %3499 = vmatprep.subr.mxu0 0.0
    %3500 = vmatpush1.msra.mxu0 0.0
    %3501 = vmatprep.subr.mxu0 0.0
    %3502 = vmatpush1.msra.mxu0 0.0
    %3503 = vmatprep.subr.mxu0 0.0
    %3504 = vmatpush1.msra.mxu0 0.0
    %3505 = vmatprep.subr.mxu0 0.0
    %3506 = vmatpush1.msra.mxu0 0.0
    %3507 = vmatprep.subr.mxu0 0.0
    %3508 = vmatpush1.msra.mxu0 0.0
    %3509 = vmatprep.subr.mxu0 0.0
    %3510 = vmatpush1.msra.mxu0 0.0
    %3511 = vmatprep.subr.mxu0 0.0
    %3512 = vmatpush1.msra.mxu0 0.0
    %3513 = vmatprep.subr.mxu0 0.0
    %3514 = vmatpush1.msra.mxu0 0.0
    %3515 = vmatprep.subr.mxu0 0.0
    %3516 = vmatpush1.msra.mxu0 0.0
    %3517 = vmatprep.mubr.f32.mxu0 0.0
    %v3518 = vand.u32 %v2943, 4294901760
    %v3519 = vsub.f32 %v2943, %v3518
    %v3520 = vand.u32 %v3519, 4294901760
    %3521 = vmatmul.mubr.f32.gmra.mrb[0].mxu0 %v3520
    %v3522 = vpop.f32.mrb[0].mxu0
    %v3523 = vadd.f32 %v3417, %v3522
    %v3524 = vpop.f32.mrb[0].mxu0
    %v3525 = vadd.f32 %v3419, %v3524
    %3526 = vdwg.mxu0
    %v3527 = vand.u32 %v172, 4294901760
    %v3528 = vsub.f32 %v172, %v3527
    %v3529 = vand.u32 %v3528, 4294901760
    %3530 = vmatprep.subr.mxu0 %v3529
    %v3531 = vand.u32 %v171, 4294901760
    %v3532 = vsub.f32 %v171, %v3531
    %v3533 = vand.u32 %v3532, 4294901760
    %3534 = vmatpush1.msra.mxu0 %v3533
    %v3535 = vand.u32 %v178, 4294901760
    %v3536 = vsub.f32 %v178, %v3535
    %v3537 = vand.u32 %v3536, 4294901760
    %3538 = vmatprep.subr.mxu0 %v3537
    %v3539 = vand.u32 %v177, 4294901760
    %v3540 = vsub.f32 %v177, %v3539
    %v3541 = vand.u32 %v3540, 4294901760
    %3542 = vmatpush1.msra.mxu0 %v3541
    %v3543 = vand.u32 %v184, 4294901760
    %v3544 = vsub.f32 %v184, %v3543
    %v3545 = vand.u32 %v3544, 4294901760
    %3546 = vmatprep.subr.mxu0 %v3545
    %v3547 = vand.u32 %v183, 4294901760
    %v3548 = vsub.f32 %v183, %v3547
    %v3549 = vand.u32 %v3548, 4294901760
    %3550 = vmatpush1.msra.mxu0 %v3549
    %v3551 = vand.u32 %v190, 4294901760
    %v3552 = vsub.f32 %v190, %v3551
    %v3553 = vand.u32 %v3552, 4294901760
    %3554 = vmatprep.subr.mxu0 %v3553
    %v3555 = vand.u32 %v189, 4294901760
    %v3556 = vsub.f32 %v189, %v3555
    %v3557 = vand.u32 %v3556, 4294901760
    %3558 = vmatpush1.msra.mxu0 %v3557
    %v3559 = vand.u32 %v196, 4294901760
    %v3560 = vsub.f32 %v196, %v3559
    %v3561 = vand.u32 %v3560, 4294901760
    %3562 = vmatprep.subr.mxu0 %v3561
    %v3563 = vand.u32 %v195, 4294901760
    %v3564 = vsub.f32 %v195, %v3563
    %v3565 = vand.u32 %v3564, 4294901760
    %3566 = vmatpush1.msra.mxu0 %v3565
    %v3567 = vand.u32 %v202, 4294901760
    %v3568 = vsub.f32 %v202, %v3567
    %v3569 = vand.u32 %v3568, 4294901760
    %3570 = vmatprep.subr.mxu0 %v3569
    %v3571 = vand.u32 %v201, 4294901760
    %v3572 = vsub.f32 %v201, %v3571
    %v3573 = vand.u32 %v3572, 4294901760
    %3574 = vmatpush1.msra.mxu0 %v3573
    %v3575 = vand.u32 %v208, 4294901760
    %v3576 = vsub.f32 %v208, %v3575
    %v3577 = vand.u32 %v3576, 4294901760
    %3578 = vmatprep.subr.mxu0 %v3577
    %v3579 = vand.u32 %v207, 4294901760
    %v3580 = vsub.f32 %v207, %v3579
    %v3581 = vand.u32 %v3580, 4294901760
    %3582 = vmatpush1.msra.mxu0 %v3581
    %v3583 = vand.u32 %v214, 4294901760
    %v3584 = vsub.f32 %v214, %v3583
    %v3585 = vand.u32 %v3584, 4294901760
    %3586 = vmatprep.subr.mxu0 %v3585
    %v3587 = vand.u32 %v213, 4294901760
    %v3588 = vsub.f32 %v213, %v3587
    %v3589 = vand.u32 %v3588, 4294901760
    %3590 = vmatpush1.msra.mxu0 %v3589
    %v3591 = vand.u32 %v220, 4294901760
    %v3592 = vsub.f32 %v220, %v3591
    %v3593 = vand.u32 %v3592, 4294901760
    %3594 = vmatprep.subr.mxu0 %v3593
    %v3595 = vand.u32 %v219, 4294901760
    %v3596 = vsub.f32 %v219, %v3595
    %v3597 = vand.u32 %v3596, 4294901760
    %3598 = vmatpush1.msra.mxu0 %v3597
    %v3599 = vand.u32 %v226, 4294901760
    %v3600 = vsub.f32 %v226, %v3599
    %v3601 = vand.u32 %v3600, 4294901760
    %3602 = vmatprep.subr.mxu0 %v3601
    %v3603 = vand.u32 %v225, 4294901760
    %v3604 = vsub.f32 %v225, %v3603
    %v3605 = vand.u32 %v3604, 4294901760
    %3606 = vmatpush1.msra.mxu0 %v3605
    %v3607 = vand.u32 %v232, 4294901760
    %v3608 = vsub.f32 %v232, %v3607
    %v3609 = vand.u32 %v3608, 4294901760
    %3610 = vmatprep.subr.mxu0 %v3609
    %v3611 = vand.u32 %v231, 4294901760
    %v3612 = vsub.f32 %v231, %v3611
    %v3613 = vand.u32 %v3612, 4294901760
    %3614 = vmatpush1.msra.mxu0 %v3613
    %v3615 = vand.u32 %v238, 4294901760
    %v3616 = vsub.f32 %v238, %v3615
    %v3617 = vand.u32 %v3616, 4294901760
    %3618 = vmatprep.subr.mxu0 %v3617
    %v3619 = vand.u32 %v237, 4294901760
    %v3620 = vsub.f32 %v237, %v3619
    %v3621 = vand.u32 %v3620, 4294901760
    %3622 = vmatpush1.msra.mxu0 %v3621
    %v3623 = vand.u32 %v244, 4294901760
    %v3624 = vsub.f32 %v244, %v3623
    %v3625 = vand.u32 %v3624, 4294901760
    %3626 = vmatprep.subr.mxu0 %v3625
    %v3627 = vand.u32 %v243, 4294901760
    %v3628 = vsub.f32 %v243, %v3627
    %v3629 = vand.u32 %v3628, 4294901760
    %3630 = vmatpush1.msra.mxu0 %v3629
    %v3631 = vand.u32 %v250, 4294901760
    %v3632 = vsub.f32 %v250, %v3631
    %v3633 = vand.u32 %v3632, 4294901760
    %3634 = vmatprep.subr.mxu0 %v3633
    %v3635 = vand.u32 %v249, 4294901760
    %v3636 = vsub.f32 %v249, %v3635
    %v3637 = vand.u32 %v3636, 4294901760
    %3638 = vmatpush1.msra.mxu0 %v3637
    %v3639 = vand.u32 %v256, 4294901760
    %v3640 = vsub.f32 %v256, %v3639
    %v3641 = vand.u32 %v3640, 4294901760
    %3642 = vmatprep.subr.mxu0 %v3641
    %v3643 = vand.u32 %v255, 4294901760
    %v3644 = vsub.f32 %v255, %v3643
    %v3645 = vand.u32 %v3644, 4294901760
    %3646 = vmatpush1.msra.mxu0 %v3645
    %v3647 = vand.u32 %v262, 4294901760
    %v3648 = vsub.f32 %v262, %v3647
    %v3649 = vand.u32 %v3648, 4294901760
    %3650 = vmatprep.subr.mxu0 %v3649
    %v3651 = vand.u32 %v261, 4294901760
    %v3652 = vsub.f32 %v261, %v3651
    %v3653 = vand.u32 %v3652, 4294901760
    %3654 = vmatpush1.msra.mxu0 %v3653
    %3655 = vmatprep.subr.mxu0 0.0
    %3656 = vmatpush1.msra.mxu0 0.0
    %3657 = vmatprep.subr.mxu0 0.0
    %3658 = vmatpush1.msra.mxu0 0.0
    %3659 = vmatprep.subr.mxu0 0.0
    %3660 = vmatpush1.msra.mxu0 0.0
    %3661 = vmatprep.subr.mxu0 0.0
    %3662 = vmatpush1.msra.mxu0 0.0
    %3663 = vmatprep.subr.mxu0 0.0
    %3664 = vmatpush1.msra.mxu0 0.0
    %3665 = vmatprep.subr.mxu0 0.0
    %3666 = vmatpush1.msra.mxu0 0.0
    %3667 = vmatprep.subr.mxu0 0.0
    %3668 = vmatpush1.msra.mxu0 0.0
    %3669 = vmatprep.subr.mxu0 0.0
    %3670 = vmatpush1.msra.mxu0 0.0
    %3671 = vmatprep.subr.mxu0 0.0
    %3672 = vmatpush1.msra.mxu0 0.0
    %3673 = vmatprep.subr.mxu0 0.0
    %3674 = vmatpush1.msra.mxu0 0.0
    %3675 = vmatprep.subr.mxu0 0.0
    %3676 = vmatpush1.msra.mxu0 0.0
    %3677 = vmatprep.subr.mxu0 0.0
    %3678 = vmatpush1.msra.mxu0 0.0
    %3679 = vmatprep.subr.mxu0 0.0
    %3680 = vmatpush1.msra.mxu0 0.0
    %3681 = vmatprep.subr.mxu0 0.0
    %3682 = vmatpush1.msra.mxu0 0.0
    %3683 = vmatprep.subr.mxu0 0.0
    %3684 = vmatpush1.msra.mxu0 0.0
    %3685 = vmatprep.subr.mxu0 0.0
    %3686 = vmatpush1.msra.mxu0 0.0
    %3687 = vmatprep.mubr.f32.mxu0 0.0
    %v3688 = vand.u32 %v2943, 4294901760
    %3689 = vmatmul.mubr.f32.gmra.mrb[0].mxu0 %v3688
    %v3690 = vpop.f32.mrb[0].mxu0
    %v3691 = vadd.f32 %v3523, %v3690
    %v3692 = vpop.f32.mrb[0].mxu0
    %v3693 = vadd.f32 %v3525, %v3692
    %3694 = vdwg.mxu0
    %v3695 = vand.u32 %v172, 4294901760
    %3696 = vmatprep.subr.mxu0 %v3695
    %v3697 = vand.u32 %v171, 4294901760
    %3698 = vmatpush1.msra.mxu0 %v3697
    %v3699 = vand.u32 %v178, 4294901760
    %3700 = vmatprep.subr.mxu0 %v3699
    %v3701 = vand.u32 %v177, 4294901760
    %3702 = vmatpush1.msra.mxu0 %v3701
    %v3703 = vand.u32 %v184, 4294901760
    %3704 = vmatprep.subr.mxu0 %v3703
    %v3705 = vand.u32 %v183, 4294901760
    %3706 = vmatpush1.msra.mxu0 %v3705
    %v3707 = vand.u32 %v190, 4294901760
    %3708 = vmatprep.subr.mxu0 %v3707
    %v3709 = vand.u32 %v189, 4294901760
    %3710 = vmatpush1.msra.mxu0 %v3709
    %v3711 = vand.u32 %v196, 4294901760
    %3712 = vmatprep.subr.mxu0 %v3711
    %v3713 = vand.u32 %v195, 4294901760
    %3714 = vmatpush1.msra.mxu0 %v3713
    %v3715 = vand.u32 %v202, 4294901760
    %3716 = vmatprep.subr.mxu0 %v3715
    %v3717 = vand.u32 %v201, 4294901760
    %3718 = vmatpush1.msra.mxu0 %v3717
    %v3719 = vand.u32 %v208, 4294901760
    %3720 = vmatprep.subr.mxu0 %v3719
    %v3721 = vand.u32 %v207, 4294901760
    %3722 = vmatpush1.msra.mxu0 %v3721
    %v3723 = vand.u32 %v214, 4294901760
    %3724 = vmatprep.subr.mxu0 %v3723
    %v3725 = vand.u32 %v213, 4294901760
    %3726 = vmatpush1.msra.mxu0 %v3725
    %v3727 = vand.u32 %v220, 4294901760
    %3728 = vmatprep.subr.mxu0 %v3727
    %v3729 = vand.u32 %v219, 4294901760
    %3730 = vmatpush1.msra.mxu0 %v3729
    %v3731 = vand.u32 %v226, 4294901760
    %3732 = vmatprep.subr.mxu0 %v3731
    %v3733 = vand.u32 %v225, 4294901760
    %3734 = vmatpush1.msra.mxu0 %v3733
    %v3735 = vand.u32 %v232, 4294901760
    %3736 = vmatprep.subr.mxu0 %v3735
    %v3737 = vand.u32 %v231, 4294901760
    %3738 = vmatpush1.msra.mxu0 %v3737
    %v3739 = vand.u32 %v238, 4294901760
    %3740 = vmatprep.subr.mxu0 %v3739
    %v3741 = vand.u32 %v237, 4294901760
    %3742 = vmatpush1.msra.mxu0 %v3741
    %v3743 = vand.u32 %v244, 4294901760
    %3744 = vmatprep.subr.mxu0 %v3743
    %v3745 = vand.u32 %v243, 4294901760
    %3746 = vmatpush1.msra.mxu0 %v3745
    %v3747 = vand.u32 %v250, 4294901760
    %3748 = vmatprep.subr.mxu0 %v3747
    %v3749 = vand.u32 %v249, 4294901760
    %3750 = vmatpush1.msra.mxu0 %v3749
    %v3751 = vand.u32 %v256, 4294901760
    %3752 = vmatprep.subr.mxu0 %v3751
    %v3753 = vand.u32 %v255, 4294901760
    %3754 = vmatpush1.msra.mxu0 %v3753
    %v3755 = vand.u32 %v262, 4294901760
    %3756 = vmatprep.subr.mxu0 %v3755
    %v3757 = vand.u32 %v261, 4294901760
    %3758 = vmatpush1.msra.mxu0 %v3757
    %3759 = vmatprep.subr.mxu0 0.0
    %3760 = vmatpush1.msra.mxu0 0.0
    %3761 = vmatprep.subr.mxu0 0.0
    %3762 = vmatpush1.msra.mxu0 0.0
    %3763 = vmatprep.subr.mxu0 0.0
    %3764 = vmatpush1.msra.mxu0 0.0
    %3765 = vmatprep.subr.mxu0 0.0
    %3766 = vmatpush1.msra.mxu0 0.0
    %3767 = vmatprep.subr.mxu0 0.0
    %3768 = vmatpush1.msra.mxu0 0.0
    %3769 = vmatprep.subr.mxu0 0.0
    %3770 = vmatpush1.msra.mxu0 0.0
    %3771 = vmatprep.subr.mxu0 0.0
    %3772 = vmatpush1.msra.mxu0 0.0
    %3773 = vmatprep.subr.mxu0 0.0
    %3774 = vmatpush1.msra.mxu0 0.0
    %3775 = vmatprep.subr.mxu0 0.0
    %3776 = vmatpush1.msra.mxu0 0.0
    %3777 = vmatprep.subr.mxu0 0.0
    %3778 = vmatpush1.msra.mxu0 0.0
    %3779 = vmatprep.subr.mxu0 0.0
    %3780 = vmatpush1.msra.mxu0 0.0
    %3781 = vmatprep.subr.mxu0 0.0
    %3782 = vmatpush1.msra.mxu0 0.0
    %3783 = vmatprep.subr.mxu0 0.0
    %3784 = vmatpush1.msra.mxu0 0.0
    %3785 = vmatprep.subr.mxu0 0.0
    %3786 = vmatpush1.msra.mxu0 0.0
    %3787 = vmatprep.subr.mxu0 0.0
    %3788 = vmatpush1.msra.mxu0 0.0
    %3789 = vmatprep.subr.mxu0 0.0
    %3790 = vmatpush1.msra.mxu0 0.0
    %3791 = vmatprep.mubr.f32.mxu0 0.0
    %v3792 = vand.u32 %v2943, 4294901760
    %3793 = vmatmul.mubr.f32.gmra.mrb[0].mxu0 %v3792
    %v3794 = vpop.f32.mrb[0].mxu0
    %v3795 = vadd.f32 %v3691, %v3794
    %v3796 = vpop.f32.mrb[0].mxu0
    %v3797 = vadd.f32 %v3693, %v3796
    %3798 = vdwg.mxu0
    %v3799 = vand.u32 %v174, 4294901760
    %3800 = vmatprep.subr.mxu0 %v3799
    %v3801 = vand.u32 %v173, 4294901760
    %3802 = vmatpush1.msra.mxu0 %v3801
    %v3803 = vand.u32 %v180, 4294901760
    %3804 = vmatprep.subr.mxu0 %v3803
    %v3805 = vand.u32 %v179, 4294901760
    %3806 = vmatpush1.msra.mxu0 %v3805
    %v3807 = vand.u32 %v186, 4294901760
    %3808 = vmatprep.subr.mxu0 %v3807
    %v3809 = vand.u32 %v185, 4294901760
    %3810 = vmatpush1.msra.mxu0 %v3809
    %v3811 = vand.u32 %v192, 4294901760
    %3812 = vmatprep.subr.mxu0 %v3811
    %v3813 = vand.u32 %v191, 4294901760
    %3814 = vmatpush1.msra.mxu0 %v3813
    %v3815 = vand.u32 %v198, 4294901760
    %3816 = vmatprep.subr.mxu0 %v3815
    %v3817 = vand.u32 %v197, 4294901760
    %3818 = vmatpush1.msra.mxu0 %v3817
    %v3819 = vand.u32 %v204, 4294901760
    %3820 = vmatprep.subr.mxu0 %v3819
    %v3821 = vand.u32 %v203, 4294901760
    %3822 = vmatpush1.msra.mxu0 %v3821
    %v3823 = vand.u32 %v210, 4294901760
    %3824 = vmatprep.subr.mxu0 %v3823
    %v3825 = vand.u32 %v209, 4294901760
    %3826 = vmatpush1.msra.mxu0 %v3825
    %v3827 = vand.u32 %v216, 4294901760
    %3828 = vmatprep.subr.mxu0 %v3827
    %v3829 = vand.u32 %v215, 4294901760
    %3830 = vmatpush1.msra.mxu0 %v3829
    %v3831 = vand.u32 %v222, 4294901760
    %3832 = vmatprep.subr.mxu0 %v3831
    %v3833 = vand.u32 %v221, 4294901760
    %3834 = vmatpush1.msra.mxu0 %v3833
    %v3835 = vand.u32 %v228, 4294901760
    %3836 = vmatprep.subr.mxu0 %v3835
    %v3837 = vand.u32 %v227, 4294901760
    %3838 = vmatpush1.msra.mxu0 %v3837
    %v3839 = vand.u32 %v234, 4294901760
    %3840 = vmatprep.subr.mxu0 %v3839
    %v3841 = vand.u32 %v233, 4294901760
    %3842 = vmatpush1.msra.mxu0 %v3841
    %v3843 = vand.u32 %v240, 4294901760
    %3844 = vmatprep.subr.mxu0 %v3843
    %v3845 = vand.u32 %v239, 4294901760
    %3846 = vmatpush1.msra.mxu0 %v3845
    %v3847 = vand.u32 %v246, 4294901760
    %3848 = vmatprep.subr.mxu0 %v3847
    %v3849 = vand.u32 %v245, 4294901760
    %3850 = vmatpush1.msra.mxu0 %v3849
    %v3851 = vand.u32 %v252, 4294901760
    %3852 = vmatprep.subr.mxu0 %v3851
    %v3853 = vand.u32 %v251, 4294901760
    %3854 = vmatpush1.msra.mxu0 %v3853
    %v3855 = vand.u32 %v258, 4294901760
    %3856 = vmatprep.subr.mxu0 %v3855
    %v3857 = vand.u32 %v257, 4294901760
    %3858 = vmatpush1.msra.mxu0 %v3857
    %v3859 = vand.u32 %v264, 4294901760
    %3860 = vmatprep.subr.mxu0 %v3859
    %v3861 = vand.u32 %v263, 4294901760
    %3862 = vmatpush1.msra.mxu0 %v3861
    %3863 = vmatprep.subr.mxu0 0.0
    %3864 = vmatpush1.msra.mxu0 0.0
    %3865 = vmatprep.subr.mxu0 0.0
    %3866 = vmatpush1.msra.mxu0 0.0
    %3867 = vmatprep.subr.mxu0 0.0
    %3868 = vmatpush1.msra.mxu0 0.0
    %3869 = vmatprep.subr.mxu0 0.0
    %3870 = vmatpush1.msra.mxu0 0.0
    %3871 = vmatprep.subr.mxu0 0.0
    %3872 = vmatpush1.msra.mxu0 0.0
    %3873 = vmatprep.subr.mxu0 0.0
    %3874 = vmatpush1.msra.mxu0 0.0
    %3875 = vmatprep.subr.mxu0 0.0
    %3876 = vmatpush1.msra.mxu0 0.0
    %3877 = vmatprep.subr.mxu0 0.0
    %3878 = vmatpush1.msra.mxu0 0.0
    %3879 = vmatprep.subr.mxu0 0.0
    %3880 = vmatpush1.msra.mxu0 0.0
    %3881 = vmatprep.subr.mxu0 0.0
    %3882 = vmatpush1.msra.mxu0 0.0
    %3883 = vmatprep.subr.mxu0 0.0
    %3884 = vmatpush1.msra.mxu0 0.0
    %3885 = vmatprep.subr.mxu0 0.0
    %3886 = vmatpush1.msra.mxu0 0.0
    %3887 = vmatprep.subr.mxu0 0.0
    %3888 = vmatpush1.msra.mxu0 0.0
    %3889 = vmatprep.subr.mxu0 0.0
    %3890 = vmatpush1.msra.mxu0 0.0
    %3891 = vmatprep.subr.mxu0 0.0
    %3892 = vmatpush1.msra.mxu0 0.0
    %3893 = vmatprep.subr.mxu0 0.0
    %3894 = vmatpush1.msra.mxu0 0.0
    %3895 = vmatprep.mubr.f32.mxu0 0.0
    %v3896 = vand.u32 %v2943, 4294901760
    %v3897 = vsub.f32 %v2943, %v3896
    %v3898 = vand.u32 %v3897, 4294901760
    %v3899 = vsub.f32 %v3897, %v3898
    %v3900 = vand.u32 %v3899, 4294901760
    %3901 = vmatmul.mubr.f32.gmra.mrb[0].mxu0 %v3900
    %v3902 = vpop.f32.mrb[0].mxu0
    %v3903 = vadd.f32 0.0, %v3902
    %v3904 = vpop.f32.mrb[0].mxu0
    %v3905 = vadd.f32 0.0, %v3904
    %3906 = vdwg.mxu0
    %v3907 = vand.u32 %v174, 4294901760
    %v3908 = vsub.f32 %v174, %v3907
    %v3909 = vand.u32 %v3908, 4294901760
    %v3910 = vsub.f32 %v3908, %v3909
    %v3911 = vand.u32 %v3910, 4294901760
    %3912 = vmatprep.subr.mxu0 %v3911
    %v3913 = vand.u32 %v173, 4294901760
    %v3914 = vsub.f32 %v173, %v3913
    %v3915 = vand.u32 %v3914, 4294901760
    %v3916 = vsub.f32 %v3914, %v3915
    %v3917 = vand.u32 %v3916, 4294901760
    %3918 = vmatpush1.msra.mxu0 %v3917
    %v3919 = vand.u32 %v180, 4294901760
    %v3920 = vsub.f32 %v180, %v3919
    %v3921 = vand.u32 %v3920, 4294901760
    %v3922 = vsub.f32 %v3920, %v3921
    %v3923 = vand.u32 %v3922, 4294901760
    %3924 = vmatprep.subr.mxu0 %v3923
    %v3925 = vand.u32 %v179, 4294901760
    %v3926 = vsub.f32 %v179, %v3925
    %v3927 = vand.u32 %v3926, 4294901760
    %v3928 = vsub.f32 %v3926, %v3927
    %v3929 = vand.u32 %v3928, 4294901760
    %3930 = vmatpush1.msra.mxu0 %v3929
    %v3931 = vand.u32 %v186, 4294901760
    %v3932 = vsub.f32 %v186, %v3931
    %v3933 = vand.u32 %v3932, 4294901760
    %v3934 = vsub.f32 %v3932, %v3933
    %v3935 = vand.u32 %v3934, 4294901760
    %3936 = vmatprep.subr.mxu0 %v3935
    %v3937 = vand.u32 %v185, 4294901760
    %v3938 = vsub.f32 %v185, %v3937
    %v3939 = vand.u32 %v3938, 4294901760
    %v3940 = vsub.f32 %v3938, %v3939
    %v3941 = vand.u32 %v3940, 4294901760
    %3942 = vmatpush1.msra.mxu0 %v3941
    %v3943 = vand.u32 %v192, 4294901760
    %v3944 = vsub.f32 %v192, %v3943
    %v3945 = vand.u32 %v3944, 4294901760
    %v3946 = vsub.f32 %v3944, %v3945
    %v3947 = vand.u32 %v3946, 4294901760
    %3948 = vmatprep.subr.mxu0 %v3947
    %v3949 = vand.u32 %v191, 4294901760
    %v3950 = vsub.f32 %v191, %v3949
    %v3951 = vand.u32 %v3950, 4294901760
    %v3952 = vsub.f32 %v3950, %v3951
    %v3953 = vand.u32 %v3952, 4294901760
    %3954 = vmatpush1.msra.mxu0 %v3953
    %v3955 = vand.u32 %v198, 4294901760
    %v3956 = vsub.f32 %v198, %v3955
    %v3957 = vand.u32 %v3956, 4294901760
    %v3958 = vsub.f32 %v3956, %v3957
    %v3959 = vand.u32 %v3958, 4294901760
    %3960 = vmatprep.subr.mxu0 %v3959
    %v3961 = vand.u32 %v197, 4294901760
    %v3962 = vsub.f32 %v197, %v3961
    %v3963 = vand.u32 %v3962, 4294901760
    %v3964 = vsub.f32 %v3962, %v3963
    %v3965 = vand.u32 %v3964, 4294901760
    %3966 = vmatpush1.msra.mxu0 %v3965
    %v3967 = vand.u32 %v204, 4294901760
    %v3968 = vsub.f32 %v204, %v3967
    %v3969 = vand.u32 %v3968, 4294901760
    %v3970 = vsub.f32 %v3968, %v3969
    %v3971 = vand.u32 %v3970, 4294901760
    %3972 = vmatprep.subr.mxu0 %v3971
    %v3973 = vand.u32 %v203, 4294901760
    %v3974 = vsub.f32 %v203, %v3973
    %v3975 = vand.u32 %v3974, 4294901760
    %v3976 = vsub.f32 %v3974, %v3975
    %v3977 = vand.u32 %v3976, 4294901760
    %3978 = vmatpush1.msra.mxu0 %v3977
    %v3979 = vand.u32 %v210, 4294901760
    %v3980 = vsub.f32 %v210, %v3979
    %v3981 = vand.u32 %v3980, 4294901760
    %v3982 = vsub.f32 %v3980, %v3981
    %v3983 = vand.u32 %v3982, 4294901760
    %3984 = vmatprep.subr.mxu0 %v3983
    %v3985 = vand.u32 %v209, 4294901760
    %v3986 = vsub.f32 %v209, %v3985
    %v3987 = vand.u32 %v3986, 4294901760
    %v3988 = vsub.f32 %v3986, %v3987
    %v3989 = vand.u32 %v3988, 4294901760
    %3990 = vmatpush1.msra.mxu0 %v3989
    %v3991 = vand.u32 %v216, 4294901760
    %v3992 = vsub.f32 %v216, %v3991
    %v3993 = vand.u32 %v3992, 4294901760
    %v3994 = vsub.f32 %v3992, %v3993
    %v3995 = vand.u32 %v3994, 4294901760
    %3996 = vmatprep.subr.mxu0 %v3995
    %v3997 = vand.u32 %v215, 4294901760
    %v3998 = vsub.f32 %v215, %v3997
    %v3999 = vand.u32 %v3998, 4294901760
    %v4000 = vsub.f32 %v3998, %v3999
    %v4001 = vand.u32 %v4000, 4294901760
    %4002 = vmatpush1.msra.mxu0 %v4001
    %v4003 = vand.u32 %v222, 4294901760
    %v4004 = vsub.f32 %v222, %v4003
    %v4005 = vand.u32 %v4004, 4294901760
    %v4006 = vsub.f32 %v4004, %v4005
    %v4007 = vand.u32 %v4006, 4294901760
    %4008 = vmatprep.subr.mxu0 %v4007
    %v4009 = vand.u32 %v221, 4294901760
    %v4010 = vsub.f32 %v221, %v4009
    %v4011 = vand.u32 %v4010, 4294901760
    %v4012 = vsub.f32 %v4010, %v4011
    %v4013 = vand.u32 %v4012, 4294901760
    %4014 = vmatpush1.msra.mxu0 %v4013
    %v4015 = vand.u32 %v228, 4294901760
    %v4016 = vsub.f32 %v228, %v4015
    %v4017 = vand.u32 %v4016, 4294901760
    %v4018 = vsub.f32 %v4016, %v4017
    %v4019 = vand.u32 %v4018, 4294901760
    %4020 = vmatprep.subr.mxu0 %v4019
    %v4021 = vand.u32 %v227, 4294901760
    %v4022 = vsub.f32 %v227, %v4021
    %v4023 = vand.u32 %v4022, 4294901760
    %v4024 = vsub.f32 %v4022, %v4023
    %v4025 = vand.u32 %v4024, 4294901760
    %4026 = vmatpush1.msra.mxu0 %v4025
    %v4027 = vand.u32 %v234, 4294901760
    %v4028 = vsub.f32 %v234, %v4027
    %v4029 = vand.u32 %v4028, 4294901760
    %v4030 = vsub.f32 %v4028, %v4029
    %v4031 = vand.u32 %v4030, 4294901760
    %4032 = vmatprep.subr.mxu0 %v4031
    %v4033 = vand.u32 %v233, 4294901760
    %v4034 = vsub.f32 %v233, %v4033
    %v4035 = vand.u32 %v4034, 4294901760
    %v4036 = vsub.f32 %v4034, %v4035
    %v4037 = vand.u32 %v4036, 4294901760
    %4038 = vmatpush1.msra.mxu0 %v4037
    %v4039 = vand.u32 %v240, 4294901760
    %v4040 = vsub.f32 %v240, %v4039
    %v4041 = vand.u32 %v4040, 4294901760
    %v4042 = vsub.f32 %v4040, %v4041
    %v4043 = vand.u32 %v4042, 4294901760
    %4044 = vmatprep.subr.mxu0 %v4043
    %v4045 = vand.u32 %v239, 4294901760
    %v4046 = vsub.f32 %v239, %v4045
    %v4047 = vand.u32 %v4046, 4294901760
    %v4048 = vsub.f32 %v4046, %v4047
    %v4049 = vand.u32 %v4048, 4294901760
    %4050 = vmatpush1.msra.mxu0 %v4049
    %v4051 = vand.u32 %v246, 4294901760
    %v4052 = vsub.f32 %v246, %v4051
    %v4053 = vand.u32 %v4052, 4294901760
    %v4054 = vsub.f32 %v4052, %v4053
    %v4055 = vand.u32 %v4054, 4294901760
    %4056 = vmatprep.subr.mxu0 %v4055
    %v4057 = vand.u32 %v245, 4294901760
    %v4058 = vsub.f32 %v245, %v4057
    %v4059 = vand.u32 %v4058, 4294901760
    %v4060 = vsub.f32 %v4058, %v4059
    %v4061 = vand.u32 %v4060, 4294901760
    %4062 = vmatpush1.msra.mxu0 %v4061
    %v4063 = vand.u32 %v252, 4294901760
    %v4064 = vsub.f32 %v252, %v4063
    %v4065 = vand.u32 %v4064, 4294901760
    %v4066 = vsub.f32 %v4064, %v4065
    %v4067 = vand.u32 %v4066, 4294901760
    %4068 = vmatprep.subr.mxu0 %v4067
    %v4069 = vand.u32 %v251, 4294901760
    %v4070 = vsub.f32 %v251, %v4069
    %v4071 = vand.u32 %v4070, 4294901760
    %v4072 = vsub.f32 %v4070, %v4071
    %v4073 = vand.u32 %v4072, 4294901760
    %4074 = vmatpush1.msra.mxu0 %v4073
    %v4075 = vand.u32 %v258, 4294901760
    %v4076 = vsub.f32 %v258, %v4075
    %v4077 = vand.u32 %v4076, 4294901760
    %v4078 = vsub.f32 %v4076, %v4077
    %v4079 = vand.u32 %v4078, 4294901760
    %4080 = vmatprep.subr.mxu0 %v4079
    %v4081 = vand.u32 %v257, 4294901760
    %v4082 = vsub.f32 %v257, %v4081
    %v4083 = vand.u32 %v4082, 4294901760
    %v4084 = vsub.f32 %v4082, %v4083
    %v4085 = vand.u32 %v4084, 4294901760
    %4086 = vmatpush1.msra.mxu0 %v4085
    %v4087 = vand.u32 %v264, 4294901760
    %v4088 = vsub.f32 %v264, %v4087
    %v4089 = vand.u32 %v4088, 4294901760
    %v4090 = vsub.f32 %v4088, %v4089
    %v4091 = vand.u32 %v4090, 4294901760
    %4092 = vmatprep.subr.mxu0 %v4091
    %v4093 = vand.u32 %v263, 4294901760
    %v4094 = vsub.f32 %v263, %v4093
    %v4095 = vand.u32 %v4094, 4294901760
    %v4096 = vsub.f32 %v4094, %v4095
    %v4097 = vand.u32 %v4096, 4294901760
    %4098 = vmatpush1.msra.mxu0 %v4097
    %4099 = vmatprep.subr.mxu0 0.0
    %4100 = vmatpush1.msra.mxu0 0.0
    %4101 = vmatprep.subr.mxu0 0.0
    %4102 = vmatpush1.msra.mxu0 0.0
    %4103 = vmatprep.subr.mxu0 0.0
    %4104 = vmatpush1.msra.mxu0 0.0
    %4105 = vmatprep.subr.mxu0 0.0
    %4106 = vmatpush1.msra.mxu0 0.0
    %4107 = vmatprep.subr.mxu0 0.0
    %4108 = vmatpush1.msra.mxu0 0.0
    %4109 = vmatprep.subr.mxu0 0.0
    %4110 = vmatpush1.msra.mxu0 0.0
    %4111 = vmatprep.subr.mxu0 0.0
    %4112 = vmatpush1.msra.mxu0 0.0
    %4113 = vmatprep.subr.mxu0 0.0
    %4114 = vmatpush1.msra.mxu0 0.0
    %4115 = vmatprep.subr.mxu0 0.0
    %4116 = vmatpush1.msra.mxu0 0.0
    %4117 = vmatprep.subr.mxu0 0.0
    %4118 = vmatpush1.msra.mxu0 0.0
    %4119 = vmatprep.subr.mxu0 0.0
    %4120 = vmatpush1.msra.mxu0 0.0
    %4121 = vmatprep.subr.mxu0 0.0
    %4122 = vmatpush1.msra.mxu0 0.0
    %4123 = vmatprep.subr.mxu0 0.0
    %4124 = vmatpush1.msra.mxu0 0.0
    %4125 = vmatprep.subr.mxu0 0.0
    %4126 = vmatpush1.msra.mxu0 0.0
    %4127 = vmatprep.subr.mxu0 0.0
    %4128 = vmatpush1.msra.mxu0 0.0
    %4129 = vmatprep.subr.mxu0 0.0
    %4130 = vmatpush1.msra.mxu0 0.0
    %4131 = vmatprep.mubr.f32.mxu0 0.0
    %v4132 = vand.u32 %v2943, 4294901760
    %4133 = vmatmul.mubr.f32.gmra.mrb[0].mxu0 %v4132
    %v4134 = vpop.f32.mrb[0].mxu0
    %v4135 = vadd.f32 %v3903, %v4134
    %v4136 = vpop.f32.mrb[0].mxu0
    %v4137 = vadd.f32 %v3905, %v4136
    %4138 = vdwg.mxu0
    %v4139 = vand.u32 %v174, 4294901760
    %v4140 = vsub.f32 %v174, %v4139
    %4141 = vmatprep.subr.mxu0 %v4140
    %v4142 = vand.u32 %v173, 4294901760
    %v4143 = vsub.f32 %v173, %v4142
    %4144 = vmatpush1.msra.mxu0 %v4143
    %v4145 = vand.u32 %v180, 4294901760
    %v4146 = vsub.f32 %v180, %v4145
    %4147 = vmatprep.subr.mxu0 %v4146
    %v4148 = vand.u32 %v179, 4294901760
    %v4149 = vsub.f32 %v179, %v4148
    %4150 = vmatpush1.msra.mxu0 %v4149
    %v4151 = vand.u32 %v186, 4294901760
    %v4152 = vsub.f32 %v186, %v4151
    %4153 = vmatprep.subr.mxu0 %v4152
    %v4154 = vand.u32 %v185, 4294901760
    %v4155 = vsub.f32 %v185, %v4154
    %4156 = vmatpush1.msra.mxu0 %v4155
    %v4157 = vand.u32 %v192, 4294901760
    %v4158 = vsub.f32 %v192, %v4157
    %4159 = vmatprep.subr.mxu0 %v4158
    %v4160 = vand.u32 %v191, 4294901760
    %v4161 = vsub.f32 %v191, %v4160
    %4162 = vmatpush1.msra.mxu0 %v4161
    %v4163 = vand.u32 %v198, 4294901760
    %v4164 = vsub.f32 %v198, %v4163
    %4165 = vmatprep.subr.mxu0 %v4164
    %v4166 = vand.u32 %v197, 4294901760
    %v4167 = vsub.f32 %v197, %v4166
    %4168 = vmatpush1.msra.mxu0 %v4167
    %v4169 = vand.u32 %v204, 4294901760
    %v4170 = vsub.f32 %v204, %v4169
    %4171 = vmatprep.subr.mxu0 %v4170
    %v4172 = vand.u32 %v203, 4294901760
    %v4173 = vsub.f32 %v203, %v4172
    %4174 = vmatpush1.msra.mxu0 %v4173
    %v4175 = vand.u32 %v210, 4294901760
    %v4176 = vsub.f32 %v210, %v4175
    %4177 = vmatprep.subr.mxu0 %v4176
    %v4178 = vand.u32 %v209, 4294901760
    %v4179 = vsub.f32 %v209, %v4178
    %4180 = vmatpush1.msra.mxu0 %v4179
    %v4181 = vand.u32 %v216, 4294901760
    %v4182 = vsub.f32 %v216, %v4181
    %4183 = vmatprep.subr.mxu0 %v4182
    %v4184 = vand.u32 %v215, 4294901760
    %v4185 = vsub.f32 %v215, %v4184
    %4186 = vmatpush1.msra.mxu0 %v4185
    %v4187 = vand.u32 %v222, 4294901760
    %v4188 = vsub.f32 %v222, %v4187
    %4189 = vmatprep.subr.mxu0 %v4188
    %v4190 = vand.u32 %v221, 4294901760
    %v4191 = vsub.f32 %v221, %v4190
    %4192 = vmatpush1.msra.mxu0 %v4191
    %v4193 = vand.u32 %v228, 4294901760
    %v4194 = vsub.f32 %v228, %v4193
    %4195 = vmatprep.subr.mxu0 %v4194
    %v4196 = vand.u32 %v227, 4294901760
    %v4197 = vsub.f32 %v227, %v4196
    %4198 = vmatpush1.msra.mxu0 %v4197
    %v4199 = vand.u32 %v234, 4294901760
    %v4200 = vsub.f32 %v234, %v4199
    %4201 = vmatprep.subr.mxu0 %v4200
    %v4202 = vand.u32 %v233, 4294901760
    %v4203 = vsub.f32 %v233, %v4202
    %4204 = vmatpush1.msra.mxu0 %v4203
    %v4205 = vand.u32 %v240, 4294901760
    %v4206 = vsub.f32 %v240, %v4205
    %4207 = vmatprep.subr.mxu0 %v4206
    %v4208 = vand.u32 %v239, 4294901760
    %v4209 = vsub.f32 %v239, %v4208
    %4210 = vmatpush1.msra.mxu0 %v4209
    %v4211 = vand.u32 %v246, 4294901760
    %v4212 = vsub.f32 %v246, %v4211
    %4213 = vmatprep.subr.mxu0 %v4212
    %v4214 = vand.u32 %v245, 4294901760
    %v4215 = vsub.f32 %v245, %v4214
    %4216 = vmatpush1.msra.mxu0 %v4215
    %v4217 = vand.u32 %v252, 4294901760
    %v4218 = vsub.f32 %v252, %v4217
    %4219 = vmatprep.subr.mxu0 %v4218
    %v4220 = vand.u32 %v251, 4294901760
    %v4221 = vsub.f32 %v251, %v4220
    %4222 = vmatpush1.msra.mxu0 %v4221
    %v4223 = vand.u32 %v258, 4294901760
    %v4224 = vsub.f32 %v258, %v4223
    %4225 = vmatprep.subr.mxu0 %v4224
    %v4226 = vand.u32 %v257, 4294901760
    %v4227 = vsub.f32 %v257, %v4226
    %4228 = vmatpush1.msra.mxu0 %v4227
    %v4229 = vand.u32 %v264, 4294901760
    %v4230 = vsub.f32 %v264, %v4229
    %4231 = vmatprep.subr.mxu0 %v4230
    %v4232 = vand.u32 %v263, 4294901760
    %v4233 = vsub.f32 %v263, %v4232
    %4234 = vmatpush1.msra.mxu0 %v4233
    %4235 = vmatprep.subr.mxu0 0.0
    %4236 = vmatpush1.msra.mxu0 0.0
    %4237 = vmatprep.subr.mxu0 0.0
    %4238 = vmatpush1.msra.mxu0 0.0
    %4239 = vmatprep.subr.mxu0 0.0
    %4240 = vmatpush1.msra.mxu0 0.0
    %4241 = vmatprep.subr.mxu0 0.0
    %4242 = vmatpush1.msra.mxu0 0.0
    %4243 = vmatprep.subr.mxu0 0.0
    %4244 = vmatpush1.msra.mxu0 0.0
    %4245 = vmatprep.subr.mxu0 0.0
    %4246 = vmatpush1.msra.mxu0 0.0
    %4247 = vmatprep.subr.mxu0 0.0
    %4248 = vmatpush1.msra.mxu0 0.0
    %4249 = vmatprep.subr.mxu0 0.0
    %4250 = vmatpush1.msra.mxu0 0.0
    %4251 = vmatprep.subr.mxu0 0.0
    %4252 = vmatpush1.msra.mxu0 0.0
    %4253 = vmatprep.subr.mxu0 0.0
    %4254 = vmatpush1.msra.mxu0 0.0
    %4255 = vmatprep.subr.mxu0 0.0
    %4256 = vmatpush1.msra.mxu0 0.0
    %4257 = vmatprep.subr.mxu0 0.0
    %4258 = vmatpush1.msra.mxu0 0.0
    %4259 = vmatprep.subr.mxu0 0.0
    %4260 = vmatpush1.msra.mxu0 0.0
    %4261 = vmatprep.subr.mxu0 0.0
    %4262 = vmatpush1.msra.mxu0 0.0
    %4263 = vmatprep.subr.mxu0 0.0
    %4264 = vmatpush1.msra.mxu0 0.0
    %4265 = vmatprep.subr.mxu0 0.0
    %4266 = vmatpush1.msra.mxu0 0.0
    %4267 = vmatprep.mubr.f32.mxu0 0.0
    %v4268 = vand.u32 %v2943, 4294901760
    %v4269 = vsub.f32 %v2943, %v4268
    %4270 = vmatmul.mubr.f32.gmra.mrb[0].mxu0 %v4269
    %v4271 = vpop.f32.mrb[0].mxu0
    %v4272 = vadd.f32 %v4135, %v4271
    %v4273 = vpop.f32.mrb[0].mxu0
    %v4274 = vadd.f32 %v4137, %v4273
    %4275 = vdwg.mxu0
    %v4276 = vand.u32 %v174, 4294901760
    %4277 = vmatprep.subr.mxu0 %v4276
    %v4278 = vand.u32 %v173, 4294901760
    %4279 = vmatpush1.msra.mxu0 %v4278
    %v4280 = vand.u32 %v180, 4294901760
    %4281 = vmatprep.subr.mxu0 %v4280
    %v4282 = vand.u32 %v179, 4294901760
    %4283 = vmatpush1.msra.mxu0 %v4282
    %v4284 = vand.u32 %v186, 4294901760
    %4285 = vmatprep.subr.mxu0 %v4284
    %v4286 = vand.u32 %v185, 4294901760
    %4287 = vmatpush1.msra.mxu0 %v4286
    %v4288 = vand.u32 %v192, 4294901760
    %4289 = vmatprep.subr.mxu0 %v4288
    %v4290 = vand.u32 %v191, 4294901760
    %4291 = vmatpush1.msra.mxu0 %v4290
    %v4292 = vand.u32 %v198, 4294901760
    %4293 = vmatprep.subr.mxu0 %v4292
    %v4294 = vand.u32 %v197, 4294901760
    %4295 = vmatpush1.msra.mxu0 %v4294
    %v4296 = vand.u32 %v204, 4294901760
    %4297 = vmatprep.subr.mxu0 %v4296
    %v4298 = vand.u32 %v203, 4294901760
    %4299 = vmatpush1.msra.mxu0 %v4298
    %v4300 = vand.u32 %v210, 4294901760
    %4301 = vmatprep.subr.mxu0 %v4300
    %v4302 = vand.u32 %v209, 4294901760
    %4303 = vmatpush1.msra.mxu0 %v4302
    %v4304 = vand.u32 %v216, 4294901760
    %4305 = vmatprep.subr.mxu0 %v4304
    %v4306 = vand.u32 %v215, 4294901760
    %4307 = vmatpush1.msra.mxu0 %v4306
    %v4308 = vand.u32 %v222, 4294901760
    %4309 = vmatprep.subr.mxu0 %v4308
    %v4310 = vand.u32 %v221, 4294901760
    %4311 = vmatpush1.msra.mxu0 %v4310
    %v4312 = vand.u32 %v228, 4294901760
    %4313 = vmatprep.subr.mxu0 %v4312
    %v4314 = vand.u32 %v227, 4294901760
    %4315 = vmatpush1.msra.mxu0 %v4314
    %v4316 = vand.u32 %v234, 4294901760
    %4317 = vmatprep.subr.mxu0 %v4316
    %v4318 = vand.u32 %v233, 4294901760
    %4319 = vmatpush1.msra.mxu0 %v4318
    %v4320 = vand.u32 %v240, 4294901760
    %4321 = vmatprep.subr.mxu0 %v4320
    %v4322 = vand.u32 %v239, 4294901760
    %4323 = vmatpush1.msra.mxu0 %v4322
    %v4324 = vand.u32 %v246, 4294901760
    %4325 = vmatprep.subr.mxu0 %v4324
    %v4326 = vand.u32 %v245, 4294901760
    %4327 = vmatpush1.msra.mxu0 %v4326
    %v4328 = vand.u32 %v252, 4294901760
    %4329 = vmatprep.subr.mxu0 %v4328
    %v4330 = vand.u32 %v251, 4294901760
    %4331 = vmatpush1.msra.mxu0 %v4330
    %v4332 = vand.u32 %v258, 4294901760
    %4333 = vmatprep.subr.mxu0 %v4332
    %v4334 = vand.u32 %v257, 4294901760
    %4335 = vmatpush1.msra.mxu0 %v4334
    %v4336 = vand.u32 %v264, 4294901760
    %4337 = vmatprep.subr.mxu0 %v4336
    %v4338 = vand.u32 %v263, 4294901760
    %4339 = vmatpush1.msra.mxu0 %v4338
    %4340 = vmatprep.subr.mxu0 0.0
    %4341 = vmatpush1.msra.mxu0 0.0
    %4342 = vmatprep.subr.mxu0 0.0
    %4343 = vmatpush1.msra.mxu0 0.0
    %4344 = vmatprep.subr.mxu0 0.0
    %4345 = vmatpush1.msra.mxu0 0.0
    %4346 = vmatprep.subr.mxu0 0.0
    %4347 = vmatpush1.msra.mxu0 0.0
    %4348 = vmatprep.subr.mxu0 0.0
    %4349 = vmatpush1.msra.mxu0 0.0
    %4350 = vmatprep.subr.mxu0 0.0
    %4351 = vmatpush1.msra.mxu0 0.0
    %4352 = vmatprep.subr.mxu0 0.0
    %4353 = vmatpush1.msra.mxu0 0.0
    %4354 = vmatprep.subr.mxu0 0.0
    %4355 = vmatpush1.msra.mxu0 0.0
    %4356 = vmatprep.subr.mxu0 0.0
    %4357 = vmatpush1.msra.mxu0 0.0
    %4358 = vmatprep.subr.mxu0 0.0
    %4359 = vmatpush1.msra.mxu0 0.0
    %4360 = vmatprep.subr.mxu0 0.0
    %4361 = vmatpush1.msra.mxu0 0.0
    %4362 = vmatprep.subr.mxu0 0.0
    %4363 = vmatpush1.msra.mxu0 0.0
    %4364 = vmatprep.subr.mxu0 0.0
    %4365 = vmatpush1.msra.mxu0 0.0
    %4366 = vmatprep.subr.mxu0 0.0
    %4367 = vmatpush1.msra.mxu0 0.0
    %4368 = vmatprep.subr.mxu0 0.0
    %4369 = vmatpush1.msra.mxu0 0.0
    %4370 = vmatprep.subr.mxu0 0.0
    %4371 = vmatpush1.msra.mxu0 0.0
    %4372 = vmatprep.mubr.f32.mxu0 0.0
    %v4373 = vand.u32 %v2943, 4294901760
    %v4374 = vsub.f32 %v2943, %v4373
    %v4375 = vand.u32 %v4374, 4294901760
    %4376 = vmatmul.mubr.f32.gmra.mrb[0].mxu0 %v4375
    %v4377 = vpop.f32.mrb[0].mxu0
    %v4378 = vadd.f32 %v4272, %v4377
    %v4379 = vpop.f32.mrb[0].mxu0
    %v4380 = vadd.f32 %v4274, %v4379
    %4381 = vdwg.mxu0
    %v4382 = vand.u32 %v174, 4294901760
    %v4383 = vsub.f32 %v174, %v4382
    %v4384 = vand.u32 %v4383, 4294901760
    %4385 = vmatprep.subr.mxu0 %v4384
    %v4386 = vand.u32 %v173, 4294901760
    %v4387 = vsub.f32 %v173, %v4386
    %v4388 = vand.u32 %v4387, 4294901760
    %4389 = vmatpush1.msra.mxu0 %v4388
    %v4390 = vand.u32 %v180, 4294901760
    %v4391 = vsub.f32 %v180, %v4390
    %v4392 = vand.u32 %v4391, 4294901760
    %4393 = vmatprep.subr.mxu0 %v4392
    %v4394 = vand.u32 %v179, 4294901760
    %v4395 = vsub.f32 %v179, %v4394
    %v4396 = vand.u32 %v4395, 4294901760
    %4397 = vmatpush1.msra.mxu0 %v4396
    %v4398 = vand.u32 %v186, 4294901760
    %v4399 = vsub.f32 %v186, %v4398
    %v4400 = vand.u32 %v4399, 4294901760
    %4401 = vmatprep.subr.mxu0 %v4400
    %v4402 = vand.u32 %v185, 4294901760
    %v4403 = vsub.f32 %v185, %v4402
    %v4404 = vand.u32 %v4403, 4294901760
    %4405 = vmatpush1.msra.mxu0 %v4404
    %v4406 = vand.u32 %v192, 4294901760
    %v4407 = vsub.f32 %v192, %v4406
    %v4408 = vand.u32 %v4407, 4294901760
    %4409 = vmatprep.subr.mxu0 %v4408
    %v4410 = vand.u32 %v191, 4294901760
    %v4411 = vsub.f32 %v191, %v4410
    %v4412 = vand.u32 %v4411, 4294901760
    %4413 = vmatpush1.msra.mxu0 %v4412
    %v4414 = vand.u32 %v198, 4294901760
    %v4415 = vsub.f32 %v198, %v4414
    %v4416 = vand.u32 %v4415, 4294901760
    %4417 = vmatprep.subr.mxu0 %v4416
    %v4418 = vand.u32 %v197, 4294901760
    %v4419 = vsub.f32 %v197, %v4418
    %v4420 = vand.u32 %v4419, 4294901760
    %4421 = vmatpush1.msra.mxu0 %v4420
    %v4422 = vand.u32 %v204, 4294901760
    %v4423 = vsub.f32 %v204, %v4422
    %v4424 = vand.u32 %v4423, 4294901760
    %4425 = vmatprep.subr.mxu0 %v4424
    %v4426 = vand.u32 %v203, 4294901760
    %v4427 = vsub.f32 %v203, %v4426
    %v4428 = vand.u32 %v4427, 4294901760
    %4429 = vmatpush1.msra.mxu0 %v4428
    %v4430 = vand.u32 %v210, 4294901760
    %v4431 = vsub.f32 %v210, %v4430
    %v4432 = vand.u32 %v4431, 4294901760
    %4433 = vmatprep.subr.mxu0 %v4432
    %v4434 = vand.u32 %v209, 4294901760
    %v4435 = vsub.f32 %v209, %v4434
    %v4436 = vand.u32 %v4435, 4294901760
    %4437 = vmatpush1.msra.mxu0 %v4436
    %v4438 = vand.u32 %v216, 4294901760
    %v4439 = vsub.f32 %v216, %v4438
    %v4440 = vand.u32 %v4439, 4294901760
    %4441 = vmatprep.subr.mxu0 %v4440
    %v4442 = vand.u32 %v215, 4294901760
    %v4443 = vsub.f32 %v215, %v4442
    %v4444 = vand.u32 %v4443, 4294901760
    %4445 = vmatpush1.msra.mxu0 %v4444
    %v4446 = vand.u32 %v222, 4294901760
    %v4447 = vsub.f32 %v222, %v4446
    %v4448 = vand.u32 %v4447, 4294901760
    %4449 = vmatprep.subr.mxu0 %v4448
    %v4450 = vand.u32 %v221, 4294901760
    %v4451 = vsub.f32 %v221, %v4450
    %v4452 = vand.u32 %v4451, 4294901760
    %4453 = vmatpush1.msra.mxu0 %v4452
    %v4454 = vand.u32 %v228, 4294901760
    %v4455 = vsub.f32 %v228, %v4454
    %v4456 = vand.u32 %v4455, 4294901760
    %4457 = vmatprep.subr.mxu0 %v4456
    %v4458 = vand.u32 %v227, 4294901760
    %v4459 = vsub.f32 %v227, %v4458
    %v4460 = vand.u32 %v4459, 4294901760
    %4461 = vmatpush1.msra.mxu0 %v4460
    %v4462 = vand.u32 %v234, 4294901760
    %v4463 = vsub.f32 %v234, %v4462
    %v4464 = vand.u32 %v4463, 4294901760
    %4465 = vmatprep.subr.mxu0 %v4464
    %v4466 = vand.u32 %v233, 4294901760
    %v4467 = vsub.f32 %v233, %v4466
    %v4468 = vand.u32 %v4467, 4294901760
    %4469 = vmatpush1.msra.mxu0 %v4468
    %v4470 = vand.u32 %v240, 4294901760
    %v4471 = vsub.f32 %v240, %v4470
    %v4472 = vand.u32 %v4471, 4294901760
    %4473 = vmatprep.subr.mxu0 %v4472
    %v4474 = vand.u32 %v239, 4294901760
    %v4475 = vsub.f32 %v239, %v4474
    %v4476 = vand.u32 %v4475, 4294901760
    %4477 = vmatpush1.msra.mxu0 %v4476
    %v4478 = vand.u32 %v246, 4294901760
    %v4479 = vsub.f32 %v246, %v4478
    %v4480 = vand.u32 %v4479, 4294901760
    %4481 = vmatprep.subr.mxu0 %v4480
    %v4482 = vand.u32 %v245, 4294901760
    %v4483 = vsub.f32 %v245, %v4482
    %v4484 = vand.u32 %v4483, 4294901760
    %4485 = vmatpush1.msra.mxu0 %v4484
    %v4486 = vand.u32 %v252, 4294901760
    %v4487 = vsub.f32 %v252, %v4486
    %v4488 = vand.u32 %v4487, 4294901760
    %4489 = vmatprep.subr.mxu0 %v4488
    %v4490 = vand.u32 %v251, 4294901760
    %v4491 = vsub.f32 %v251, %v4490
    %v4492 = vand.u32 %v4491, 4294901760
    %4493 = vmatpush1.msra.mxu0 %v4492
    %v4494 = vand.u32 %v258, 4294901760
    %v4495 = vsub.f32 %v258, %v4494
    %v4496 = vand.u32 %v4495, 4294901760
    %4497 = vmatprep.subr.mxu0 %v4496
    %v4498 = vand.u32 %v257, 4294901760
    %v4499 = vsub.f32 %v257, %v4498
    %v4500 = vand.u32 %v4499, 4294901760
    %4501 = vmatpush1.msra.mxu0 %v4500
    %v4502 = vand.u32 %v264, 4294901760
    %v4503 = vsub.f32 %v264, %v4502
    %v4504 = vand.u32 %v4503, 4294901760
    %4505 = vmatprep.subr.mxu0 %v4504
    %v4506 = vand.u32 %v263, 4294901760
    %v4507 = vsub.f32 %v263, %v4506
    %v4508 = vand.u32 %v4507, 4294901760
    %4509 = vmatpush1.msra.mxu0 %v4508
    %4510 = vmatprep.subr.mxu0 0.0
    %4511 = vmatpush1.msra.mxu0 0.0
    %4512 = vmatprep.subr.mxu0 0.0
    %4513 = vmatpush1.msra.mxu0 0.0
    %4514 = vmatprep.subr.mxu0 0.0
    %4515 = vmatpush1.msra.mxu0 0.0
    %4516 = vmatprep.subr.mxu0 0.0
    %4517 = vmatpush1.msra.mxu0 0.0
    %4518 = vmatprep.subr.mxu0 0.0
    %4519 = vmatpush1.msra.mxu0 0.0
    %4520 = vmatprep.subr.mxu0 0.0
    %4521 = vmatpush1.msra.mxu0 0.0
    %4522 = vmatprep.subr.mxu0 0.0
    %4523 = vmatpush1.msra.mxu0 0.0
    %4524 = vmatprep.subr.mxu0 0.0
    %4525 = vmatpush1.msra.mxu0 0.0
    %4526 = vmatprep.subr.mxu0 0.0
    %4527 = vmatpush1.msra.mxu0 0.0
    %4528 = vmatprep.subr.mxu0 0.0
    %4529 = vmatpush1.msra.mxu0 0.0
    %4530 = vmatprep.subr.mxu0 0.0
    %4531 = vmatpush1.msra.mxu0 0.0
    %4532 = vmatprep.subr.mxu0 0.0
    %4533 = vmatpush1.msra.mxu0 0.0
    %4534 = vmatprep.subr.mxu0 0.0
    %4535 = vmatpush1.msra.mxu0 0.0
    %4536 = vmatprep.subr.mxu0 0.0
    %4537 = vmatpush1.msra.mxu0 0.0
    %4538 = vmatprep.subr.mxu0 0.0
    %4539 = vmatpush1.msra.mxu0 0.0
    %4540 = vmatprep.subr.mxu0 0.0
    %4541 = vmatpush1.msra.mxu0 0.0
    %4542 = vmatprep.mubr.f32.mxu0 0.0
    %v4543 = vand.u32 %v2943, 4294901760
    %4544 = vmatmul.mubr.f32.gmra.mrb[0].mxu0 %v4543
    %v4545 = vpop.f32.mrb[0].mxu0
    %v4546 = vadd.f32 %v4378, %v4545
    %v4547 = vpop.f32.mrb[0].mxu0
    %v4548 = vadd.f32 %v4380, %v4547
    %4549 = vdwg.mxu0
    %v4550 = vand.u32 %v174, 4294901760
    %4551 = vmatprep.subr.mxu0 %v4550
    %v4552 = vand.u32 %v173, 4294901760
    %4553 = vmatpush1.msra.mxu0 %v4552
    %v4554 = vand.u32 %v180, 4294901760
    %4555 = vmatprep.subr.mxu0 %v4554
    %v4556 = vand.u32 %v179, 4294901760
    %4557 = vmatpush1.msra.mxu0 %v4556
    %v4558 = vand.u32 %v186, 4294901760
    %4559 = vmatprep.subr.mxu0 %v4558
    %v4560 = vand.u32 %v185, 4294901760
    %4561 = vmatpush1.msra.mxu0 %v4560
    %v4562 = vand.u32 %v192, 4294901760
    %4563 = vmatprep.subr.mxu0 %v4562
    %v4564 = vand.u32 %v191, 4294901760
    %4565 = vmatpush1.msra.mxu0 %v4564
    %v4566 = vand.u32 %v198, 4294901760
    %4567 = vmatprep.subr.mxu0 %v4566
    %v4568 = vand.u32 %v197, 4294901760
    %4569 = vmatpush1.msra.mxu0 %v4568
    %v4570 = vand.u32 %v204, 4294901760
    %4571 = vmatprep.subr.mxu0 %v4570
    %v4572 = vand.u32 %v203, 4294901760
    %4573 = vmatpush1.msra.mxu0 %v4572
    %v4574 = vand.u32 %v210, 4294901760
    %4575 = vmatprep.subr.mxu0 %v4574
    %v4576 = vand.u32 %v209, 4294901760
    %4577 = vmatpush1.msra.mxu0 %v4576
    %v4578 = vand.u32 %v216, 4294901760
    %4579 = vmatprep.subr.mxu0 %v4578
    %v4580 = vand.u32 %v215, 4294901760
    %4581 = vmatpush1.msra.mxu0 %v4580
    %v4582 = vand.u32 %v222, 4294901760
    %4583 = vmatprep.subr.mxu0 %v4582
    %v4584 = vand.u32 %v221, 4294901760
    %4585 = vmatpush1.msra.mxu0 %v4584
    %v4586 = vand.u32 %v228, 4294901760
    %4587 = vmatprep.subr.mxu0 %v4586
    %v4588 = vand.u32 %v227, 4294901760
    %4589 = vmatpush1.msra.mxu0 %v4588
    %v4590 = vand.u32 %v234, 4294901760
    %4591 = vmatprep.subr.mxu0 %v4590
    %v4592 = vand.u32 %v233, 4294901760
    %4593 = vmatpush1.msra.mxu0 %v4592
    %v4594 = vand.u32 %v240, 4294901760
    %4595 = vmatprep.subr.mxu0 %v4594
    %v4596 = vand.u32 %v239, 4294901760
    %4597 = vmatpush1.msra.mxu0 %v4596
    %v4598 = vand.u32 %v246, 4294901760
    %4599 = vmatprep.subr.mxu0 %v4598
    %v4600 = vand.u32 %v245, 4294901760
    %4601 = vmatpush1.msra.mxu0 %v4600
    %v4602 = vand.u32 %v252, 4294901760
    %4603 = vmatprep.subr.mxu0 %v4602
    %v4604 = vand.u32 %v251, 4294901760
    %4605 = vmatpush1.msra.mxu0 %v4604
    %v4606 = vand.u32 %v258, 4294901760
    %4607 = vmatprep.subr.mxu0 %v4606
    %v4608 = vand.u32 %v257, 4294901760
    %4609 = vmatpush1.msra.mxu0 %v4608
    %v4610 = vand.u32 %v264, 4294901760
    %4611 = vmatprep.subr.mxu0 %v4610
    %v4612 = vand.u32 %v263, 4294901760
    %4613 = vmatpush1.msra.mxu0 %v4612
    %4614 = vmatprep.subr.mxu0 0.0
    %4615 = vmatpush1.msra.mxu0 0.0
    %4616 = vmatprep.subr.mxu0 0.0
    %4617 = vmatpush1.msra.mxu0 0.0
    %4618 = vmatprep.subr.mxu0 0.0
    %4619 = vmatpush1.msra.mxu0 0.0
    %4620 = vmatprep.subr.mxu0 0.0
    %4621 = vmatpush1.msra.mxu0 0.0
    %4622 = vmatprep.subr.mxu0 0.0
    %4623 = vmatpush1.msra.mxu0 0.0
    %4624 = vmatprep.subr.mxu0 0.0
    %4625 = vmatpush1.msra.mxu0 0.0
    %4626 = vmatprep.subr.mxu0 0.0
    %4627 = vmatpush1.msra.mxu0 0.0
    %4628 = vmatprep.subr.mxu0 0.0
    %4629 = vmatpush1.msra.mxu0 0.0
    %4630 = vmatprep.subr.mxu0 0.0
    %4631 = vmatpush1.msra.mxu0 0.0
    %4632 = vmatprep.subr.mxu0 0.0
    %4633 = vmatpush1.msra.mxu0 0.0
    %4634 = vmatprep.subr.mxu0 0.0
    %4635 = vmatpush1.msra.mxu0 0.0
    %4636 = vmatprep.subr.mxu0 0.0
    %4637 = vmatpush1.msra.mxu0 0.0
    %4638 = vmatprep.subr.mxu0 0.0
    %4639 = vmatpush1.msra.mxu0 0.0
    %4640 = vmatprep.subr.mxu0 0.0
    %4641 = vmatpush1.msra.mxu0 0.0
    %4642 = vmatprep.subr.mxu0 0.0
    %4643 = vmatpush1.msra.mxu0 0.0
    %4644 = vmatprep.subr.mxu0 0.0
    %4645 = vmatpush1.msra.mxu0 0.0
    %4646 = vmatprep.mubr.f32.mxu0 0.0
    %v4647 = vand.u32 %v2943, 4294901760
    %4648 = vmatmul.mubr.f32.gmra.mrb[0].mxu0 %v4647
    %v4649 = vpop.f32.mrb[0].mxu0
    %v4650 = vadd.f32 %v4546, %v4649
    %v4651 = vpop.f32.mrb[0].mxu0
    %v4652 = vadd.f32 %v4548, %v4651
    %4653 = vdwg.mxu0
    %v4654 = vand.u32 %v176, 4294901760
    %4655 = vmatprep.subr.mxu0 %v4654
    %v4656 = vand.u32 %v175, 4294901760
    %4657 = vmatpush1.msra.mxu0 %v4656
    %v4658 = vand.u32 %v182, 4294901760
    %4659 = vmatprep.subr.mxu0 %v4658
    %v4660 = vand.u32 %v181, 4294901760
    %4661 = vmatpush1.msra.mxu0 %v4660
    %v4662 = vand.u32 %v188, 4294901760
    %4663 = vmatprep.subr.mxu0 %v4662
    %v4664 = vand.u32 %v187, 4294901760
    %4665 = vmatpush1.msra.mxu0 %v4664
    %v4666 = vand.u32 %v194, 4294901760
    %4667 = vmatprep.subr.mxu0 %v4666
    %v4668 = vand.u32 %v193, 4294901760
    %4669 = vmatpush1.msra.mxu0 %v4668
    %v4670 = vand.u32 %v200, 4294901760
    %4671 = vmatprep.subr.mxu0 %v4670
    %v4672 = vand.u32 %v199, 4294901760
    %4673 = vmatpush1.msra.mxu0 %v4672
    %v4674 = vand.u32 %v206, 4294901760
    %4675 = vmatprep.subr.mxu0 %v4674
    %v4676 = vand.u32 %v205, 4294901760
    %4677 = vmatpush1.msra.mxu0 %v4676
    %v4678 = vand.u32 %v212, 4294901760
    %4679 = vmatprep.subr.mxu0 %v4678
    %v4680 = vand.u32 %v211, 4294901760
    %4681 = vmatpush1.msra.mxu0 %v4680
    %v4682 = vand.u32 %v218, 4294901760
    %4683 = vmatprep.subr.mxu0 %v4682
    %v4684 = vand.u32 %v217, 4294901760
    %4685 = vmatpush1.msra.mxu0 %v4684
    %v4686 = vand.u32 %v224, 4294901760
    %4687 = vmatprep.subr.mxu0 %v4686
    %v4688 = vand.u32 %v223, 4294901760
    %4689 = vmatpush1.msra.mxu0 %v4688
    %v4690 = vand.u32 %v230, 4294901760
    %4691 = vmatprep.subr.mxu0 %v4690
    %v4692 = vand.u32 %v229, 4294901760
    %4693 = vmatpush1.msra.mxu0 %v4692
    %v4694 = vand.u32 %v236, 4294901760
    %4695 = vmatprep.subr.mxu0 %v4694
    %v4696 = vand.u32 %v235, 4294901760
    %4697 = vmatpush1.msra.mxu0 %v4696
    %v4698 = vand.u32 %v242, 4294901760
    %4699 = vmatprep.subr.mxu0 %v4698
    %v4700 = vand.u32 %v241, 4294901760
    %4701 = vmatpush1.msra.mxu0 %v4700
    %v4702 = vand.u32 %v248, 4294901760
    %4703 = vmatprep.subr.mxu0 %v4702
    %v4704 = vand.u32 %v247, 4294901760
    %4705 = vmatpush1.msra.mxu0 %v4704
    %v4706 = vand.u32 %v254, 4294901760
    %4707 = vmatprep.subr.mxu0 %v4706
    %v4708 = vand.u32 %v253, 4294901760
    %4709 = vmatpush1.msra.mxu0 %v4708
    %v4710 = vand.u32 %v260, 4294901760
    %4711 = vmatprep.subr.mxu0 %v4710
    %v4712 = vand.u32 %v259, 4294901760
    %4713 = vmatpush1.msra.mxu0 %v4712
    %v4714 = vand.u32 %v266, 4294901760
    %4715 = vmatprep.subr.mxu0 %v4714
    %v4716 = vand.u32 %v265, 4294901760
    %4717 = vmatpush1.msra.mxu0 %v4716
    %4718 = vmatprep.subr.mxu0 0.0
    %4719 = vmatpush1.msra.mxu0 0.0
    %4720 = vmatprep.subr.mxu0 0.0
    %4721 = vmatpush1.msra.mxu0 0.0
    %4722 = vmatprep.subr.mxu0 0.0
    %4723 = vmatpush1.msra.mxu0 0.0
    %4724 = vmatprep.subr.mxu0 0.0
    %4725 = vmatpush1.msra.mxu0 0.0
    %4726 = vmatprep.subr.mxu0 0.0
    %4727 = vmatpush1.msra.mxu0 0.0
    %4728 = vmatprep.subr.mxu0 0.0
    %4729 = vmatpush1.msra.mxu0 0.0
    %4730 = vmatprep.subr.mxu0 0.0
    %4731 = vmatpush1.msra.mxu0 0.0
    %4732 = vmatprep.subr.mxu0 0.0
    %4733 = vmatpush1.msra.mxu0 0.0
    %4734 = vmatprep.subr.mxu0 0.0
    %4735 = vmatpush1.msra.mxu0 0.0
    %4736 = vmatprep.subr.mxu0 0.0
    %4737 = vmatpush1.msra.mxu0 0.0
    %4738 = vmatprep.subr.mxu0 0.0
    %4739 = vmatpush1.msra.mxu0 0.0
    %4740 = vmatprep.subr.mxu0 0.0
    %4741 = vmatpush1.msra.mxu0 0.0
    %4742 = vmatprep.subr.mxu0 0.0
    %4743 = vmatpush1.msra.mxu0 0.0
    %4744 = vmatprep.subr.mxu0 0.0
    %4745 = vmatpush1.msra.mxu0 0.0
    %4746 = vmatprep.subr.mxu0 0.0
    %4747 = vmatpush1.msra.mxu0 0.0
    %4748 = vmatprep.subr.mxu0 0.0
    %4749 = vmatpush1.msra.mxu0 0.0
    %4750 = vmatprep.mubr.f32.mxu0 0.0
    %v4751 = vand.u32 %v2943, 4294901760
    %v4752 = vsub.f32 %v2943, %v4751
    %v4753 = vand.u32 %v4752, 4294901760
    %v4754 = vsub.f32 %v4752, %v4753
    %v4755 = vand.u32 %v4754, 4294901760
    %4756 = vmatmul.mubr.f32.gmra.mrb[0].mxu0 %v4755
    %v4757 = vpop.f32.mrb[0].mxu0
    %v4758 = vadd.f32 0.0, %v4757
    %v4759 = vpop.f32.mrb[0].mxu0
    %v4760 = vadd.f32 0.0, %v4759
    %4761 = vdwg.mxu0
    %v4762 = vand.u32 %v176, 4294901760
    %v4763 = vsub.f32 %v176, %v4762
    %v4764 = vand.u32 %v4763, 4294901760
    %v4765 = vsub.f32 %v4763, %v4764
    %v4766 = vand.u32 %v4765, 4294901760
    %4767 = vmatprep.subr.mxu0 %v4766
    %v4768 = vand.u32 %v175, 4294901760
    %v4769 = vsub.f32 %v175, %v4768
    %v4770 = vand.u32 %v4769, 4294901760
    %v4771 = vsub.f32 %v4769, %v4770
    %v4772 = vand.u32 %v4771, 4294901760
    %4773 = vmatpush1.msra.mxu0 %v4772
    %v4774 = vand.u32 %v182, 4294901760
    %v4775 = vsub.f32 %v182, %v4774
    %v4776 = vand.u32 %v4775, 4294901760
    %v4777 = vsub.f32 %v4775, %v4776
    %v4778 = vand.u32 %v4777, 4294901760
    %4779 = vmatprep.subr.mxu0 %v4778
    %v4780 = vand.u32 %v181, 4294901760
    %v4781 = vsub.f32 %v181, %v4780
    %v4782 = vand.u32 %v4781, 4294901760
    %v4783 = vsub.f32 %v4781, %v4782
    %v4784 = vand.u32 %v4783, 4294901760
    %4785 = vmatpush1.msra.mxu0 %v4784
    %v4786 = vand.u32 %v188, 4294901760
    %v4787 = vsub.f32 %v188, %v4786
    %v4788 = vand.u32 %v4787, 4294901760
    %v4789 = vsub.f32 %v4787, %v4788
    %v4790 = vand.u32 %v4789, 4294901760
    %4791 = vmatprep.subr.mxu0 %v4790
    %v4792 = vand.u32 %v187, 4294901760
    %v4793 = vsub.f32 %v187, %v4792
    %v4794 = vand.u32 %v4793, 4294901760
    %v4795 = vsub.f32 %v4793, %v4794
    %v4796 = vand.u32 %v4795, 4294901760
    %4797 = vmatpush1.msra.mxu0 %v4796
    %v4798 = vand.u32 %v194, 4294901760
    %v4799 = vsub.f32 %v194, %v4798
    %v4800 = vand.u32 %v4799, 4294901760
    %v4801 = vsub.f32 %v4799, %v4800
    %v4802 = vand.u32 %v4801, 4294901760
    %4803 = vmatprep.subr.mxu0 %v4802
    %v4804 = vand.u32 %v193, 4294901760
    %v4805 = vsub.f32 %v193, %v4804
    %v4806 = vand.u32 %v4805, 4294901760
    %v4807 = vsub.f32 %v4805, %v4806
    %v4808 = vand.u32 %v4807, 4294901760
    %4809 = vmatpush1.msra.mxu0 %v4808
    %v4810 = vand.u32 %v200, 4294901760
    %v4811 = vsub.f32 %v200, %v4810
    %v4812 = vand.u32 %v4811, 4294901760
    %v4813 = vsub.f32 %v4811, %v4812
    %v4814 = vand.u32 %v4813, 4294901760
    %4815 = vmatprep.subr.mxu0 %v4814
    %v4816 = vand.u32 %v199, 4294901760
    %v4817 = vsub.f32 %v199, %v4816
    %v4818 = vand.u32 %v4817, 4294901760
    %v4819 = vsub.f32 %v4817, %v4818
    %v4820 = vand.u32 %v4819, 4294901760
    %4821 = vmatpush1.msra.mxu0 %v4820
    %v4822 = vand.u32 %v206, 4294901760
    %v4823 = vsub.f32 %v206, %v4822
    %v4824 = vand.u32 %v4823, 4294901760
    %v4825 = vsub.f32 %v4823, %v4824
    %v4826 = vand.u32 %v4825, 4294901760
    %4827 = vmatprep.subr.mxu0 %v4826
    %v4828 = vand.u32 %v205, 4294901760
    %v4829 = vsub.f32 %v205, %v4828
    %v4830 = vand.u32 %v4829, 4294901760
    %v4831 = vsub.f32 %v4829, %v4830
    %v4832 = vand.u32 %v4831, 4294901760
    %4833 = vmatpush1.msra.mxu0 %v4832
    %v4834 = vand.u32 %v212, 4294901760
    %v4835 = vsub.f32 %v212, %v4834
    %v4836 = vand.u32 %v4835, 4294901760
    %v4837 = vsub.f32 %v4835, %v4836
    %v4838 = vand.u32 %v4837, 4294901760
    %4839 = vmatprep.subr.mxu0 %v4838
    %v4840 = vand.u32 %v211, 4294901760
    %v4841 = vsub.f32 %v211, %v4840
    %v4842 = vand.u32 %v4841, 4294901760
    %v4843 = vsub.f32 %v4841, %v4842
    %v4844 = vand.u32 %v4843, 4294901760
    %4845 = vmatpush1.msra.mxu0 %v4844
    %v4846 = vand.u32 %v218, 4294901760
    %v4847 = vsub.f32 %v218, %v4846
    %v4848 = vand.u32 %v4847, 4294901760
    %v4849 = vsub.f32 %v4847, %v4848
    %v4850 = vand.u32 %v4849, 4294901760
    %4851 = vmatprep.subr.mxu0 %v4850
    %v4852 = vand.u32 %v217, 4294901760
    %v4853 = vsub.f32 %v217, %v4852
    %v4854 = vand.u32 %v4853, 4294901760
    %v4855 = vsub.f32 %v4853, %v4854
    %v4856 = vand.u32 %v4855, 4294901760
    %4857 = vmatpush1.msra.mxu0 %v4856
    %v4858 = vand.u32 %v224, 4294901760
    %v4859 = vsub.f32 %v224, %v4858
    %v4860 = vand.u32 %v4859, 4294901760
    %v4861 = vsub.f32 %v4859, %v4860
    %v4862 = vand.u32 %v4861, 4294901760
    %4863 = vmatprep.subr.mxu0 %v4862
    %v4864 = vand.u32 %v223, 4294901760
    %v4865 = vsub.f32 %v223, %v4864
    %v4866 = vand.u32 %v4865, 4294901760
    %v4867 = vsub.f32 %v4865, %v4866
    %v4868 = vand.u32 %v4867, 4294901760
    %4869 = vmatpush1.msra.mxu0 %v4868
    %v4870 = vand.u32 %v230, 4294901760
    %v4871 = vsub.f32 %v230, %v4870
    %v4872 = vand.u32 %v4871, 4294901760
    %v4873 = vsub.f32 %v4871, %v4872
    %v4874 = vand.u32 %v4873, 4294901760
    %4875 = vmatprep.subr.mxu0 %v4874
    %v4876 = vand.u32 %v229, 4294901760
    %v4877 = vsub.f32 %v229, %v4876
    %v4878 = vand.u32 %v4877, 4294901760
    %v4879 = vsub.f32 %v4877, %v4878
    %v4880 = vand.u32 %v4879, 4294901760
    %4881 = vmatpush1.msra.mxu0 %v4880
    %v4882 = vand.u32 %v236, 4294901760
    %v4883 = vsub.f32 %v236, %v4882
    %v4884 = vand.u32 %v4883, 4294901760
    %v4885 = vsub.f32 %v4883, %v4884
    %v4886 = vand.u32 %v4885, 4294901760
    %4887 = vmatprep.subr.mxu0 %v4886
    %v4888 = vand.u32 %v235, 4294901760
    %v4889 = vsub.f32 %v235, %v4888
    %v4890 = vand.u32 %v4889, 4294901760
    %v4891 = vsub.f32 %v4889, %v4890
    %v4892 = vand.u32 %v4891, 4294901760
    %4893 = vmatpush1.msra.mxu0 %v4892
    %v4894 = vand.u32 %v242, 4294901760
    %v4895 = vsub.f32 %v242, %v4894
    %v4896 = vand.u32 %v4895, 4294901760
    %v4897 = vsub.f32 %v4895, %v4896
    %v4898 = vand.u32 %v4897, 4294901760
    %4899 = vmatprep.subr.mxu0 %v4898
    %v4900 = vand.u32 %v241, 4294901760
    %v4901 = vsub.f32 %v241, %v4900
    %v4902 = vand.u32 %v4901, 4294901760
    %v4903 = vsub.f32 %v4901, %v4902
    %v4904 = vand.u32 %v4903, 4294901760
    %4905 = vmatpush1.msra.mxu0 %v4904
    %v4906 = vand.u32 %v248, 4294901760
    %v4907 = vsub.f32 %v248, %v4906
    %v4908 = vand.u32 %v4907, 4294901760
    %v4909 = vsub.f32 %v4907, %v4908
    %v4910 = vand.u32 %v4909, 4294901760
    %4911 = vmatprep.subr.mxu0 %v4910
    %v4912 = vand.u32 %v247, 4294901760
    %v4913 = vsub.f32 %v247, %v4912
    %v4914 = vand.u32 %v4913, 4294901760
    %v4915 = vsub.f32 %v4913, %v4914
    %v4916 = vand.u32 %v4915, 4294901760
    %4917 = vmatpush1.msra.mxu0 %v4916
    %v4918 = vand.u32 %v254, 4294901760
    %v4919 = vsub.f32 %v254, %v4918
    %v4920 = vand.u32 %v4919, 4294901760
    %v4921 = vsub.f32 %v4919, %v4920
    %v4922 = vand.u32 %v4921, 4294901760
    %4923 = vmatprep.subr.mxu0 %v4922
    %v4924 = vand.u32 %v253, 4294901760
    %v4925 = vsub.f32 %v253, %v4924
    %v4926 = vand.u32 %v4925, 4294901760
    %v4927 = vsub.f32 %v4925, %v4926
    %v4928 = vand.u32 %v4927, 4294901760
    %4929 = vmatpush1.msra.mxu0 %v4928
    %v4930 = vand.u32 %v260, 4294901760
    %v4931 = vsub.f32 %v260, %v4930
    %v4932 = vand.u32 %v4931, 4294901760
    %v4933 = vsub.f32 %v4931, %v4932
    %v4934 = vand.u32 %v4933, 4294901760
    %4935 = vmatprep.subr.mxu0 %v4934
    %v4936 = vand.u32 %v259, 4294901760
    %v4937 = vsub.f32 %v259, %v4936
    %v4938 = vand.u32 %v4937, 4294901760
    %v4939 = vsub.f32 %v4937, %v4938
    %v4940 = vand.u32 %v4939, 4294901760
    %4941 = vmatpush1.msra.mxu0 %v4940
    %v4942 = vand.u32 %v266, 4294901760
    %v4943 = vsub.f32 %v266, %v4942
    %v4944 = vand.u32 %v4943, 4294901760
    %v4945 = vsub.f32 %v4943, %v4944
    %v4946 = vand.u32 %v4945, 4294901760
    %4947 = vmatprep.subr.mxu0 %v4946
    %v4948 = vand.u32 %v265, 4294901760
    %v4949 = vsub.f32 %v265, %v4948
    %v4950 = vand.u32 %v4949, 4294901760
    %v4951 = vsub.f32 %v4949, %v4950
    %v4952 = vand.u32 %v4951, 4294901760
    %4953 = vmatpush1.msra.mxu0 %v4952
    %4954 = vmatprep.subr.mxu0 0.0
    %4955 = vmatpush1.msra.mxu0 0.0
    %4956 = vmatprep.subr.mxu0 0.0
    %4957 = vmatpush1.msra.mxu0 0.0
    %4958 = vmatprep.subr.mxu0 0.0
    %4959 = vmatpush1.msra.mxu0 0.0
    %4960 = vmatprep.subr.mxu0 0.0
    %4961 = vmatpush1.msra.mxu0 0.0
    %4962 = vmatprep.subr.mxu0 0.0
    %4963 = vmatpush1.msra.mxu0 0.0
    %4964 = vmatprep.subr.mxu0 0.0
    %4965 = vmatpush1.msra.mxu0 0.0
    %4966 = vmatprep.subr.mxu0 0.0
    %4967 = vmatpush1.msra.mxu0 0.0
    %4968 = vmatprep.subr.mxu0 0.0
    %4969 = vmatpush1.msra.mxu0 0.0
    %4970 = vmatprep.subr.mxu0 0.0
    %4971 = vmatpush1.msra.mxu0 0.0
    %4972 = vmatprep.subr.mxu0 0.0
    %4973 = vmatpush1.msra.mxu0 0.0
    %4974 = vmatprep.subr.mxu0 0.0
    %4975 = vmatpush1.msra.mxu0 0.0
    %4976 = vmatprep.subr.mxu0 0.0
    %4977 = vmatpush1.msra.mxu0 0.0
    %4978 = vmatprep.subr.mxu0 0.0
    %4979 = vmatpush1.msra.mxu0 0.0
    %4980 = vmatprep.subr.mxu0 0.0
    %4981 = vmatpush1.msra.mxu0 0.0
    %4982 = vmatprep.subr.mxu0 0.0
    %4983 = vmatpush1.msra.mxu0 0.0
    %4984 = vmatprep.subr.mxu0 0.0
    %4985 = vmatpush1.msra.mxu0 0.0
    %4986 = vmatprep.mubr.f32.mxu0 0.0
    %v4987 = vand.u32 %v2943, 4294901760
    %4988 = vmatmul.mubr.f32.gmra.mrb[0].mxu0 %v4987
    %v4989 = vpop.f32.mrb[0].mxu0
    %v4990 = vadd.f32 %v4758, %v4989
    %v4991 = vpop.f32.mrb[0].mxu0
    %v4992 = vadd.f32 %v4760, %v4991
    %4993 = vdwg.mxu0
    %v4994 = vand.u32 %v176, 4294901760
    %v4995 = vsub.f32 %v176, %v4994
    %4996 = vmatprep.subr.mxu0 %v4995
    %v4997 = vand.u32 %v175, 4294901760
    %v4998 = vsub.f32 %v175, %v4997
    %4999 = vmatpush1.msra.mxu0 %v4998
    %v5000 = vand.u32 %v182, 4294901760
    %v5001 = vsub.f32 %v182, %v5000
    %5002 = vmatprep.subr.mxu0 %v5001
    %v5003 = vand.u32 %v181, 4294901760
    %v5004 = vsub.f32 %v181, %v5003
    %5005 = vmatpush1.msra.mxu0 %v5004
    %v5006 = vand.u32 %v188, 4294901760
    %v5007 = vsub.f32 %v188, %v5006
    %5008 = vmatprep.subr.mxu0 %v5007
    %v5009 = vand.u32 %v187, 4294901760
    %v5010 = vsub.f32 %v187, %v5009
    %5011 = vmatpush1.msra.mxu0 %v5010
    %v5012 = vand.u32 %v194, 4294901760
    %v5013 = vsub.f32 %v194, %v5012
    %5014 = vmatprep.subr.mxu0 %v5013
    %v5015 = vand.u32 %v193, 4294901760
    %v5016 = vsub.f32 %v193, %v5015
    %5017 = vmatpush1.msra.mxu0 %v5016
    %v5018 = vand.u32 %v200, 4294901760
    %v5019 = vsub.f32 %v200, %v5018
    %5020 = vmatprep.subr.mxu0 %v5019
    %v5021 = vand.u32 %v199, 4294901760
    %v5022 = vsub.f32 %v199, %v5021
    %5023 = vmatpush1.msra.mxu0 %v5022
    %v5024 = vand.u32 %v206, 4294901760
    %v5025 = vsub.f32 %v206, %v5024
    %5026 = vmatprep.subr.mxu0 %v5025
    %v5027 = vand.u32 %v205, 4294901760
    %v5028 = vsub.f32 %v205, %v5027
    %5029 = vmatpush1.msra.mxu0 %v5028
    %v5030 = vand.u32 %v212, 4294901760
    %v5031 = vsub.f32 %v212, %v5030
    %5032 = vmatprep.subr.mxu0 %v5031
    %v5033 = vand.u32 %v211, 4294901760
    %v5034 = vsub.f32 %v211, %v5033
    %5035 = vmatpush1.msra.mxu0 %v5034
    %v5036 = vand.u32 %v218, 4294901760
    %v5037 = vsub.f32 %v218, %v5036
    %5038 = vmatprep.subr.mxu0 %v5037
    %v5039 = vand.u32 %v217, 4294901760
    %v5040 = vsub.f32 %v217, %v5039
    %5041 = vmatpush1.msra.mxu0 %v5040
    %v5042 = vand.u32 %v224, 4294901760
    %v5043 = vsub.f32 %v224, %v5042
    %5044 = vmatprep.subr.mxu0 %v5043
    %v5045 = vand.u32 %v223, 4294901760
    %v5046 = vsub.f32 %v223, %v5045
    %5047 = vmatpush1.msra.mxu0 %v5046
    %v5048 = vand.u32 %v230, 4294901760
    %v5049 = vsub.f32 %v230, %v5048
    %5050 = vmatprep.subr.mxu0 %v5049
    %v5051 = vand.u32 %v229, 4294901760
    %v5052 = vsub.f32 %v229, %v5051
    %5053 = vmatpush1.msra.mxu0 %v5052
    %v5054 = vand.u32 %v236, 4294901760
    %v5055 = vsub.f32 %v236, %v5054
    %5056 = vmatprep.subr.mxu0 %v5055
    %v5057 = vand.u32 %v235, 4294901760
    %v5058 = vsub.f32 %v235, %v5057
    %5059 = vmatpush1.msra.mxu0 %v5058
    %v5060 = vand.u32 %v242, 4294901760
    %v5061 = vsub.f32 %v242, %v5060
    %5062 = vmatprep.subr.mxu0 %v5061
    %v5063 = vand.u32 %v241, 4294901760
    %v5064 = vsub.f32 %v241, %v5063
    %5065 = vmatpush1.msra.mxu0 %v5064
    %v5066 = vand.u32 %v248, 4294901760
    %v5067 = vsub.f32 %v248, %v5066
    %5068 = vmatprep.subr.mxu0 %v5067
    %v5069 = vand.u32 %v247, 4294901760
    %v5070 = vsub.f32 %v247, %v5069
    %5071 = vmatpush1.msra.mxu0 %v5070
    %v5072 = vand.u32 %v254, 4294901760
    %v5073 = vsub.f32 %v254, %v5072
    %5074 = vmatprep.subr.mxu0 %v5073
    %v5075 = vand.u32 %v253, 4294901760
    %v5076 = vsub.f32 %v253, %v5075
    %5077 = vmatpush1.msra.mxu0 %v5076
    %v5078 = vand.u32 %v260, 4294901760
    %v5079 = vsub.f32 %v260, %v5078
    %5080 = vmatprep.subr.mxu0 %v5079
    %v5081 = vand.u32 %v259, 4294901760
    %v5082 = vsub.f32 %v259, %v5081
    %5083 = vmatpush1.msra.mxu0 %v5082
    %v5084 = vand.u32 %v266, 4294901760
    %v5085 = vsub.f32 %v266, %v5084
    %5086 = vmatprep.subr.mxu0 %v5085
    %v5087 = vand.u32 %v265, 4294901760
    %v5088 = vsub.f32 %v265, %v5087
    %5089 = vmatpush1.msra.mxu0 %v5088
    %5090 = vmatprep.subr.mxu0 0.0
    %5091 = vmatpush1.msra.mxu0 0.0
    %5092 = vmatprep.subr.mxu0 0.0
    %5093 = vmatpush1.msra.mxu0 0.0
    %5094 = vmatprep.subr.mxu0 0.0
    %5095 = vmatpush1.msra.mxu0 0.0
    %5096 = vmatprep.subr.mxu0 0.0
    %5097 = vmatpush1.msra.mxu0 0.0
    %5098 = vmatprep.subr.mxu0 0.0
    %5099 = vmatpush1.msra.mxu0 0.0
    %5100 = vmatprep.subr.mxu0 0.0
    %5101 = vmatpush1.msra.mxu0 0.0
    %5102 = vmatprep.subr.mxu0 0.0
    %5103 = vmatpush1.msra.mxu0 0.0
    %5104 = vmatprep.subr.mxu0 0.0
    %5105 = vmatpush1.msra.mxu0 0.0
    %5106 = vmatprep.subr.mxu0 0.0
    %5107 = vmatpush1.msra.mxu0 0.0
    %5108 = vmatprep.subr.mxu0 0.0
    %5109 = vmatpush1.msra.mxu0 0.0
    %5110 = vmatprep.subr.mxu0 0.0
    %5111 = vmatpush1.msra.mxu0 0.0
    %5112 = vmatprep.subr.mxu0 0.0
    %5113 = vmatpush1.msra.mxu0 0.0
    %5114 = vmatprep.subr.mxu0 0.0
    %5115 = vmatpush1.msra.mxu0 0.0
    %5116 = vmatprep.subr.mxu0 0.0
    %5117 = vmatpush1.msra.mxu0 0.0
    %5118 = vmatprep.subr.mxu0 0.0
    %5119 = vmatpush1.msra.mxu0 0.0
    %5120 = vmatprep.subr.mxu0 0.0
    %5121 = vmatpush1.msra.mxu0 0.0
    %5122 = vmatprep.mubr.f32.mxu0 0.0
    %v5123 = vand.u32 %v2943, 4294901760
    %v5124 = vsub.f32 %v2943, %v5123
    %5125 = vmatmul.mubr.f32.gmra.mrb[0].mxu0 %v5124
    %v5126 = vpop.f32.mrb[0].mxu0
    %v5127 = vadd.f32 %v4990, %v5126
    %v5128 = vpop.f32.mrb[0].mxu0
    %v5129 = vadd.f32 %v4992, %v5128
    %5130 = vdwg.mxu0
    %v5131 = vand.u32 %v176, 4294901760
    %5132 = vmatprep.subr.mxu0 %v5131
    %v5133 = vand.u32 %v175, 4294901760
    %5134 = vmatpush1.msra.mxu0 %v5133
    %v5135 = vand.u32 %v182, 4294901760
    %5136 = vmatprep.subr.mxu0 %v5135
    %v5137 = vand.u32 %v181, 4294901760
    %5138 = vmatpush1.msra.mxu0 %v5137
    %v5139 = vand.u32 %v188, 4294901760
    %5140 = vmatprep.subr.mxu0 %v5139
    %v5141 = vand.u32 %v187, 4294901760
    %5142 = vmatpush1.msra.mxu0 %v5141
    %v5143 = vand.u32 %v194, 4294901760
    %5144 = vmatprep.subr.mxu0 %v5143
    %v5145 = vand.u32 %v193, 4294901760
    %5146 = vmatpush1.msra.mxu0 %v5145
    %v5147 = vand.u32 %v200, 4294901760
    %5148 = vmatprep.subr.mxu0 %v5147
    %v5149 = vand.u32 %v199, 4294901760
    %5150 = vmatpush1.msra.mxu0 %v5149
    %v5151 = vand.u32 %v206, 4294901760
    %5152 = vmatprep.subr.mxu0 %v5151
    %v5153 = vand.u32 %v205, 4294901760
    %5154 = vmatpush1.msra.mxu0 %v5153
    %v5155 = vand.u32 %v212, 4294901760
    %5156 = vmatprep.subr.mxu0 %v5155
    %v5157 = vand.u32 %v211, 4294901760
    %5158 = vmatpush1.msra.mxu0 %v5157
    %v5159 = vand.u32 %v218, 4294901760
    %5160 = vmatprep.subr.mxu0 %v5159
    %v5161 = vand.u32 %v217, 4294901760
    %5162 = vmatpush1.msra.mxu0 %v5161
    %v5163 = vand.u32 %v224, 4294901760
    %5164 = vmatprep.subr.mxu0 %v5163
    %v5165 = vand.u32 %v223, 4294901760
    %5166 = vmatpush1.msra.mxu0 %v5165
    %v5167 = vand.u32 %v230, 4294901760
    %5168 = vmatprep.subr.mxu0 %v5167
    %v5169 = vand.u32 %v229, 4294901760
    %5170 = vmatpush1.msra.mxu0 %v5169
    %v5171 = vand.u32 %v236, 4294901760
    %5172 = vmatprep.subr.mxu0 %v5171
    %v5173 = vand.u32 %v235, 4294901760
    %5174 = vmatpush1.msra.mxu0 %v5173
    %v5175 = vand.u32 %v242, 4294901760
    %5176 = vmatprep.subr.mxu0 %v5175
    %v5177 = vand.u32 %v241, 4294901760
    %5178 = vmatpush1.msra.mxu0 %v5177
    %v5179 = vand.u32 %v248, 4294901760
    %5180 = vmatprep.subr.mxu0 %v5179
    %v5181 = vand.u32 %v247, 4294901760
    %5182 = vmatpush1.msra.mxu0 %v5181
    %v5183 = vand.u32 %v254, 4294901760
    %5184 = vmatprep.subr.mxu0 %v5183
    %v5185 = vand.u32 %v253, 4294901760
    %5186 = vmatpush1.msra.mxu0 %v5185
    %v5187 = vand.u32 %v260, 4294901760
    %5188 = vmatprep.subr.mxu0 %v5187
    %v5189 = vand.u32 %v259, 4294901760
    %5190 = vmatpush1.msra.mxu0 %v5189
    %v5191 = vand.u32 %v266, 4294901760
    %5192 = vmatprep.subr.mxu0 %v5191
    %v5193 = vand.u32 %v265, 4294901760
    %5194 = vmatpush1.msra.mxu0 %v5193
    %5195 = vmatprep.subr.mxu0 0.0
    %5196 = vmatpush1.msra.mxu0 0.0
    %5197 = vmatprep.subr.mxu0 0.0
    %5198 = vmatpush1.msra.mxu0 0.0
    %5199 = vmatprep.subr.mxu0 0.0
    %5200 = vmatpush1.msra.mxu0 0.0
    %5201 = vmatprep.subr.mxu0 0.0
    %5202 = vmatpush1.msra.mxu0 0.0
    %5203 = vmatprep.subr.mxu0 0.0
    %5204 = vmatpush1.msra.mxu0 0.0
    %5205 = vmatprep.subr.mxu0 0.0
    %5206 = vmatpush1.msra.mxu0 0.0
    %5207 = vmatprep.subr.mxu0 0.0
    %5208 = vmatpush1.msra.mxu0 0.0
    %5209 = vmatprep.subr.mxu0 0.0
    %5210 = vmatpush1.msra.mxu0 0.0
    %5211 = vmatprep.subr.mxu0 0.0
    %5212 = vmatpush1.msra.mxu0 0.0
    %5213 = vmatprep.subr.mxu0 0.0
    %5214 = vmatpush1.msra.mxu0 0.0
    %5215 = vmatprep.subr.mxu0 0.0
    %5216 = vmatpush1.msra.mxu0 0.0
    %5217 = vmatprep.subr.mxu0 0.0
    %5218 = vmatpush1.msra.mxu0 0.0
    %5219 = vmatprep.subr.mxu0 0.0
    %5220 = vmatpush1.msra.mxu0 0.0
    %5221 = vmatprep.subr.mxu0 0.0
    %5222 = vmatpush1.msra.mxu0 0.0
    %5223 = vmatprep.subr.mxu0 0.0
    %5224 = vmatpush1.msra.mxu0 0.0
    %5225 = vmatprep.subr.mxu0 0.0
    %5226 = vmatpush1.msra.mxu0 0.0
    %5227 = vmatprep.mubr.f32.mxu0 0.0
    %v5228 = vand.u32 %v2943, 4294901760
    %v5229 = vsub.f32 %v2943, %v5228
    %v5230 = vand.u32 %v5229, 4294901760
    %5231 = vmatmul.mubr.f32.gmra.mrb[0].mxu0 %v5230
    %v5232 = vpop.f32.mrb[0].mxu0
    %v5233 = vadd.f32 %v5127, %v5232
    %v5234 = vpop.f32.mrb[0].mxu0
    %v5235 = vadd.f32 %v5129, %v5234
    %5236 = vdwg.mxu0
    %v5237 = vand.u32 %v176, 4294901760
    %v5238 = vsub.f32 %v176, %v5237
    %v5239 = vand.u32 %v5238, 4294901760
    %5240 = vmatprep.subr.mxu0 %v5239
    %v5241 = vand.u32 %v175, 4294901760
    %v5242 = vsub.f32 %v175, %v5241
    %v5243 = vand.u32 %v5242, 4294901760
    %5244 = vmatpush1.msra.mxu0 %v5243
    %v5245 = vand.u32 %v182, 4294901760
    %v5246 = vsub.f32 %v182, %v5245
    %v5247 = vand.u32 %v5246, 4294901760
    %5248 = vmatprep.subr.mxu0 %v5247
    %v5249 = vand.u32 %v181, 4294901760
    %v5250 = vsub.f32 %v181, %v5249
    %v5251 = vand.u32 %v5250, 4294901760
    %5252 = vmatpush1.msra.mxu0 %v5251
    %v5253 = vand.u32 %v188, 4294901760
    %v5254 = vsub.f32 %v188, %v5253
    %v5255 = vand.u32 %v5254, 4294901760
    %5256 = vmatprep.subr.mxu0 %v5255
    %v5257 = vand.u32 %v187, 4294901760
    %v5258 = vsub.f32 %v187, %v5257
    %v5259 = vand.u32 %v5258, 4294901760
    %5260 = vmatpush1.msra.mxu0 %v5259
    %v5261 = vand.u32 %v194, 4294901760
    %v5262 = vsub.f32 %v194, %v5261
    %v5263 = vand.u32 %v5262, 4294901760
    %5264 = vmatprep.subr.mxu0 %v5263
    %v5265 = vand.u32 %v193, 4294901760
    %v5266 = vsub.f32 %v193, %v5265
    %v5267 = vand.u32 %v5266, 4294901760
    %5268 = vmatpush1.msra.mxu0 %v5267
    %v5269 = vand.u32 %v200, 4294901760
    %v5270 = vsub.f32 %v200, %v5269
    %v5271 = vand.u32 %v5270, 4294901760
    %5272 = vmatprep.subr.mxu0 %v5271
    %v5273 = vand.u32 %v199, 4294901760
    %v5274 = vsub.f32 %v199, %v5273
    %v5275 = vand.u32 %v5274, 4294901760
    %5276 = vmatpush1.msra.mxu0 %v5275
    %v5277 = vand.u32 %v206, 4294901760
    %v5278 = vsub.f32 %v206, %v5277
    %v5279 = vand.u32 %v5278, 4294901760
    %5280 = vmatprep.subr.mxu0 %v5279
    %v5281 = vand.u32 %v205, 4294901760
    %v5282 = vsub.f32 %v205, %v5281
    %v5283 = vand.u32 %v5282, 4294901760
    %5284 = vmatpush1.msra.mxu0 %v5283
    %v5285 = vand.u32 %v212, 4294901760
    %v5286 = vsub.f32 %v212, %v5285
    %v5287 = vand.u32 %v5286, 4294901760
    %5288 = vmatprep.subr.mxu0 %v5287
    %v5289 = vand.u32 %v211, 4294901760
    %v5290 = vsub.f32 %v211, %v5289
    %v5291 = vand.u32 %v5290, 4294901760
    %5292 = vmatpush1.msra.mxu0 %v5291
    %v5293 = vand.u32 %v218, 4294901760
    %v5294 = vsub.f32 %v218, %v5293
    %v5295 = vand.u32 %v5294, 4294901760
    %5296 = vmatprep.subr.mxu0 %v5295
    %v5297 = vand.u32 %v217, 4294901760
    %v5298 = vsub.f32 %v217, %v5297
    %v5299 = vand.u32 %v5298, 4294901760
    %5300 = vmatpush1.msra.mxu0 %v5299
    %v5301 = vand.u32 %v224, 4294901760
    %v5302 = vsub.f32 %v224, %v5301
    %v5303 = vand.u32 %v5302, 4294901760
    %5304 = vmatprep.subr.mxu0 %v5303
    %v5305 = vand.u32 %v223, 4294901760
    %v5306 = vsub.f32 %v223, %v5305
    %v5307 = vand.u32 %v5306, 4294901760
    %5308 = vmatpush1.msra.mxu0 %v5307
    %v5309 = vand.u32 %v230, 4294901760
    %v5310 = vsub.f32 %v230, %v5309
    %v5311 = vand.u32 %v5310, 4294901760
    %5312 = vmatprep.subr.mxu0 %v5311
    %v5313 = vand.u32 %v229, 4294901760
    %v5314 = vsub.f32 %v229, %v5313
    %v5315 = vand.u32 %v5314, 4294901760
    %5316 = vmatpush1.msra.mxu0 %v5315
    %v5317 = vand.u32 %v236, 4294901760
    %v5318 = vsub.f32 %v236, %v5317
    %v5319 = vand.u32 %v5318, 4294901760
    %5320 = vmatprep.subr.mxu0 %v5319
    %v5321 = vand.u32 %v235, 4294901760
    %v5322 = vsub.f32 %v235, %v5321
    %v5323 = vand.u32 %v5322, 4294901760
    %5324 = vmatpush1.msra.mxu0 %v5323
    %v5325 = vand.u32 %v242, 4294901760
    %v5326 = vsub.f32 %v242, %v5325
    %v5327 = vand.u32 %v5326, 4294901760
    %5328 = vmatprep.subr.mxu0 %v5327
    %v5329 = vand.u32 %v241, 4294901760
    %v5330 = vsub.f32 %v241, %v5329
    %v5331 = vand.u32 %v5330, 4294901760
    %5332 = vmatpush1.msra.mxu0 %v5331
    %v5333 = vand.u32 %v248, 4294901760
    %v5334 = vsub.f32 %v248, %v5333
    %v5335 = vand.u32 %v5334, 4294901760
    %5336 = vmatprep.subr.mxu0 %v5335
    %v5337 = vand.u32 %v247, 4294901760
    %v5338 = vsub.f32 %v247, %v5337
    %v5339 = vand.u32 %v5338, 4294901760
    %5340 = vmatpush1.msra.mxu0 %v5339
    %v5341 = vand.u32 %v254, 4294901760
    %v5342 = vsub.f32 %v254, %v5341
    %v5343 = vand.u32 %v5342, 4294901760
    %5344 = vmatprep.subr.mxu0 %v5343
    %v5345 = vand.u32 %v253, 4294901760
    %v5346 = vsub.f32 %v253, %v5345
    %v5347 = vand.u32 %v5346, 4294901760
    %5348 = vmatpush1.msra.mxu0 %v5347
    %v5349 = vand.u32 %v260, 4294901760
    %v5350 = vsub.f32 %v260, %v5349
    %v5351 = vand.u32 %v5350, 4294901760
    %5352 = vmatprep.subr.mxu0 %v5351
    %v5353 = vand.u32 %v259, 4294901760
    %v5354 = vsub.f32 %v259, %v5353
    %v5355 = vand.u32 %v5354, 4294901760
    %5356 = vmatpush1.msra.mxu0 %v5355
    %v5357 = vand.u32 %v266, 4294901760
    %v5358 = vsub.f32 %v266, %v5357
    %v5359 = vand.u32 %v5358, 4294901760
    %5360 = vmatprep.subr.mxu0 %v5359
    %v5361 = vand.u32 %v265, 4294901760
    %v5362 = vsub.f32 %v265, %v5361
    %v5363 = vand.u32 %v5362, 4294901760
    %5364 = vmatpush1.msra.mxu0 %v5363
    %5365 = vmatprep.subr.mxu0 0.0
    %5366 = vmatpush1.msra.mxu0 0.0
    %5367 = vmatprep.subr.mxu0 0.0
    %5368 = vmatpush1.msra.mxu0 0.0
    %5369 = vmatprep.subr.mxu0 0.0
    %5370 = vmatpush1.msra.mxu0 0.0
    %5371 = vmatprep.subr.mxu0 0.0
    %5372 = vmatpush1.msra.mxu0 0.0
    %5373 = vmatprep.subr.mxu0 0.0
    %5374 = vmatpush1.msra.mxu0 0.0
    %5375 = vmatprep.subr.mxu0 0.0
    %5376 = vmatpush1.msra.mxu0 0.0
    %5377 = vmatprep.subr.mxu0 0.0
    %5378 = vmatpush1.msra.mxu0 0.0
    %5379 = vmatprep.subr.mxu0 0.0
    %5380 = vmatpush1.msra.mxu0 0.0
    %5381 = vmatprep.subr.mxu0 0.0
    %5382 = vmatpush1.msra.mxu0 0.0
    %5383 = vmatprep.subr.mxu0 0.0
    %5384 = vmatpush1.msra.mxu0 0.0
    %5385 = vmatprep.subr.mxu0 0.0
    %5386 = vmatpush1.msra.mxu0 0.0
    %5387 = vmatprep.subr.mxu0 0.0
    %5388 = vmatpush1.msra.mxu0 0.0
    %5389 = vmatprep.subr.mxu0 0.0
    %5390 = vmatpush1.msra.mxu0 0.0
    %5391 = vmatprep.subr.mxu0 0.0
    %5392 = vmatpush1.msra.mxu0 0.0
    %5393 = vmatprep.subr.mxu0 0.0
    %5394 = vmatpush1.msra.mxu0 0.0
    %5395 = vmatprep.subr.mxu0 0.0
    %5396 = vmatpush1.msra.mxu0 0.0
    %5397 = vmatprep.mubr.f32.mxu0 0.0
    %v5398 = vand.u32 %v2943, 4294901760
    %5399 = vmatmul.mubr.f32.gmra.mrb[0].mxu0 %v5398
    %v5400 = vpop.f32.mrb[0].mxu0
    %v5401 = vadd.f32 %v5233, %v5400
    %v5402 = vpop.f32.mrb[0].mxu0
    %v5403 = vadd.f32 %v5235, %v5402
    %5404 = vdwg.mxu0
    %v5405 = vand.u32 %v176, 4294901760
    %5406 = vmatprep.subr.mxu0 %v5405
    %v5407 = vand.u32 %v175, 4294901760
    %5408 = vmatpush1.msra.mxu0 %v5407
    %v5409 = vand.u32 %v182, 4294901760
    %5410 = vmatprep.subr.mxu0 %v5409
    %v5411 = vand.u32 %v181, 4294901760
    %5412 = vmatpush1.msra.mxu0 %v5411
    %v5413 = vand.u32 %v188, 4294901760
    %5414 = vmatprep.subr.mxu0 %v5413
    %v5415 = vand.u32 %v187, 4294901760
    %5416 = vmatpush1.msra.mxu0 %v5415
    %v5417 = vand.u32 %v194, 4294901760
    %5418 = vmatprep.subr.mxu0 %v5417
    %v5419 = vand.u32 %v193, 4294901760
    %5420 = vmatpush1.msra.mxu0 %v5419
    %v5421 = vand.u32 %v200, 4294901760
    %5422 = vmatprep.subr.mxu0 %v5421
    %v5423 = vand.u32 %v199, 4294901760
    %5424 = vmatpush1.msra.mxu0 %v5423
    %v5425 = vand.u32 %v206, 4294901760
    %5426 = vmatprep.subr.mxu0 %v5425
    %v5427 = vand.u32 %v205, 4294901760
    %5428 = vmatpush1.msra.mxu0 %v5427
    %v5429 = vand.u32 %v212, 4294901760
    %5430 = vmatprep.subr.mxu0 %v5429
    %v5431 = vand.u32 %v211, 4294901760
    %5432 = vmatpush1.msra.mxu0 %v5431
    %v5433 = vand.u32 %v218, 4294901760
    %5434 = vmatprep.subr.mxu0 %v5433
    %v5435 = vand.u32 %v217, 4294901760
    %5436 = vmatpush1.msra.mxu0 %v5435
    %v5437 = vand.u32 %v224, 4294901760
    %5438 = vmatprep.subr.mxu0 %v5437
    %v5439 = vand.u32 %v223, 4294901760
    %5440 = vmatpush1.msra.mxu0 %v5439
    %v5441 = vand.u32 %v230, 4294901760
    %5442 = vmatprep.subr.mxu0 %v5441
    %v5443 = vand.u32 %v229, 4294901760
    %5444 = vmatpush1.msra.mxu0 %v5443
    %v5445 = vand.u32 %v236, 4294901760
    %5446 = vmatprep.subr.mxu0 %v5445
    %v5447 = vand.u32 %v235, 4294901760
    %5448 = vmatpush1.msra.mxu0 %v5447
    %v5449 = vand.u32 %v242, 4294901760
    %5450 = vmatprep.subr.mxu0 %v5449
    %v5451 = vand.u32 %v241, 4294901760
    %5452 = vmatpush1.msra.mxu0 %v5451
    %v5453 = vand.u32 %v248, 4294901760
    %5454 = vmatprep.subr.mxu0 %v5453
    %v5455 = vand.u32 %v247, 4294901760
    %5456 = vmatpush1.msra.mxu0 %v5455
    %v5457 = vand.u32 %v254, 4294901760
    %5458 = vmatprep.subr.mxu0 %v5457
    %v5459 = vand.u32 %v253, 4294901760
    %5460 = vmatpush1.msra.mxu0 %v5459
    %v5461 = vand.u32 %v260, 4294901760
    %5462 = vmatprep.subr.mxu0 %v5461
    %v5463 = vand.u32 %v259, 4294901760
    %5464 = vmatpush1.msra.mxu0 %v5463
    %v5465 = vand.u32 %v266, 4294901760
    %5466 = vmatprep.subr.mxu0 %v5465
    %v5467 = vand.u32 %v265, 4294901760
    %5468 = vmatpush1.msra.mxu0 %v5467
    %5469 = vmatprep.subr.mxu0 0.0
    %5470 = vmatpush1.msra.mxu0 0.0
    %5471 = vmatprep.subr.mxu0 0.0
    %5472 = vmatpush1.msra.mxu0 0.0
    %5473 = vmatprep.subr.mxu0 0.0
    %5474 = vmatpush1.msra.mxu0 0.0
    %5475 = vmatprep.subr.mxu0 0.0
    %5476 = vmatpush1.msra.mxu0 0.0
    %5477 = vmatprep.subr.mxu0 0.0
    %5478 = vmatpush1.msra.mxu0 0.0
    %5479 = vmatprep.subr.mxu0 0.0
    %5480 = vmatpush1.msra.mxu0 0.0
    %5481 = vmatprep.subr.mxu0 0.0
    %5482 = vmatpush1.msra.mxu0 0.0
    %5483 = vmatprep.subr.mxu0 0.0
    %5484 = vmatpush1.msra.mxu0 0.0
    %5485 = vmatprep.subr.mxu0 0.0
    %5486 = vmatpush1.msra.mxu0 0.0
    %5487 = vmatprep.subr.mxu0 0.0
    %5488 = vmatpush1.msra.mxu0 0.0
    %5489 = vmatprep.subr.mxu0 0.0
    %5490 = vmatpush1.msra.mxu0 0.0
    %5491 = vmatprep.subr.mxu0 0.0
    %5492 = vmatpush1.msra.mxu0 0.0
    %5493 = vmatprep.subr.mxu0 0.0
    %5494 = vmatpush1.msra.mxu0 0.0
    %5495 = vmatprep.subr.mxu0 0.0
    %5496 = vmatpush1.msra.mxu0 0.0
    %5497 = vmatprep.subr.mxu0 0.0
    %5498 = vmatpush1.msra.mxu0 0.0
    %5499 = vmatprep.subr.mxu0 0.0
    %5500 = vmatpush1.msra.mxu0 0.0
    %5501 = vmatprep.mubr.f32.mxu0 0.0
    %v5502 = vand.u32 %v2943, 4294901760
    %5503 = vmatmul.mubr.f32.gmra.mrb[0].mxu0 %v5502
    %v5504 = vpop.f32.mrb[0].mxu0
    %v5505 = vadd.f32 %v5401, %v5504
    %v5506 = vpop.f32.mrb[0].mxu0
    %v5507 = vadd.f32 %v5403, %v5506
    %5508 = vdwg.mxu0
    %v5515 = vcombine.low %v3795, %v3797
    %v5516 = vcombine.low %v4650, %v4652
    %v5517 = vcombine.low %v5505, %v5507
    %v5519 = vunpack.c.l.s4 1966171168
    %v5520 = vunpack.c.0.s8 %v5519
    %v5521 = vlaneseq
    %v5522 = vshrl.u32 %v5521, 7
    %v5523 = vsub.s32 %v5520, %v5522
    %v5524 = vrot.slane %v5515, %v5523
    %v5526 = vunpack.c.l.s4 1966171168
    %v5527 = vunpack.c.0.s8 %v5526
    %v5528 = vlaneseq
    %v5529 = vshrl.u32 %v5528, 7
    %v5530 = vsub.s32 %v5527, %v5529
    %v5531 = vrot.slane %v5516, %v5530
    %v5533 = vunpack.c.l.s4 1966171168
    %v5534 = vunpack.c.0.s8 %v5533
    %v5535 = vlaneseq
    %v5536 = vshrl.u32 %v5535, 7
    %v5537 = vsub.s32 %v5534, %v5536
    %v5538 = vrot.slane %v5517, %v5537
    %v5539 = vcombine.low %v5524, %v5531
    %v5541 = vunpack.c.l.s4 1966171168
    %v5542 = vunpack.c.0.s8 %v5541
    %v5543 = vlaneseq
    %v5544 = vshrl.u32 %v5543, 7
    %v5545 = vsub.s32 %v5542, %v5544
    %v5546 = vrot.slane %v5539, %v5545
    %v5548 = vunpack.c.l.s4 1966171168
    %v5549 = vunpack.c.0.s8 %v5548
    %v5550 = vlaneseq
    %v5551 = vshrl.u32 %v5550, 7
    %v5552 = vsub.s32 %v5549, %v5551
    %v5553 = vrot.slane %v5538, %v5552
    %v5554 = vcombine.low %v5546, %v5553
    %v5556 = vmul.f32 %v271, %v5554
    %v5557 = vcombine.high %v5524, %v5531
    %v5558 = vcombine.high %v5538, %v5538
    %v5560 = vunpack.c.l.s4 1966171168
    %v5561 = vunpack.c.0.s8 %v5560
    %v5562 = vlaneseq
    %v5563 = vshrl.u32 %v5562, 7
    %v5564 = vsub.s32 %v5561, %v5563
    %v5565 = vrot.slane %v5557, %v5564
    %v5567 = vunpack.c.l.s4 1966171168
    %v5568 = vunpack.c.0.s8 %v5567
    %v5569 = vlaneseq
    %v5570 = vshrl.u32 %v5569, 7
    %v5571 = vsub.s32 %v5568, %v5570
    %v5572 = vrot.slane %v5558, %v5571
    %v5573 = vcombine.low %v5565, %v5572
    %v5575 = vsub.f32 %v5556, %v5573
    %v5576 = vmul.f32 %v5575, %v267
    %v5577 = vadd.f32 %v5576, %v268
    %v5578 = vlaneseq
    %vm5579 = vcmp.ge.s32.totalorder %v5578, 0
    %vm5580 = vcmp.lt.s32.totalorder %v5578, 768
    %vm5581 = vmand %vm5579, %vm5580
    %5582 = vst.msk [vmem:[#allocation10] sm:$0x3f] %vm5581, %v5577
    // Predicated region
    $region42: #{tpu_custom_call.1} parent=1 // pred_check
      _
    $region43: #{tpu_custom_call.1} parent=1 // pred_check_branch
      %5584 = sbr.rel (0) target = $region45
    $region44: #{tpu_custom_call.1} parent=1 // pred_region
      %s5586 = ssub.s32 96, 96
      %5587 = vsyncadd [#allocation4], %s5586
      %s5589 = sshll.u32 [#allocation10], 4
      %s5590 = int_to_ptr.vmem [resolvable:$true] %s5589
      %5592 = dma.vmem_to_hbm [thread:$0]  %s5590, 96, %s6, [#allocation4]
    $region45: #{tpu_custom_call.1} parent=1 // pred_fallthru
      _
    // Predicated region
    $region46: #{tpu_custom_call.1} parent=1 // pred_check
      _
    $region47: #{tpu_custom_call.1} parent=1 // pred_check_branch
      %5594 = sbr.rel (0) target = $region49
    $region48: #{tpu_custom_call.1} parent=1 // pred_region
      %5595 = dma.done [#allocation4], 96
    $region49: #{tpu_custom_call.1} parent=1 // pred_fallthru
      _
    %5596 = vsyncpa [#allocation3], 1
    %5597 = vsyncpa [#allocation6], 1
    %5598 = vsyncpa [#allocation9], 1
    %5599 = vsyncpa [#allocation4], 1

</llo_original>
